<compile_context>
chip_gen: v7x
topology: tpu7x:2x2x1
jax: 0.10.0
libtpu: 0.0.40
codegen_flags: <defaults>
</compile_context>

<pallas_src>
import functools

import jax
import jax.numpy as jnp
from jax import lax
from jax.experimental import pallas as pl
from jax.experimental.pallas import tpu as pltpu


# ------------------------------ fused kernel ---------------------------------

def _sfa_fused_kernel(cbr_w_ref, cbr_scale_ref, cbr_shift_ref, kron_ref,
                      feb_w_ref, feb_scale_ref, feb_shift_ref,
                      woff_ref, mask_ref, ixb_ref, iyb_ref, tri_ref, wsp_ref,
                      fl_ref, fh_ref, o_ref, xext_ref, *, c, hh, wh, lpad):
    f32 = jnp.float32
    p = hh * wh

    # ---- 1. CBR(fl): 1x1 conv + folded BN + ReLU ----------------------------
    fl_c = jnp.dot(cbr_w_ref[...], fl_ref[...], preferred_element_type=f32)
    fl_c = jnp.maximum(fl_c * cbr_scale_ref[...] + cbr_shift_ref[...], 0.0)   # (C, Pl)

    # ---- 2. bilinear upsample (align_corners=True): one kron matmul ---------
    fl_up = jnp.dot(fl_c, kron_ref[...], preferred_element_type=f32)          # (C, P)

    # ---- 3. FEB(fh): 1x1 conv + folded BN + ReLU ----------------------------
    fh_feb = jnp.dot(feb_w_ref[...], fh_ref[...], preferred_element_type=f32)
    fh_feb = jnp.maximum(fh_feb * feb_scale_ref[...] + feb_shift_ref[...], 0.0)  # (C, P)

    # ---- 4. FAA 3x3 offset conv (zero pad) as ONE stacked matmul ------------
    # xext: zero-margined flattened [fh_feb ; fl_up] image; lane margin
    # lpad >= wh+1 on both sides so every tap is a static in-bounds lane slice.
    xext_ref[...] = jnp.zeros_like(xext_ref)
    xext_ref[0:c, lpad:lpad + p] = fh_feb
    xext_ref[c:2 * c, lpad:lpad + p] = fl_up
    parts = []
    for di in range(3):
        for dj in range(3):
            t = di * 3 + dj
            start = lpad + (di - 1) * wh + (dj - 1)
            parts.append(xext_ref[:, start:start + p] * mask_ref[t])          # (2C, P)
    stacked = jnp.concatenate(parts, axis=0)                                  # (18C, P)
    offset = jnp.dot(woff_ref[...], stacked, preferred_element_type=f32)      # (2, P)

    # ---- 5. grid_sample(fl_up) bilinear / zeros padding / align_corners -----
    ix = ixb_ref[...] + offset[0:1, :] * ((wh - 1.0) / (2.0 * wh))            # (1, P)
    iy = iyb_ref[...] + offset[1:2, :] * ((hh - 1.0) / (2.0 * hh))            # (1, P)
    x0 = jnp.floor(ix)
    y0 = jnp.floor(iy)
    wx = ix - x0
    wy = iy - y0
    q = hh * wh                                     # source (fl_up) spatial size
    row = lax.broadcasted_iota(jnp.int32, (q, p), 0)
    sel = jnp.zeros((q, p), f32)
    for dx, dy, wgt in ((0.0, 0.0, (1.0 - wx) * (1.0 - wy)),
                        (1.0, 0.0, wx * (1.0 - wy)),
                        (0.0, 1.0, (1.0 - wx) * wy),
                        (1.0, 1.0, wx * wy)):
        xc = x0 + dx
        yc = y0 + dy
        valid = ((xc >= 0.0) & (xc <= wh - 1.0) &
                 (yc >= 0.0) & (yc <= hh - 1.0)).astype(f32)
        flat = yc.astype(jnp.int32) * wh + xc.astype(jnp.int32)               # (1, P)
        sel = sel + (row == flat).astype(f32) * (wgt * valid)                 # (Q, P)
    fls = jnp.dot(fl_up, sel, preferred_element_type=f32)                     # (C, P)

    # ---- 6. SCA: spatial sigmoid attention + ECA channel attention ----------
    x = fh_feb + fls                                                          # (C, P)
    m = jnp.sum(x, axis=1, keepdims=True) * (1.0 / p)                         # (C, 1)
    chan = jax.nn.sigmoid(
        jnp.dot(tri_ref[...], m, preferred_element_type=f32))                 # (C, 1)
    spatial = jax.nn.sigmoid(
        jnp.dot(wsp_ref[...], x, preferred_element_type=f32))                 # (1, P)
    o_ref[...] = (x * spatial + x * chan).astype(o_ref.dtype)


# ------------------------------ host-side helpers ----------------------------

def fold_bn(gamma, beta, mean, var, eps=1e-5):
    scale = gamma / jnp.sqrt(var + eps)
    shift = beta - mean * scale
    return scale[:, None].astype(jnp.float32), shift[:, None].astype(jnp.float32)


def interp_matrix(dst, src):
    """Row-interpolation matrix for F.interpolate(mode='bilinear', align_corners=True)."""
    if dst == 1:
        return jnp.zeros((1, src), jnp.float32).at[0, 0].set(1.0)
    pos = jnp.arange(dst, dtype=jnp.float32) * (src - 1) / (dst - 1)
    i0 = jnp.clip(jnp.floor(pos).astype(jnp.int32), 0, max(src - 2, 0))
    frac = pos - i0.astype(jnp.float32)
    return (jax.nn.one_hot(i0, src, dtype=jnp.float32) * (1.0 - frac)[:, None]
            + jax.nn.one_hot(i0 + 1, src, dtype=jnp.float32) * frac[:, None])


def _conv3x3_masks(hh, wh):
    # Validity masks for the 9 shifted taps (padding=1 zero padding).
    ii = jnp.arange(hh)[:, None]
    jj = jnp.arange(wh)[None, :]
    masks = []
    for a in (-1, 0, 1):
        for b in (-1, 0, 1):
            valid = ((ii + a >= 0) & (ii + a < hh) & (jj + b >= 0) & (jj + b < wh))
            masks.append(valid.reshape(1, hh * wh))
    return jnp.stack(masks, axis=0).astype(jnp.float32)          # (9, 1, P)


def _eca_tridiag(k, c):
    # 3-tap ECA Conv1d (zero padded) as a tridiagonal (C, C) matrix.
    i = jnp.arange(c)[:, None]
    j = jnp.arange(c)[None, :]
    return (k[0] * (j == i - 1) + k[1] * (j == i) + k[2] * (j == i + 1)
            ).astype(jnp.float32)


def make_params(key, cbr_in, feb_in, faa_in, inter):
    ks = jax.random.split(key, 12)

    def rnd(k, shape, s=0.3):
        return (s * jax.random.normal(k, shape)).astype(jnp.float32)

    p = {}
    # CBR: 1x1 Conv2d(cbr_in -> inter, bias=False) + BatchNorm2d(inter) + ReLU
    p['cbr_w'] = rnd(ks[0], (inter, cbr_in))
    p['cbr_gamma'] = (1.0 + 0.1 * jax.random.normal(ks[1], (inter,))).astype(jnp.float32)
    p['cbr_beta'] = (0.1 * jax.random.normal(ks[2], (inter,))).astype(jnp.float32)
    p['cbr_mean'] = (0.05 * jax.random.normal(ks[3], (inter,))).astype(jnp.float32)
    p['cbr_var'] = (1.0 + 0.1 * jnp.abs(jax.random.normal(ks[4], (inter,)))).astype(jnp.float32)
    # FEB: instantiated as 1x1 CBR(feb_in, feb_in) (ctor `block` is undefined in source).
    p['feb_w'] = rnd(ks[5], (feb_in, feb_in))
    p['feb_gamma'] = (1.0 + 0.1 * jax.random.normal(ks[6], (feb_in,))).astype(jnp.float32)
    p['feb_beta'] = (0.1 * jax.random.normal(ks[7], (feb_in,))).astype(jnp.float32)
    p['feb_mean'] = (0.05 * jax.random.normal(ks[8], (feb_in,))).astype(jnp.float32)
    p['feb_var'] = (1.0 + 0.1 * jnp.abs(jax.random.normal(ks[9], (feb_in,)))).astype(jnp.float32)
    # FAA: offset = Conv2d(2*faa_in, 2, 3, pad=1, bias=False)
    p['off_w'] = rnd(ks[10], (2, 2 * faa_in, 3, 3), s=0.1)
    # SCA: spatial = Conv2d(faa_in, 1, 1, bias=False); ECA: Conv1d(1, 1, 3, pad=1, bias=False)
    k_a, k_b = jax.random.split(ks[11])
    p['sca_sp_w'] = rnd(k_a, (1, faa_in))
    p['eca_k'] = rnd(k_b, (3,))
    return p


def sfa_forward(fh_nchw, fl_nchw, params):
    f32 = jnp.float32
    n, c, hh, wh = fh_nchw.shape
    _, c_fl, hl, wl = fl_nchw.shape
    p = hh * wh
    p_low = hl * wl

    c_int = params['cbr_w'].shape[0]
    assert c_int == c, "FAA/SCA require inter_channels == FEB channels"

    # Folded BatchNorm affines (inference mode).
    cbr_scale, cbr_shift = fold_bn(params['cbr_gamma'], params['cbr_beta'],
                                   params['cbr_mean'], params['cbr_var'])
    feb_scale, feb_shift = fold_bn(params['feb_gamma'], params['feb_beta'],
                                   params['feb_mean'], params['feb_var'])

    # Bilinear-upsample kron matrix (align_corners=True): (Hl*Wl, Hh*Wh).
    rh = interp_matrix(hh, hl)                                    # (Hh, Hl)
    rw = interp_matrix(wh, wl)                                    # (Wh, Wl)
    kron = jnp.einsum('ij,kl->jlik', rh, rw).reshape(p_low, p).astype(f32)

    # Offset-conv weight, tap-stacked along the contraction axis: (2, 9*2C).
    # torch weight (2, 2C, 3, 3); contraction index = tap*2C + channel, channel
    # order [fh channels, fl channels] (== torch.cat([fh, fl], dim=1)).
    woff = jnp.transpose(params['off_w'], (0, 2, 3, 1)).reshape(2, 9 * 2 * c).astype(f32)
    mask = _conv3x3_masks(hh, wh)                                 # (9, 1, P)

    # Base sampling coordinates in source-pixel space (align_corners=True).
    gx = jnp.linspace(-1.0, 1.0, wh, dtype=f32)[None, :]
    gy = jnp.linspace(-1.0, 1.0, hh, dtype=f32)[:, None]
    ix_base = jnp.broadcast_to((gx + 1.0) * (wh - 1) * 0.5, (hh, wh)).reshape(1, p)
    iy_base = jnp.broadcast_to((gy + 1.0) * (hh - 1) * 0.5, (hh, wh)).reshape(1, p)

    tri = _eca_tridiag(params['eca_k'].astype(f32), c)            # (C, C)
    wsp = params['sca_sp_w'].astype(f32)                          # (1, C)

    fl2 = fl_nchw.reshape(n, c_fl, p_low).astype(f32)
    fh2 = fh_nchw.reshape(n, c, p).astype(f32)

    lpad = ((wh + 1 + 127) // 128) * 128                          # lane margin for taps

    out = pl.pallas_call(
        functools.partial(_sfa_fused_kernel, c=c, hh=hh, wh=wh, lpad=lpad),
        out_shape=jax.ShapeDtypeStruct((n, c, p), f32),
        grid=(n,),
        in_specs=[
            pl.BlockSpec((c, c_fl), lambda b: (0, 0)),            # cbr_w
            pl.BlockSpec((c, 1), lambda b: (0, 0)),               # cbr scale
            pl.BlockSpec((c, 1), lambda b: (0, 0)),               # cbr shift
            pl.BlockSpec((p_low, p), lambda b: (0, 0)),           # kron upsample
            pl.BlockSpec((c, c), lambda b: (0, 0)),               # feb_w
            pl.BlockSpec((c, 1), lambda b: (0, 0)),               # feb scale
            pl.BlockSpec((c, 1), lambda b: (0, 0)),               # feb shift
            pl.BlockSpec((2, 18 * c), lambda b: (0, 0)),          # offset weights
            pl.BlockSpec((9, 1, p), lambda b: (0, 0, 0)),         # tap masks
            pl.BlockSpec((1, p), lambda b: (0, 0)),               # ix base
            pl.BlockSpec((1, p), lambda b: (0, 0)),               # iy base
            pl.BlockSpec((c, c), lambda b: (0, 0)),               # ECA tridiag
            pl.BlockSpec((1, c), lambda b: (0, 0)),               # spatial attn weight
            pl.BlockSpec((None, c_fl, p_low), lambda b: (b, 0, 0)),  # fl
            pl.BlockSpec((None, c, p), lambda b: (b, 0, 0)),         # fh
        ],
        out_specs=pl.BlockSpec((None, c, p), lambda b: (b, 0, 0)),
        scratch_shapes=[pltpu.VMEM((2 * c, p + 2 * lpad), f32)],
        compiler_params=pltpu.CompilerParams(
            dimension_semantics=("parallel",)),
    )(params['cbr_w'].astype(f32), cbr_scale, cbr_shift, kron,
      params['feb_w'].astype(f32), feb_scale, feb_shift,
      woff, mask, ix_base, iy_base, tri, wsp,
      fl2, fh2)

    return out.reshape(n, c, hh, wh)                              # NCHW


# --------------------------------- main ---------------------------------------

if __name__ == "__main__":
    # fh is the high-res feature (N, C, 16, 16); fl is lower-res (N, 2C, 8, 8).
    N, HH, WH = 2, 16, 16
    HL, WL = 8, 8
    CBR_IN, FEB_IN, FAA_IN, INTER = 16, 8, 8, 8

    key = jax.random.PRNGKey(0)
    k_fh, k_fl, k_p = jax.random.split(key, 3)
    fh = jax.random.normal(k_fh, (N, FEB_IN, HH, WH), dtype=jnp.float32)
    fl = jax.random.normal(k_fl, (N, CBR_IN, HL, WL), dtype=jnp.float32)
    params = make_params(k_p, CBR_IN, FEB_IN, FAA_IN, INTER)

    out = jax.jit(lambda a, b: sfa_forward(a, b, params))(fh, fl)
    out = jax.block_until_ready(out)
    assert out.shape == (N, FAA_IN, HH, WH)
    assert bool(jnp.all(jnp.isfinite(out)))
    print("KERNEL_OK")
</pallas_src>

<mosaic_0001>
module attributes {stable_mosaic.version = 11 : i64} {
  func.func @_sfa_fused_kernel(%arg0: i32, %arg1: memref<8x16xf32, #tpu.memory_space<vmem>>, %arg2: memref<8x1xf32, #tpu.memory_space<vmem>>, %arg3: memref<8x1xf32, #tpu.memory_space<vmem>>, %arg4: memref<64x256xf32, #tpu.memory_space<vmem>>, %arg5: memref<8x8xf32, #tpu.memory_space<vmem>>, %arg6: memref<8x1xf32, #tpu.memory_space<vmem>>, %arg7: memref<8x1xf32, #tpu.memory_space<vmem>>, %arg8: memref<2x144xf32, #tpu.memory_space<vmem>>, %arg9: memref<9x1x256xf32, #tpu.memory_space<vmem>>, %arg10: memref<1x256xf32, #tpu.memory_space<vmem>>, %arg11: memref<1x256xf32, #tpu.memory_space<vmem>>, %arg12: memref<8x8xf32, #tpu.memory_space<vmem>>, %arg13: memref<1x8xf32, #tpu.memory_space<vmem>>, %arg14: memref<1x16x64xf32, #tpu.memory_space<vmem>>, %arg15: memref<1x8x256xf32, #tpu.memory_space<vmem>>, %arg16: memref<1x8x256xf32, #tpu.memory_space<vmem>>, %arg17: memref<16x512xf32, #tpu.memory_space<vmem>>) attributes {dimension_semantics = [#tpu.dimension_semantics<parallel>], iteration_bounds = array<i64: 2>, scalar_prefetch = 0 : i64, scratch_operands = 1 : i64, tpu.core_type = #tpu.core_type<tc>, window_params = [{pipeline_mode = #tpu.pipeline_mode<synchronous>, transform_indices = @transform_0, window_bounds = array<i64: 8, 16>}, {pipeline_mode = #tpu.pipeline_mode<synchronous>, transform_indices = @transform_1, window_bounds = array<i64: 8, 1>}, {pipeline_mode = #tpu.pipeline_mode<synchronous>, transform_indices = @transform_2, window_bounds = array<i64: 8, 1>}, {pipeline_mode = #tpu.pipeline_mode<synchronous>, transform_indices = @transform_3, window_bounds = array<i64: 64, 256>}, {pipeline_mode = #tpu.pipeline_mode<synchronous>, transform_indices = @transform_4, window_bounds = array<i64: 8, 8>}, {pipeline_mode = #tpu.pipeline_mode<synchronous>, transform_indices = @transform_5, window_bounds = array<i64: 8, 1>}, {pipeline_mode = #tpu.pipeline_mode<synchronous>, transform_indices = @transform_6, window_bounds = array<i64: 8, 1>}, {pipeline_mode = #tpu.pipeline_mode<synchronous>, transform_indices = @transform_7, window_bounds = array<i64: 2, 144>}, {pipeline_mode = #tpu.pipeline_mode<synchronous>, transform_indices = @transform_8, window_bounds = array<i64: 9, 1, 256>}, {pipeline_mode = #tpu.pipeline_mode<synchronous>, transform_indices = @transform_9, window_bounds = array<i64: 1, 256>}, {pipeline_mode = #tpu.pipeline_mode<synchronous>, transform_indices = @transform_10, window_bounds = array<i64: 1, 256>}, {pipeline_mode = #tpu.pipeline_mode<synchronous>, transform_indices = @transform_11, window_bounds = array<i64: 8, 8>}, {pipeline_mode = #tpu.pipeline_mode<synchronous>, transform_indices = @transform_12, window_bounds = array<i64: 1, 8>}, {transform_indices = @transform_13, window_bounds = array<i64: 1, 16, 64>}, {transform_indices = @transform_14, window_bounds = array<i64: 1, 8, 256>}, {transform_indices = @transform_15, window_bounds = array<i64: 1, 8, 256>}]} {
    %c0 = arith.constant 0 : index
    %c0_0 = arith.constant 0 : index
    %0 = vector.load %arg1[%c0, %c0_0] : memref<8x16xf32, #tpu.memory_space<vmem>>, vector<8x16xf32>
    %c0_1 = arith.constant 0 : index
    %c0_2 = arith.constant 0 : index
    %c0_3 = arith.constant 0 : index
    %1 = vector.load %arg14[%c0_1, %c0_2, %c0_3] : memref<1x16x64xf32, #tpu.memory_space<vmem>>, vector<1x16x64xf32>
    %2 = vector.shape_cast %1 : vector<1x16x64xf32> to vector<16x64xf32>
    %cst = arith.constant dense<0.000000e+00> : vector<8x64xf32>
    %3 = tpu.matmul %0, %2, %cst {dimension_numbers = #tpu.dot_dimension_numbers<[1], [0], [0], [1], [0, 0, 1, 1], [], []>} : vector<8x16xf32>, vector<16x64xf32>, vector<8x64xf32> -> vector<8x64xf32>
    %c0_4 = arith.constant 0 : index
    %c0_5 = arith.constant 0 : index
    %4 = vector.load %arg2[%c0_4, %c0_5] : memref<8x1xf32, #tpu.memory_space<vmem>>, vector<8x1xf32>
    %5 = vector.broadcast %4 : vector<8x1xf32> to vector<8x64xf32>
    %6 = arith.mulf %3, %5 : vector<8x64xf32>
    %c0_6 = arith.constant 0 : index
    %c0_7 = arith.constant 0 : index
    %7 = vector.load %arg3[%c0_6, %c0_7] : memref<8x1xf32, #tpu.memory_space<vmem>>, vector<8x1xf32>
    %8 = vector.broadcast %7 : vector<8x1xf32> to vector<8x64xf32>
    %9 = arith.addf %6, %8 : vector<8x64xf32>
    %cst_8 = arith.constant 0.000000e+00 : f32
    %10 = vector.broadcast %cst_8 : f32 to vector<8x64xf32>
    %11 = arith.maximumf %9, %10 : vector<8x64xf32>
    %c0_9 = arith.constant 0 : index
    %c0_10 = arith.constant 0 : index
    %12 = vector.load %arg4[%c0_9, %c0_10] : memref<64x256xf32, #tpu.memory_space<vmem>>, vector<64x256xf32>
    %cst_11 = arith.constant dense<0.000000e+00> : vector<8x256xf32>
    %13 = tpu.matmul %11, %12, %cst_11 {dimension_numbers = #tpu.dot_dimension_numbers<[1], [0], [0], [1], [0, 0, 1, 1], [], []>} : vector<8x64xf32>, vector<64x256xf32>, vector<8x256xf32> -> vector<8x256xf32>
    %c0_12 = arith.constant 0 : index
    %c0_13 = arith.constant 0 : index
    %14 = vector.load %arg5[%c0_12, %c0_13] : memref<8x8xf32, #tpu.memory_space<vmem>>, vector<8x8xf32>
    %c0_14 = arith.constant 0 : index
    %c0_15 = arith.constant 0 : index
    %c0_16 = arith.constant 0 : index
    %15 = vector.load %arg15[%c0_14, %c0_15, %c0_16] : memref<1x8x256xf32, #tpu.memory_space<vmem>>, vector<1x8x256xf32>
    %16 = vector.shape_cast %15 : vector<1x8x256xf32> to vector<8x256xf32>
    %cst_17 = arith.constant dense<0.000000e+00> : vector<8x256xf32>
    %17 = tpu.matmul %14, %16, %cst_17 {dimension_numbers = #tpu.dot_dimension_numbers<[1], [0], [0], [1], [0, 0, 1, 1], [], []>} : vector<8x8xf32>, vector<8x256xf32>, vector<8x256xf32> -> vector<8x256xf32>
    %c0_18 = arith.constant 0 : index
    %c0_19 = arith.constant 0 : index
    %18 = vector.load %arg6[%c0_18, %c0_19] : memref<8x1xf32, #tpu.memory_space<vmem>>, vector<8x1xf32>
    %19 = vector.broadcast %18 : vector<8x1xf32> to vector<8x256xf32>
    %20 = arith.mulf %17, %19 : vector<8x256xf32>
    %c0_20 = arith.constant 0 : index
    %c0_21 = arith.constant 0 : index
    %21 = vector.load %arg7[%c0_20, %c0_21] : memref<8x1xf32, #tpu.memory_space<vmem>>, vector<8x1xf32>
    %22 = vector.broadcast %21 : vector<8x1xf32> to vector<8x256xf32>
    %23 = arith.addf %20, %22 : vector<8x256xf32>
    %cst_22 = arith.constant 0.000000e+00 : f32
    %24 = vector.broadcast %cst_22 : f32 to vector<8x256xf32>
    %25 = arith.maximumf %23, %24 : vector<8x256xf32>
    %cst_23 = arith.constant 0.000000e+00 : f32
    %26 = vector.broadcast %cst_23 : f32 to vector<16x512xf32>
    %c0_24 = arith.constant 0 : index
    %c0_25 = arith.constant 0 : index
    %27 = vector.load %arg17[%c0_24, %c0_25] : memref<16x512xf32, #tpu.memory_space<vmem>>, vector<16x512xf32>
    tpu.vector_store %arg17[%c0_24, %c0_25], %26 {strides = array<i32>} : memref<16x512xf32, #tpu.memory_space<vmem>>, vector<16x512xf32>,
    %c0_26 = arith.constant 0 : index
    %c128 = arith.constant 128 : index
    %28 = vector.load %arg17[%c0_26, %c128] : memref<16x512xf32, #tpu.memory_space<vmem>>, vector<8x256xf32>
    tpu.vector_store %arg17[%c0_26, %c128], %25 {strides = array<i32>} : memref<16x512xf32, #tpu.memory_space<vmem>>, vector<8x256xf32>,
    %c8 = arith.constant 8 : index
    %c128_27 = arith.constant 128 : index
    %29 = vector.load %arg17[%c8, %c128_27] : memref<16x512xf32, #tpu.memory_space<vmem>>, vector<8x256xf32>
    tpu.vector_store %arg17[%c8, %c128_27], %13 {strides = array<i32>} : memref<16x512xf32, #tpu.memory_space<vmem>>, vector<8x256xf32>,
    %c0_28 = arith.constant 0 : index
    %c111 = arith.constant 111 : index
    %30 = vector.load %arg17[%c0_28, %c111] : memref<16x512xf32, #tpu.memory_space<vmem>>, vector<16x256xf32>
    %c0_29 = arith.constant 0 : index
    %c0_30 = arith.constant 0 : index
    %c0_31 = arith.constant 0 : index
    %31 = vector.load %arg9[%c0_29, %c0_30, %c0_31] : memref<9x1x256xf32, #tpu.memory_space<vmem>>, vector<1x1x256xf32>
    %32 = vector.shape_cast %31 : vector<1x1x256xf32> to vector<1x256xf32>
    %33 = vector.broadcast %32 : vector<1x256xf32> to vector<16x256xf32>
    %34 = arith.mulf %30, %33 : vector<16x256xf32>
    %c0_32 = arith.constant 0 : index
    %c112 = arith.constant 112 : index
    %35 = vector.load %arg17[%c0_32, %c112] : memref<16x512xf32, #tpu.memory_space<vmem>>, vector<16x256xf32>
    %c1 = arith.constant 1 : index
    %c0_33 = arith.constant 0 : index
    %c0_34 = arith.constant 0 : index
    %36 = vector.load %arg9[%c1, %c0_33, %c0_34] : memref<9x1x256xf32, #tpu.memory_space<vmem>>, vector<1x1x256xf32>
    %37 = vector.shape_cast %36 : vector<1x1x256xf32> to vector<1x256xf32>
    %38 = vector.broadcast %37 : vector<1x256xf32> to vector<16x256xf32>
    %39 = arith.mulf %35, %38 : vector<16x256xf32>
    %c0_35 = arith.constant 0 : index
    %c113 = arith.constant 113 : index
    %40 = vector.load %arg17[%c0_35, %c113] : memref<16x512xf32, #tpu.memory_space<vmem>>, vector<16x256xf32>
    %c2 = arith.constant 2 : index
    %c0_36 = arith.constant 0 : index
    %c0_37 = arith.constant 0 : index
    %41 = vector.load %arg9[%c2, %c0_36, %c0_37] : memref<9x1x256xf32, #tpu.memory_space<vmem>>, vector<1x1x256xf32>
    %42 = vector.shape_cast %41 : vector<1x1x256xf32> to vector<1x256xf32>
    %43 = vector.broadcast %42 : vector<1x256xf32> to vector<16x256xf32>
    %44 = arith.mulf %40, %43 : vector<16x256xf32>
    %c0_38 = arith.constant 0 : index
    %c127 = arith.constant 127 : index
    %45 = vector.load %arg17[%c0_38, %c127] : memref<16x512xf32, #tpu.memory_space<vmem>>, vector<16x256xf32>
    %c3 = arith.constant 3 : index
    %c0_39 = arith.constant 0 : index
    %c0_40 = arith.constant 0 : index
    %46 = vector.load %arg9[%c3, %c0_39, %c0_40] : memref<9x1x256xf32, #tpu.memory_space<vmem>>, vector<1x1x256xf32>
    %47 = vector.shape_cast %46 : vector<1x1x256xf32> to vector<1x256xf32>
    %48 = vector.broadcast %47 : vector<1x256xf32> to vector<16x256xf32>
    %49 = arith.mulf %45, %48 : vector<16x256xf32>
    %c0_41 = arith.constant 0 : index
    %c128_42 = arith.constant 128 : index
    %50 = vector.load %arg17[%c0_41, %c128_42] : memref<16x512xf32, #tpu.memory_space<vmem>>, vector<16x256xf32>
    %c4 = arith.constant 4 : index
    %c0_43 = arith.constant 0 : index
    %c0_44 = arith.constant 0 : index
    %51 = vector.load %arg9[%c4, %c0_43, %c0_44] : memref<9x1x256xf32, #tpu.memory_space<vmem>>, vector<1x1x256xf32>
    %52 = vector.shape_cast %51 : vector<1x1x256xf32> to vector<1x256xf32>
    %53 = vector.broadcast %52 : vector<1x256xf32> to vector<16x256xf32>
    %54 = arith.mulf %50, %53 : vector<16x256xf32>
    %c0_45 = arith.constant 0 : index
    %c129 = arith.constant 129 : index
    %55 = vector.load %arg17[%c0_45, %c129] : memref<16x512xf32, #tpu.memory_space<vmem>>, vector<16x256xf32>
    %c5 = arith.constant 5 : index
    %c0_46 = arith.constant 0 : index
    %c0_47 = arith.constant 0 : index
    %56 = vector.load %arg9[%c5, %c0_46, %c0_47] : memref<9x1x256xf32, #tpu.memory_space<vmem>>, vector<1x1x256xf32>
    %57 = vector.shape_cast %56 : vector<1x1x256xf32> to vector<1x256xf32>
    %58 = vector.broadcast %57 : vector<1x256xf32> to vector<16x256xf32>
    %59 = arith.mulf %55, %58 : vector<16x256xf32>
    %c0_48 = arith.constant 0 : index
    %c143 = arith.constant 143 : index
    %60 = vector.load %arg17[%c0_48, %c143] : memref<16x512xf32, #tpu.memory_space<vmem>>, vector<16x256xf32>
    %c6 = arith.constant 6 : index
    %c0_49 = arith.constant 0 : index
    %c0_50 = arith.constant 0 : index
    %61 = vector.load %arg9[%c6, %c0_49, %c0_50] : memref<9x1x256xf32, #tpu.memory_space<vmem>>, vector<1x1x256xf32>
    %62 = vector.shape_cast %61 : vector<1x1x256xf32> to vector<1x256xf32>
    %63 = vector.broadcast %62 : vector<1x256xf32> to vector<16x256xf32>
    %64 = arith.mulf %60, %63 : vector<16x256xf32>
    %c0_51 = arith.constant 0 : index
    %c144 = arith.constant 144 : index
    %65 = vector.load %arg17[%c0_51, %c144] : memref<16x512xf32, #tpu.memory_space<vmem>>, vector<16x256xf32>
    %c7 = arith.constant 7 : index
    %c0_52 = arith.constant 0 : index
    %c0_53 = arith.constant 0 : index
    %66 = vector.load %arg9[%c7, %c0_52, %c0_53] : memref<9x1x256xf32, #tpu.memory_space<vmem>>, vector<1x1x256xf32>
    %67 = vector.shape_cast %66 : vector<1x1x256xf32> to vector<1x256xf32>
    %68 = vector.broadcast %67 : vector<1x256xf32> to vector<16x256xf32>
    %69 = arith.mulf %65, %68 : vector<16x256xf32>
    %c0_54 = arith.constant 0 : index
    %c145 = arith.constant 145 : index
    %70 = vector.load %arg17[%c0_54, %c145] : memref<16x512xf32, #tpu.memory_space<vmem>>, vector<16x256xf32>
    %c8_55 = arith.constant 8 : index
    %c0_56 = arith.constant 0 : index
    %c0_57 = arith.constant 0 : index
    %71 = vector.load %arg9[%c8_55, %c0_56, %c0_57] : memref<9x1x256xf32, #tpu.memory_space<vmem>>, vector<1x1x256xf32>
    %72 = vector.shape_cast %71 : vector<1x1x256xf32> to vector<1x256xf32>
    %73 = vector.broadcast %72 : vector<1x256xf32> to vector<16x256xf32>
    %74 = arith.mulf %70, %73 : vector<16x256xf32>
    %75 = tpu.concatenate %34, %39, %44, %49, %54, %59, %64, %69, %74 in 0 : vector<16x256xf32>, vector<16x256xf32>, vector<16x256xf32>, vector<16x256xf32>, vector<16x256xf32>, vector<16x256xf32>, vector<16x256xf32>, vector<16x256xf32>, vector<16x256xf32> -> vector<144x256xf32>
    %c0_58 = arith.constant 0 : index
    %c0_59 = arith.constant 0 : index
    %76 = vector.load %arg8[%c0_58, %c0_59] : memref<2x144xf32, #tpu.memory_space<vmem>>, vector<2x144xf32>
    %cst_60 = arith.constant dense<0.000000e+00> : vector<2x256xf32>
    %77 = tpu.matmul %76, %75, %cst_60 {dimension_numbers = #tpu.dot_dimension_numbers<[1], [0], [0], [1], [0, 0, 1, 1], [], []>} : vector<2x144xf32>, vector<144x256xf32>, vector<2x256xf32> -> vector<2x256xf32>
    %c0_61 = arith.constant 0 : index
    %c0_62 = arith.constant 0 : index
    %78 = vector.load %arg10[%c0_61, %c0_62] : memref<1x256xf32, #tpu.memory_space<vmem>>, vector<1x256xf32>
    %79 = vector.extract_strided_slice %77 {offsets = [0, 0], sizes = [1, 256], strides = [1, 1]} : vector<2x256xf32> to vector<1x256xf32>
    %cst_63 = arith.constant 4.687500e-01 : f32
    %80 = vector.broadcast %cst_63 : f32 to vector<1x256xf32>
    %81 = arith.mulf %79, %80 : vector<1x256xf32>
    %82 = arith.addf %78, %81 : vector<1x256xf32>
    %c0_64 = arith.constant 0 : index
    %c0_65 = arith.constant 0 : index
    %83 = vector.load %arg11[%c0_64, %c0_65] : memref<1x256xf32, #tpu.memory_space<vmem>>, vector<1x256xf32>
    %84 = vector.extract_strided_slice %77 {offsets = [1, 0], sizes = [1, 256], strides = [1, 1]} : vector<2x256xf32> to vector<1x256xf32>
    %cst_66 = arith.constant 4.687500e-01 : f32
    %85 = vector.broadcast %cst_66 : f32 to vector<1x256xf32>
    %86 = arith.mulf %84, %85 : vector<1x256xf32>
    %87 = arith.addf %83, %86 : vector<1x256xf32>
    %88 = math.floor %82 : vector<1x256xf32>
    %89 = math.floor %87 : vector<1x256xf32>
    %90 = arith.subf %82, %88 : vector<1x256xf32>
    %91 = arith.subf %87, %89 : vector<1x256xf32>
    %92 = tpu.iota {dimensions = array<i32: 0>} : vector<256x256xi32>
    %cst_67 = arith.constant 0.000000e+00 : f32
    %93 = vector.broadcast %cst_67 : f32 to vector<256x256xf32>
    %cst_68 = arith.constant 1.000000e+00 : f32
    %94 = vector.broadcast %cst_68 : f32 to vector<1x256xf32>
    %95 = arith.subf %94, %90 : vector<1x256xf32>
    %cst_69 = arith.constant 1.000000e+00 : f32
    %96 = vector.broadcast %cst_69 : f32 to vector<1x256xf32>
    %97 = arith.subf %96, %91 : vector<1x256xf32>
    %98 = arith.mulf %95, %97 : vector<1x256xf32>
    %cst_70 = arith.constant 1.000000e+00 : f32
    %99 = vector.broadcast %cst_70 : f32 to vector<1x256xf32>
    %100 = arith.subf %99, %91 : vector<1x256xf32>
    %101 = arith.mulf %90, %100 : vector<1x256xf32>
    %cst_71 = arith.constant 1.000000e+00 : f32
    %102 = vector.broadcast %cst_71 : f32 to vector<1x256xf32>
    %103 = arith.subf %102, %90 : vector<1x256xf32>
    %104 = arith.mulf %103, %91 : vector<1x256xf32>
    %105 = arith.mulf %90, %91 : vector<1x256xf32>
    %cst_72 = arith.constant 0.000000e+00 : f32
    %106 = vector.broadcast %cst_72 : f32 to vector<1x256xf32>
    %107 = arith.addf %88, %106 : vector<1x256xf32>
    %cst_73 = arith.constant 0.000000e+00 : f32
    %108 = vector.broadcast %cst_73 : f32 to vector<1x256xf32>
    %109 = arith.addf %89, %108 : vector<1x256xf32>
    %cst_74 = arith.constant 0.000000e+00 : f32
    %110 = vector.broadcast %cst_74 : f32 to vector<1x256xf32>
    %111 = arith.cmpf oge, %107, %110 : vector<1x256xf32>
    %cst_75 = arith.constant 1.500000e+01 : f32
    %112 = vector.broadcast %cst_75 : f32 to vector<1x256xf32>
    %113 = arith.cmpf ole, %107, %112 : vector<1x256xf32>
    %114 = arith.andi %111, %113 : vector<1x256xi1>
    %cst_76 = arith.constant 0.000000e+00 : f32
    %115 = vector.broadcast %cst_76 : f32 to vector<1x256xf32>
    %116 = arith.cmpf oge, %109, %115 : vector<1x256xf32>
    %117 = arith.andi %114, %116 : vector<1x256xi1>
    %cst_77 = arith.constant 1.500000e+01 : f32
    %118 = vector.broadcast %cst_77 : f32 to vector<1x256xf32>
    %119 = arith.cmpf ole, %109, %118 : vector<1x256xf32>
    %120 = arith.andi %117, %119 : vector<1x256xi1>
    %121 = arith.extui %120 : vector<1x256xi1> to vector<1x256xi32>
    %122 = arith.sitofp %121 : vector<1x256xi32> to vector<1x256xf32>
    %123 = arith.fptosi %109 : vector<1x256xf32> to vector<1x256xi32>
    %c16_i32 = arith.constant 16 : i32
    %124 = vector.broadcast %c16_i32 : i32 to vector<1x256xi32>
    %125 = arith.muli %123, %124 : vector<1x256xi32>
    %126 = arith.fptosi %107 : vector<1x256xf32> to vector<1x256xi32>
    %127 = arith.addi %125, %126 : vector<1x256xi32>
    %128 = vector.broadcast %127 : vector<1x256xi32> to vector<256x256xi32>
    %129 = arith.cmpi eq, %92, %128 : vector<256x256xi32>
    %130 = arith.extui %129 : vector<256x256xi1> to vector<256x256xi32>
    %131 = arith.sitofp %130 : vector<256x256xi32> to vector<256x256xf32>
    %132 = arith.mulf %98, %122 : vector<1x256xf32>
    %133 = vector.broadcast %132 : vector<1x256xf32> to vector<256x256xf32>
    %134 = arith.mulf %131, %133 : vector<256x256xf32>
    %135 = arith.addf %93, %134 : vector<256x256xf32>
    %cst_78 = arith.constant 1.000000e+00 : f32
    %136 = vector.broadcast %cst_78 : f32 to vector<1x256xf32>
    %137 = arith.addf %88, %136 : vector<1x256xf32>
    %cst_79 = arith.constant 0.000000e+00 : f32
    %138 = vector.broadcast %cst_79 : f32 to vector<1x256xf32>
    %139 = arith.addf %89, %138 : vector<1x256xf32>
    %cst_80 = arith.constant 0.000000e+00 : f32
    %140 = vector.broadcast %cst_80 : f32 to vector<1x256xf32>
    %141 = arith.cmpf oge, %137, %140 : vector<1x256xf32>
    %cst_81 = arith.constant 1.500000e+01 : f32
    %142 = vector.broadcast %cst_81 : f32 to vector<1x256xf32>
    %143 = arith.cmpf ole, %137, %142 : vector<1x256xf32>
    %144 = arith.andi %141, %143 : vector<1x256xi1>
    %cst_82 = arith.constant 0.000000e+00 : f32
    %145 = vector.broadcast %cst_82 : f32 to vector<1x256xf32>
    %146 = arith.cmpf oge, %139, %145 : vector<1x256xf32>
    %147 = arith.andi %144, %146 : vector<1x256xi1>
    %cst_83 = arith.constant 1.500000e+01 : f32
    %148 = vector.broadcast %cst_83 : f32 to vector<1x256xf32>
    %149 = arith.cmpf ole, %139, %148 : vector<1x256xf32>
    %150 = arith.andi %147, %149 : vector<1x256xi1>
    %151 = arith.extui %150 : vector<1x256xi1> to vector<1x256xi32>
    %152 = arith.sitofp %151 : vector<1x256xi32> to vector<1x256xf32>
    %153 = arith.fptosi %139 : vector<1x256xf32> to vector<1x256xi32>
    %c16_i32_84 = arith.constant 16 : i32
    %154 = vector.broadcast %c16_i32_84 : i32 to vector<1x256xi32>
    %155 = arith.muli %153, %154 : vector<1x256xi32>
    %156 = arith.fptosi %137 : vector<1x256xf32> to vector<1x256xi32>
    %157 = arith.addi %155, %156 : vector<1x256xi32>
    %158 = vector.broadcast %157 : vector<1x256xi32> to vector<256x256xi32>
    %159 = arith.cmpi eq, %92, %158 : vector<256x256xi32>
    %160 = arith.extui %159 : vector<256x256xi1> to vector<256x256xi32>
    %161 = arith.sitofp %160 : vector<256x256xi32> to vector<256x256xf32>
    %162 = arith.mulf %101, %152 : vector<1x256xf32>
    %163 = vector.broadcast %162 : vector<1x256xf32> to vector<256x256xf32>
    %164 = arith.mulf %161, %163 : vector<256x256xf32>
    %165 = arith.addf %135, %164 : vector<256x256xf32>
    %cst_85 = arith.constant 0.000000e+00 : f32
    %166 = vector.broadcast %cst_85 : f32 to vector<1x256xf32>
    %167 = arith.addf %88, %166 : vector<1x256xf32>
    %cst_86 = arith.constant 1.000000e+00 : f32
    %168 = vector.broadcast %cst_86 : f32 to vector<1x256xf32>
    %169 = arith.addf %89, %168 : vector<1x256xf32>
    %cst_87 = arith.constant 0.000000e+00 : f32
    %170 = vector.broadcast %cst_87 : f32 to vector<1x256xf32>
    %171 = arith.cmpf oge, %167, %170 : vector<1x256xf32>
    %cst_88 = arith.constant 1.500000e+01 : f32
    %172 = vector.broadcast %cst_88 : f32 to vector<1x256xf32>
    %173 = arith.cmpf ole, %167, %172 : vector<1x256xf32>
    %174 = arith.andi %171, %173 : vector<1x256xi1>
    %cst_89 = arith.constant 0.000000e+00 : f32
    %175 = vector.broadcast %cst_89 : f32 to vector<1x256xf32>
    %176 = arith.cmpf oge, %169, %175 : vector<1x256xf32>
    %177 = arith.andi %174, %176 : vector<1x256xi1>
    %cst_90 = arith.constant 1.500000e+01 : f32
    %178 = vector.broadcast %cst_90 : f32 to vector<1x256xf32>
    %179 = arith.cmpf ole, %169, %178 : vector<1x256xf32>
    %180 = arith.andi %177, %179 : vector<1x256xi1>
    %181 = arith.extui %180 : vector<1x256xi1> to vector<1x256xi32>
    %182 = arith.sitofp %181 : vector<1x256xi32> to vector<1x256xf32>
    %183 = arith.fptosi %169 : vector<1x256xf32> to vector<1x256xi32>
    %c16_i32_91 = arith.constant 16 : i32
    %184 = vector.broadcast %c16_i32_91 : i32 to vector<1x256xi32>
    %185 = arith.muli %183, %184 : vector<1x256xi32>
    %186 = arith.fptosi %167 : vector<1x256xf32> to vector<1x256xi32>
    %187 = arith.addi %185, %186 : vector<1x256xi32>
    %188 = vector.broadcast %187 : vector<1x256xi32> to vector<256x256xi32>
    %189 = arith.cmpi eq, %92, %188 : vector<256x256xi32>
    %190 = arith.extui %189 : vector<256x256xi1> to vector<256x256xi32>
    %191 = arith.sitofp %190 : vector<256x256xi32> to vector<256x256xf32>
    %192 = arith.mulf %104, %182 : vector<1x256xf32>
    %193 = vector.broadcast %192 : vector<1x256xf32> to vector<256x256xf32>
    %194 = arith.mulf %191, %193 : vector<256x256xf32>
    %195 = arith.addf %165, %194 : vector<256x256xf32>
    %cst_92 = arith.constant 1.000000e+00 : f32
    %196 = vector.broadcast %cst_92 : f32 to vector<1x256xf32>
    %197 = arith.addf %88, %196 : vector<1x256xf32>
    %cst_93 = arith.constant 1.000000e+00 : f32
    %198 = vector.broadcast %cst_93 : f32 to vector<1x256xf32>
    %199 = arith.addf %89, %198 : vector<1x256xf32>
    %cst_94 = arith.constant 0.000000e+00 : f32
    %200 = vector.broadcast %cst_94 : f32 to vector<1x256xf32>
    %201 = arith.cmpf oge, %197, %200 : vector<1x256xf32>
    %cst_95 = arith.constant 1.500000e+01 : f32
    %202 = vector.broadcast %cst_95 : f32 to vector<1x256xf32>
    %203 = arith.cmpf ole, %197, %202 : vector<1x256xf32>
    %204 = arith.andi %201, %203 : vector<1x256xi1>
    %cst_96 = arith.constant 0.000000e+00 : f32
    %205 = vector.broadcast %cst_96 : f32 to vector<1x256xf32>
    %206 = arith.cmpf oge, %199, %205 : vector<1x256xf32>
    %207 = arith.andi %204, %206 : vector<1x256xi1>
    %cst_97 = arith.constant 1.500000e+01 : f32
    %208 = vector.broadcast %cst_97 : f32 to vector<1x256xf32>
    %209 = arith.cmpf ole, %199, %208 : vector<1x256xf32>
    %210 = arith.andi %207, %209 : vector<1x256xi1>
    %211 = arith.extui %210 : vector<1x256xi1> to vector<1x256xi32>
    %212 = arith.sitofp %211 : vector<1x256xi32> to vector<1x256xf32>
    %213 = arith.fptosi %199 : vector<1x256xf32> to vector<1x256xi32>
    %c16_i32_98 = arith.constant 16 : i32
    %214 = vector.broadcast %c16_i32_98 : i32 to vector<1x256xi32>
    %215 = arith.muli %213, %214 : vector<1x256xi32>
    %216 = arith.fptosi %197 : vector<1x256xf32> to vector<1x256xi32>
    %217 = arith.addi %215, %216 : vector<1x256xi32>
    %218 = vector.broadcast %217 : vector<1x256xi32> to vector<256x256xi32>
    %219 = arith.cmpi eq, %92, %218 : vector<256x256xi32>
    %220 = arith.extui %219 : vector<256x256xi1> to vector<256x256xi32>
    %221 = arith.sitofp %220 : vector<256x256xi32> to vector<256x256xf32>
    %222 = arith.mulf %105, %212 : vector<1x256xf32>
    %223 = vector.broadcast %222 : vector<1x256xf32> to vector<256x256xf32>
    %224 = arith.mulf %221, %223 : vector<256x256xf32>
    %225 = arith.addf %195, %224 : vector<256x256xf32>
    %cst_99 = arith.constant dense<0.000000e+00> : vector<8x256xf32>
    %226 = tpu.matmul %13, %225, %cst_99 {dimension_numbers = #tpu.dot_dimension_numbers<[1], [0], [0], [1], [0, 0, 1, 1], [], []>} : vector<8x256xf32>, vector<256x256xf32>, vector<8x256xf32> -> vector<8x256xf32>
    %227 = arith.addf %25, %226 : vector<8x256xf32>
    %cst_100 = arith.constant dense<0.000000e+00> : vector<8xf32>
    %228 = vector.multi_reduction <add>, %227, %cst_100 [1] : vector<8x256xf32> to vector<8xf32>
    %229 = vector.shape_cast %228 : vector<8xf32> to vector<8x1xf32>
    %cst_101 = arith.constant 3.906250e-03 : f32
    %230 = vector.broadcast %cst_101 : f32 to vector<8x1xf32>
    %231 = arith.mulf %229, %230 : vector<8x1xf32>
    %c0_102 = arith.constant 0 : index
    %c0_103 = arith.constant 0 : index
    %232 = vector.load %arg12[%c0_102, %c0_103] : memref<8x8xf32, #tpu.memory_space<vmem>>, vector<8x8xf32>
    %cst_104 = arith.constant dense<0.000000e+00> : vector<8x1xf32>
    %233 = tpu.matmul %232, %231, %cst_104 {dimension_numbers = #tpu.dot_dimension_numbers<[1], [0], [0], [1], [0, 0, 1, 1], [], []>} : vector<8x8xf32>, vector<8x1xf32>, vector<8x1xf32> -> vector<8x1xf32>
    %234 = arith.negf %233 : vector<8x1xf32>
    %235 = math.exp %234 : vector<8x1xf32>
    %cst_105 = arith.constant 1.000000e+00 : f32
    %236 = vector.broadcast %cst_105 : f32 to vector<8x1xf32>
    %237 = arith.addf %236, %235 : vector<8x1xf32>
    %238 = arith.divf %236, %237 : vector<8x1xf32>
    %c0_106 = arith.constant 0 : index
    %c0_107 = arith.constant 0 : index
    %239 = vector.load %arg13[%c0_106, %c0_107] : memref<1x8xf32, #tpu.memory_space<vmem>>, vector<1x8xf32>
    %cst_108 = arith.constant dense<0.000000e+00> : vector<1x256xf32>
    %240 = tpu.matmul %239, %227, %cst_108 {dimension_numbers = #tpu.dot_dimension_numbers<[1], [0], [0], [1], [0, 0, 1, 1], [], []>} : vector<1x8xf32>, vector<8x256xf32>, vector<1x256xf32> -> vector<1x256xf32>
    %241 = arith.negf %240 : vector<1x256xf32>
    %242 = math.exp %241 : vector<1x256xf32>
    %cst_109 = arith.constant 1.000000e+00 : f32
    %243 = vector.broadcast %cst_109 : f32 to vector<1x256xf32>
    %244 = arith.addf %243, %242 : vector<1x256xf32>
    %245 = arith.divf %243, %244 : vector<1x256xf32>
    %246 = vector.broadcast %245 : vector<1x256xf32> to vector<8x256xf32>
    %247 = arith.mulf %227, %246 : vector<8x256xf32>
    %248 = vector.broadcast %238 : vector<8x1xf32> to vector<8x256xf32>
    %249 = arith.mulf %227, %248 : vector<8x256xf32>
    %250 = arith.addf %247, %249 : vector<8x256xf32>
    %c0_110 = arith.constant 0 : index
    %c0_111 = arith.constant 0 : index
    %c0_112 = arith.constant 0 : index
    %251 = vector.load %arg16[%c0_110, %c0_111, %c0_112] : memref<1x8x256xf32, #tpu.memory_space<vmem>>, vector<1x8x256xf32>
    %252 = vector.shape_cast %251 : vector<1x8x256xf32> to vector<8x256xf32>
    %253 = vector.shape_cast %250 : vector<8x256xf32> to vector<1x8x256xf32>
    tpu.vector_store %arg16[%c0_110, %c0_111, %c0_112], %253 {strides = array<i32>} : memref<1x8x256xf32, #tpu.memory_space<vmem>>, vector<1x8x256xf32>,
    return
  }
  func.func @transform_0(%arg0: i32) -> (i32, i32) {
    %c0_i32 = arith.constant 0 : i32
    %c0_i32_0 = arith.constant 0 : i32
    %c0_i32_1 = arith.constant 0 : i32
    return %c0_i32, %c0_i32_0 : i32, i32
  }
  func.func @transform_1(%arg0: i32) -> (i32, i32) {
    %c0_i32 = arith.constant 0 : i32
    %c0_i32_0 = arith.constant 0 : i32
    %c0_i32_1 = arith.constant 0 : i32
    return %c0_i32, %c0_i32_0 : i32, i32
  }
  func.func @transform_2(%arg0: i32) -> (i32, i32) {
    %c0_i32 = arith.constant 0 : i32
    %c0_i32_0 = arith.constant 0 : i32
    %c0_i32_1 = arith.constant 0 : i32
    return %c0_i32, %c0_i32_0 : i32, i32
  }
  func.func @transform_3(%arg0: i32) -> (i32, i32) {
    %c0_i32 = arith.constant 0 : i32
    %c0_i32_0 = arith.constant 0 : i32
    %c0_i32_1 = arith.constant 0 : i32
    return %c0_i32, %c0_i32_0 : i32, i32
  }
  func.func @transform_4(%arg0: i32) -> (i32, i32) {
    %c0_i32 = arith.constant 0 : i32
    %c0_i32_0 = arith.constant 0 : i32
    %c0_i32_1 = arith.constant 0 : i32
    return %c0_i32, %c0_i32_0 : i32, i32
  }
  func.func @transform_5(%arg0: i32) -> (i32, i32) {
    %c0_i32 = arith.constant 0 : i32
    %c0_i32_0 = arith.constant 0 : i32
    %c0_i32_1 = arith.constant 0 : i32
    return %c0_i32, %c0_i32_0 : i32, i32
  }
  func.func @transform_6(%arg0: i32) -> (i32, i32) {
    %c0_i32 = arith.constant 0 : i32
    %c0_i32_0 = arith.constant 0 : i32
    %c0_i32_1 = arith.constant 0 : i32
    return %c0_i32, %c0_i32_0 : i32, i32
  }
  func.func @transform_7(%arg0: i32) -> (i32, i32) {
    %c0_i32 = arith.constant 0 : i32
    %c0_i32_0 = arith.constant 0 : i32
    %c0_i32_1 = arith.constant 0 : i32
    return %c0_i32, %c0_i32_0 : i32, i32
  }
  func.func @transform_8(%arg0: i32) -> (i32, i32, i32) {
    %c0_i32 = arith.constant 0 : i32
    %c0_i32_0 = arith.constant 0 : i32
    %c0_i32_1 = arith.constant 0 : i32
    %c0_i32_2 = arith.constant 0 : i32
    return %c0_i32, %c0_i32_0, %c0_i32_1 : i32, i32, i32
  }
  func.func @transform_9(%arg0: i32) -> (i32, i32) {
    %c0_i32 = arith.constant 0 : i32
    %c0_i32_0 = arith.constant 0 : i32
    %c0_i32_1 = arith.constant 0 : i32
    return %c0_i32, %c0_i32_0 : i32, i32
  }
  func.func @transform_10(%arg0: i32) -> (i32, i32) {
    %c0_i32 = arith.constant 0 : i32
    %c0_i32_0 = arith.constant 0 : i32
    %c0_i32_1 = arith.constant 0 : i32
    return %c0_i32, %c0_i32_0 : i32, i32
  }
  func.func @transform_11(%arg0: i32) -> (i32, i32) {
    %c0_i32 = arith.constant 0 : i32
    %c0_i32_0 = arith.constant 0 : i32
    %c0_i32_1 = arith.constant 0 : i32
    return %c0_i32, %c0_i32_0 : i32, i32
  }
  func.func @transform_12(%arg0: i32) -> (i32, i32) {
    %c0_i32 = arith.constant 0 : i32
    %c0_i32_0 = arith.constant 0 : i32
    %c0_i32_1 = arith.constant 0 : i32
    return %c0_i32, %c0_i32_0 : i32, i32
  }
  func.func @transform_13(%arg0: i32) -> (i32, i32, i32) {
    %c0_i32 = arith.constant 0 : i32
    %c0_i32_0 = arith.constant 0 : i32
    %c0_i32_1 = arith.constant 0 : i32
    return %arg0, %c0_i32, %c0_i32_0 : i32, i32, i32
  }
  func.func @transform_14(%arg0: i32) -> (i32, i32, i32) {
    %c0_i32 = arith.constant 0 : i32
    %c0_i32_0 = arith.constant 0 : i32
    %c0_i32_1 = arith.constant 0 : i32
    return %arg0, %c0_i32, %c0_i32_0 : i32, i32, i32
  }
  func.func @transform_15(%arg0: i32) -> (i32, i32, i32) {
    %c0_i32 = arith.constant 0 : i32
    %c0_i32_0 = arith.constant 0 : i32
    %c0_i32_1 = arith.constant 0 : i32
    return %arg0, %c0_i32, %c0_i32_0 : i32, i32, i32
  }
}

</mosaic_0001>

<llo_original>
// kernel: _lambda_.1
$region0: #{_lambda_.1}
  #allocation0 [shape = 'u32[]', space=smem, size = 0x4, offset = 0x4, fixed_abs, tag = 'smem constant byte address 0x4 - core index']
  #allocation1 [shape = 'u32[144,128]{1,0:T(1,128)}', space=vmem, size = 0x12000, scoped, tag = 'internal scratch']
  #allocation2 [shape = 'f32[16,512]{1,0:T(8,128)}', space=vmem, size = 0x8000, scoped, tag = 'scratch operand']
  %s0 = inlined_call_operand.vmem [shape: f32[8,16], index: 0, kind: input, shape index: {}]
  %s1 = inlined_call_operand.vmem [shape: f32[8,1], index: 1, kind: input, shape index: {}]
  %s2 = inlined_call_operand.vmem [shape: f32[8,1], index: 2, kind: input, shape index: {}]
  %s3 = inlined_call_operand.vmem [shape: f32[64,256], index: 3, kind: input, shape index: {}]
  %s4 = inlined_call_operand.vmem [shape: f32[8,8], index: 4, kind: input, shape index: {}]
  %s5 = inlined_call_operand.vmem [shape: f32[8,1], index: 5, kind: input, shape index: {}]
  %s6 = inlined_call_operand.vmem [shape: f32[8,1], index: 6, kind: input, shape index: {}]
  %s7 = inlined_call_operand.vmem [shape: f32[2,144], index: 7, kind: input, shape index: {}]
  %s8 = inlined_call_operand.vmem [shape: f32[9,1,256], index: 8, kind: input, shape index: {}]
  %s9 = inlined_call_operand.vmem [shape: f32[1,256], index: 9, kind: input, shape index: {}]
  %s10 = inlined_call_operand.vmem [shape: f32[1,256], index: 10, kind: input, shape index: {}]
  %s11 = inlined_call_operand.vmem [shape: f32[8,8], index: 11, kind: input, shape index: {}]
  %s12 = inlined_call_operand.vmem [shape: f32[1,8], index: 12, kind: input, shape index: {}]
  %s13 = inlined_call_operand.vmem [shape: f32[2,16,64], index: 13, kind: input, shape index: {}]
  %s14 = inlined_call_operand.vmem [shape: f32[2,8,256], index: 14, kind: input, shape index: {}]
  %s15 = inlined_call_operand.vmem [shape: f32[2,8,256], index: 15, kind: output, shape index: {}]
  %s16 = sld [smem:[#allocation0]]
  $region93: #{_lambda_.1} parent=0
    _
  %s18 = ssub.s32 1, %s16
  %s19 = scalar_select 0, %s18, %s16
  loop: start=0, step=1, limit=4
  $region2: #{_lambda_.1} parent=0 // loop_pre_header
    _
  $region3: #{_lambda_.1} parent=0 // loop_header
    %s21 = sphi 0, %s25
    %p22 = scmp.ge.s32.totalorder %s21, 4
    %s29 = sphi 0, %s29
    %s31 = sphi 0, %s29
    %s32 = sphi 0, %s31
    %s46 = sphi 0, %s32
    %s50 = sphi 0, %s50
    %s52 = sphi 0, %s50
    %s53 = sphi 0, %s52
    %s67 = sphi 0, %s53
    %s71 = sphi 0, %s71
    %s73 = sphi 0, %s71
    %s74 = sphi 0, %s73
    %s88 = sphi 0, %s74
    %s92 = sphi 0, %s92
    %s94 = sphi 0, %s92
    %s95 = sphi 0, %s94
    %s109 = sphi 0, %s95
    %s113 = sphi 0, %s113
    %s115 = sphi 0, %s113
    %s116 = sphi 0, %s115
    %s130 = sphi 0, %s116
    %s134 = sphi 0, %s134
    %s136 = sphi 0, %s134
    %s137 = sphi 0, %s136
    %s151 = sphi 0, %s137
    %s155 = sphi 0, %s155
    %s157 = sphi 0, %s155
    %s158 = sphi 0, %s157
    %s172 = sphi 0, %s158
    %s176 = sphi 0, %s176
    %s178 = sphi 0, %s176
    %s179 = sphi 0, %s178
    %s193 = sphi 0, %s179
    %s197 = sphi 0, %s197
    %s199 = sphi 0, %s197
    %s200 = sphi 0, %s199
    %s214 = sphi 0, %s200
    %s218 = sphi 0, %s218
    %s220 = sphi 0, %s218
    %s221 = sphi 0, %s220
    %s235 = sphi 0, %s221
    %s239 = sphi 0, %s239
    %s241 = sphi 0, %s239
    %s242 = sphi 0, %s241
    %s256 = sphi 0, %s242
    %s260 = sphi 0, %s260
    %s262 = sphi 0, %s260
    %s263 = sphi 0, %s262
    %s277 = sphi 0, %s263
    %s281 = sphi 0, %s281
    %s283 = sphi 0, %s281
    %s284 = sphi 0, %s283
    %s298 = sphi 0, %s284
    %s304 = sphi 0, %s306
    %s307 = sphi 0, %s304
    %s308 = sphi 0, %s307
    %s324 = sphi 0, %s308
    %s330 = sphi 0, %s332
    %s333 = sphi 0, %s330
    %s334 = sphi 0, %s333
    %s350 = sphi 0, %s334
    %s356 = sphi 0, %s358
    %s359 = sphi 0, %s356
    %s360 = sphi 0, %s359
    %s376 = sphi 0, %s360
  $region4: #{_lambda_.1} parent=0 // loop_header_branch
    %24 = sbr.rel (%p22) target = $region8
  $region5: #{_lambda_.1} parent=0 // loop_body
    %s26 = ssub.s32 %s21, 1
    %s27 = ssub.s32 %s21, 2
    %s28 = sadd.s32 %s21, 1
    %s30 = sadd.s32 %s29, 1
    %p33 = scmp.eq.s32.totalorder %s21, 1
    %p34 = scmp.ne.s32.totalorder %s29, %s31
    %p35 = scmp.eq.s32.totalorder %s21, 0
    %p36 = por %p34, %p35
    %p37 = scmp.ne.s32.totalorder %s29, %s31
    %p38 = scmp.eq.s32.totalorder %s26, 1
    %p39 = por %p37, %p38
    %p40 = scmp.ne.s32.totalorder %s31, %s32
    %p41 = scmp.eq.s32.totalorder %s26, 0
    %p42 = por %p40, %p41
    %p43 = scmp.ne.s32.totalorder %s31, %s32
    %p44 = scmp.eq.s32.totalorder %s27, 1
    %p45 = por %p43, %p44
    %p47 = scmp.ne.s32.totalorder %s32, %s46
    %p48 = scmp.eq.s32.totalorder %s27, 0
    %p49 = por %p47, %p48
    %s51 = sadd.s32 %s50, 1
    %p54 = scmp.eq.s32.totalorder %s21, 1
    %p55 = scmp.ne.s32.totalorder %s50, %s52
    %p56 = scmp.eq.s32.totalorder %s21, 0
    %p57 = por %p55, %p56
    %p58 = scmp.ne.s32.totalorder %s50, %s52
    %p59 = scmp.eq.s32.totalorder %s26, 1
    %p60 = por %p58, %p59
    %p61 = scmp.ne.s32.totalorder %s52, %s53
    %p62 = scmp.eq.s32.totalorder %s26, 0
    %p63 = por %p61, %p62
    %p64 = scmp.ne.s32.totalorder %s52, %s53
    %p65 = scmp.eq.s32.totalorder %s27, 1
    %p66 = por %p64, %p65
    %p68 = scmp.ne.s32.totalorder %s53, %s67
    %p69 = scmp.eq.s32.totalorder %s27, 0
    %p70 = por %p68, %p69
    %s72 = sadd.s32 %s71, 1
    %p75 = scmp.eq.s32.totalorder %s21, 1
    %p76 = scmp.ne.s32.totalorder %s71, %s73
    %p77 = scmp.eq.s32.totalorder %s21, 0
    %p78 = por %p76, %p77
    %p79 = scmp.ne.s32.totalorder %s71, %s73
    %p80 = scmp.eq.s32.totalorder %s26, 1
    %p81 = por %p79, %p80
    %p82 = scmp.ne.s32.totalorder %s73, %s74
    %p83 = scmp.eq.s32.totalorder %s26, 0
    %p84 = por %p82, %p83
    %p85 = scmp.ne.s32.totalorder %s73, %s74
    %p86 = scmp.eq.s32.totalorder %s27, 1
    %p87 = por %p85, %p86
    %p89 = scmp.ne.s32.totalorder %s74, %s88
    %p90 = scmp.eq.s32.totalorder %s27, 0
    %p91 = por %p89, %p90
    %s93 = sadd.s32 %s92, 1
    %p96 = scmp.eq.s32.totalorder %s21, 1
    %p97 = scmp.ne.s32.totalorder %s92, %s94
    %p98 = scmp.eq.s32.totalorder %s21, 0
    %p99 = por %p97, %p98
    %p100 = scmp.ne.s32.totalorder %s92, %s94
    %p101 = scmp.eq.s32.totalorder %s26, 1
    %p102 = por %p100, %p101
    %p103 = scmp.ne.s32.totalorder %s94, %s95
    %p104 = scmp.eq.s32.totalorder %s26, 0
    %p105 = por %p103, %p104
    %p106 = scmp.ne.s32.totalorder %s94, %s95
    %p107 = scmp.eq.s32.totalorder %s27, 1
    %p108 = por %p106, %p107
    %p110 = scmp.ne.s32.totalorder %s95, %s109
    %p111 = scmp.eq.s32.totalorder %s27, 0
    %p112 = por %p110, %p111
    %s114 = sadd.s32 %s113, 1
    %p117 = scmp.eq.s32.totalorder %s21, 1
    %p118 = scmp.ne.s32.totalorder %s113, %s115
    %p119 = scmp.eq.s32.totalorder %s21, 0
    %p120 = por %p118, %p119
    %p121 = scmp.ne.s32.totalorder %s113, %s115
    %p122 = scmp.eq.s32.totalorder %s26, 1
    %p123 = por %p121, %p122
    %p124 = scmp.ne.s32.totalorder %s115, %s116
    %p125 = scmp.eq.s32.totalorder %s26, 0
    %p126 = por %p124, %p125
    %p127 = scmp.ne.s32.totalorder %s115, %s116
    %p128 = scmp.eq.s32.totalorder %s27, 1
    %p129 = por %p127, %p128
    %p131 = scmp.ne.s32.totalorder %s116, %s130
    %p132 = scmp.eq.s32.totalorder %s27, 0
    %p133 = por %p131, %p132
    %s135 = sadd.s32 %s134, 1
    %p138 = scmp.eq.s32.totalorder %s21, 1
    %p139 = scmp.ne.s32.totalorder %s134, %s136
    %p140 = scmp.eq.s32.totalorder %s21, 0
    %p141 = por %p139, %p140
    %p142 = scmp.ne.s32.totalorder %s134, %s136
    %p143 = scmp.eq.s32.totalorder %s26, 1
    %p144 = por %p142, %p143
    %p145 = scmp.ne.s32.totalorder %s136, %s137
    %p146 = scmp.eq.s32.totalorder %s26, 0
    %p147 = por %p145, %p146
    %p148 = scmp.ne.s32.totalorder %s136, %s137
    %p149 = scmp.eq.s32.totalorder %s27, 1
    %p150 = por %p148, %p149
    %p152 = scmp.ne.s32.totalorder %s137, %s151
    %p153 = scmp.eq.s32.totalorder %s27, 0
    %p154 = por %p152, %p153
    %s156 = sadd.s32 %s155, 1
    %p159 = scmp.eq.s32.totalorder %s21, 1
    %p160 = scmp.ne.s32.totalorder %s155, %s157
    %p161 = scmp.eq.s32.totalorder %s21, 0
    %p162 = por %p160, %p161
    %p163 = scmp.ne.s32.totalorder %s155, %s157
    %p164 = scmp.eq.s32.totalorder %s26, 1
    %p165 = por %p163, %p164
    %p166 = scmp.ne.s32.totalorder %s157, %s158
    %p167 = scmp.eq.s32.totalorder %s26, 0
    %p168 = por %p166, %p167
    %p169 = scmp.ne.s32.totalorder %s157, %s158
    %p170 = scmp.eq.s32.totalorder %s27, 1
    %p171 = por %p169, %p170
    %p173 = scmp.ne.s32.totalorder %s158, %s172
    %p174 = scmp.eq.s32.totalorder %s27, 0
    %p175 = por %p173, %p174
    %s177 = sadd.s32 %s176, 1
    %p180 = scmp.eq.s32.totalorder %s21, 1
    %p181 = scmp.ne.s32.totalorder %s176, %s178
    %p182 = scmp.eq.s32.totalorder %s21, 0
    %p183 = por %p181, %p182
    %p184 = scmp.ne.s32.totalorder %s176, %s178
    %p185 = scmp.eq.s32.totalorder %s26, 1
    %p186 = por %p184, %p185
    %p187 = scmp.ne.s32.totalorder %s178, %s179
    %p188 = scmp.eq.s32.totalorder %s26, 0
    %p189 = por %p187, %p188
    %p190 = scmp.ne.s32.totalorder %s178, %s179
    %p191 = scmp.eq.s32.totalorder %s27, 1
    %p192 = por %p190, %p191
    %p194 = scmp.ne.s32.totalorder %s179, %s193
    %p195 = scmp.eq.s32.totalorder %s27, 0
    %p196 = por %p194, %p195
    %s198 = sadd.s32 %s197, 1
    %p201 = scmp.eq.s32.totalorder %s21, 1
    %p202 = scmp.ne.s32.totalorder %s197, %s199
    %p203 = scmp.eq.s32.totalorder %s21, 0
    %p204 = por %p202, %p203
    %p205 = scmp.ne.s32.totalorder %s197, %s199
    %p206 = scmp.eq.s32.totalorder %s26, 1
    %p207 = por %p205, %p206
    %p208 = scmp.ne.s32.totalorder %s199, %s200
    %p209 = scmp.eq.s32.totalorder %s26, 0
    %p210 = por %p208, %p209
    %p211 = scmp.ne.s32.totalorder %s199, %s200
    %p212 = scmp.eq.s32.totalorder %s27, 1
    %p213 = por %p211, %p212
    %p215 = scmp.ne.s32.totalorder %s200, %s214
    %p216 = scmp.eq.s32.totalorder %s27, 0
    %p217 = por %p215, %p216
    %s219 = sadd.s32 %s218, 1
    %p222 = scmp.eq.s32.totalorder %s21, 1
    %p223 = scmp.ne.s32.totalorder %s218, %s220
    %p224 = scmp.eq.s32.totalorder %s21, 0
    %p225 = por %p223, %p224
    %p226 = scmp.ne.s32.totalorder %s218, %s220
    %p227 = scmp.eq.s32.totalorder %s26, 1
    %p228 = por %p226, %p227
    %p229 = scmp.ne.s32.totalorder %s220, %s221
    %p230 = scmp.eq.s32.totalorder %s26, 0
    %p231 = por %p229, %p230
    %p232 = scmp.ne.s32.totalorder %s220, %s221
    %p233 = scmp.eq.s32.totalorder %s27, 1
    %p234 = por %p232, %p233
    %p236 = scmp.ne.s32.totalorder %s221, %s235
    %p237 = scmp.eq.s32.totalorder %s27, 0
    %p238 = por %p236, %p237
    %s240 = sadd.s32 %s239, 1
    %p243 = scmp.eq.s32.totalorder %s21, 1
    %p244 = scmp.ne.s32.totalorder %s239, %s241
    %p245 = scmp.eq.s32.totalorder %s21, 0
    %p246 = por %p244, %p245
    %p247 = scmp.ne.s32.totalorder %s239, %s241
    %p248 = scmp.eq.s32.totalorder %s26, 1
    %p249 = por %p247, %p248
    %p250 = scmp.ne.s32.totalorder %s241, %s242
    %p251 = scmp.eq.s32.totalorder %s26, 0
    %p252 = por %p250, %p251
    %p253 = scmp.ne.s32.totalorder %s241, %s242
    %p254 = scmp.eq.s32.totalorder %s27, 1
    %p255 = por %p253, %p254
    %p257 = scmp.ne.s32.totalorder %s242, %s256
    %p258 = scmp.eq.s32.totalorder %s27, 0
    %p259 = por %p257, %p258
    %s261 = sadd.s32 %s260, 1
    %p264 = scmp.eq.s32.totalorder %s21, 1
    %p265 = scmp.ne.s32.totalorder %s260, %s262
    %p266 = scmp.eq.s32.totalorder %s21, 0
    %p267 = por %p265, %p266
    %p268 = scmp.ne.s32.totalorder %s260, %s262
    %p269 = scmp.eq.s32.totalorder %s26, 1
    %p270 = por %p268, %p269
    %p271 = scmp.ne.s32.totalorder %s262, %s263
    %p272 = scmp.eq.s32.totalorder %s26, 0
    %p273 = por %p271, %p272
    %p274 = scmp.ne.s32.totalorder %s262, %s263
    %p275 = scmp.eq.s32.totalorder %s27, 1
    %p276 = por %p274, %p275
    %p278 = scmp.ne.s32.totalorder %s263, %s277
    %p279 = scmp.eq.s32.totalorder %s27, 0
    %p280 = por %p278, %p279
    %s282 = sadd.s32 %s281, 1
    %p285 = scmp.eq.s32.totalorder %s21, 1
    %p286 = scmp.ne.s32.totalorder %s281, %s283
    %p287 = scmp.eq.s32.totalorder %s21, 0
    %p288 = por %p286, %p287
    %p289 = scmp.ne.s32.totalorder %s281, %s283
    %p290 = scmp.eq.s32.totalorder %s26, 1
    %p291 = por %p289, %p290
    %p292 = scmp.ne.s32.totalorder %s283, %s284
    %p293 = scmp.eq.s32.totalorder %s26, 0
    %p294 = por %p292, %p293
    %p295 = scmp.ne.s32.totalorder %s283, %s284
    %p296 = scmp.eq.s32.totalorder %s27, 1
    %p297 = por %p295, %p296
    %p299 = scmp.ne.s32.totalorder %s284, %s298
    %p300 = scmp.eq.s32.totalorder %s27, 0
    %p301 = por %p299, %p300
    %s302 = ssub.s32 %s21, %s28
    %p303 = scmp.eq.s32.totalorder %s302, 0
    %s305 = sadd.s32 %s304, 1
    %s306 = scalar_select %p303, %s304, %s305
    %p309 = pneg %p303
    %p310 = scmp.eq.s32.totalorder %s21, 1
    %p311 = por %p309, %p310
    %p312 = scmp.ne.s32.totalorder %s304, %s307
    %p313 = scmp.eq.s32.totalorder %s21, 0
    %p314 = por %p312, %p313
    %p315 = scmp.ne.s32.totalorder %s304, %s307
    %p316 = scmp.eq.s32.totalorder %s26, 1
    %p317 = por %p315, %p316
    %p318 = scmp.ne.s32.totalorder %s307, %s308
    %p319 = scmp.eq.s32.totalorder %s26, 0
    %p320 = por %p318, %p319
    %p321 = scmp.ne.s32.totalorder %s307, %s308
    %p322 = scmp.eq.s32.totalorder %s27, 1
    %p323 = por %p321, %p322
    %p325 = scmp.ne.s32.totalorder %s308, %s324
    %p326 = scmp.eq.s32.totalorder %s27, 0
    %p327 = por %p325, %p326
    %s328 = ssub.s32 %s21, %s28
    %p329 = scmp.eq.s32.totalorder %s328, 0
    %s331 = sadd.s32 %s330, 1
    %s332 = scalar_select %p329, %s330, %s331
    %p335 = pneg %p329
    %p336 = scmp.eq.s32.totalorder %s21, 1
    %p337 = por %p335, %p336
    %p338 = scmp.ne.s32.totalorder %s330, %s333
    %p339 = scmp.eq.s32.totalorder %s21, 0
    %p340 = por %p338, %p339
    %p341 = scmp.ne.s32.totalorder %s330, %s333
    %p342 = scmp.eq.s32.totalorder %s26, 1
    %p343 = por %p341, %p342
    %p344 = scmp.ne.s32.totalorder %s333, %s334
    %p345 = scmp.eq.s32.totalorder %s26, 0
    %p346 = por %p344, %p345
    %p347 = scmp.ne.s32.totalorder %s333, %s334
    %p348 = scmp.eq.s32.totalorder %s27, 1
    %p349 = por %p347, %p348
    %p351 = scmp.ne.s32.totalorder %s334, %s350
    %p352 = scmp.eq.s32.totalorder %s27, 0
    %p353 = por %p351, %p352
    %s354 = ssub.s32 %s21, %s28
    %p355 = scmp.eq.s32.totalorder %s354, 0
    %s357 = sadd.s32 %s356, 1
    %s358 = scalar_select %p355, %s356, %s357
    %p361 = pneg %p355
    %p362 = scmp.eq.s32.totalorder %s21, 1
    %p363 = por %p361, %p362
    %p364 = scmp.ne.s32.totalorder %s356, %s359
    %p365 = scmp.eq.s32.totalorder %s21, 0
    %p366 = por %p364, %p365
    %p367 = scmp.ne.s32.totalorder %s356, %s359
    %p368 = scmp.eq.s32.totalorder %s26, 1
    %p369 = por %p367, %p368
    %p370 = scmp.ne.s32.totalorder %s359, %s360
    %p371 = scmp.eq.s32.totalorder %s26, 0
    %p372 = por %p370, %p371
    %p373 = scmp.ne.s32.totalorder %s359, %s360
    %p374 = scmp.eq.s32.totalorder %s27, 1
    %p375 = por %p373, %p374
    %p377 = scmp.ne.s32.totalorder %s360, %s376
    %p378 = scmp.eq.s32.totalorder %s27, 0
    %p379 = por %p377, %p378
    %p380 = scmp.le.s32.totalorder 1, %s21
    %p381 = scmp.lt.s32.totalorder %s21, 3
    %p382 = pnand %p380, %p381
    %p383 = pneg %p382
    // Predicated region
    $region9: #{_lambda_.1} parent=5 // pred_check
      _
    $region10: #{_lambda_.1} parent=5 // pred_check_branch
      %385 = sbr.rel (%p382) target = $region12
    $region11: #{_lambda_.1} parent=5 // pred_region
      %s386 = ssub.s32 %s21, 1
      // Predicated region
      $region13: #{_lambda_.1} parent=11 // pred_check
        %p387 = pneg %p42
      $region14: #{_lambda_.1} parent=11 // pred_check_branch
        %389 = sbr.rel (%p387) target = $region16
      $region15: #{_lambda_.1} parent=11 // pred_region
        _
      $region16: #{_lambda_.1} parent=11 // pred_fallthru
        _
      // Predicated region
      $region17: #{_lambda_.1} parent=11 // pred_check
        %p390 = pneg %p63
      $region18: #{_lambda_.1} parent=11 // pred_check_branch
        %392 = sbr.rel (%p390) target = $region20
      $region19: #{_lambda_.1} parent=11 // pred_region
        _
      $region20: #{_lambda_.1} parent=11 // pred_fallthru
        _
      // Predicated region
      $region21: #{_lambda_.1} parent=11 // pred_check
        %p393 = pneg %p84
      $region22: #{_lambda_.1} parent=11 // pred_check_branch
        %395 = sbr.rel (%p393) target = $region24
      $region23: #{_lambda_.1} parent=11 // pred_region
        _
      $region24: #{_lambda_.1} parent=11 // pred_fallthru
        _
      // Predicated region
      $region25: #{_lambda_.1} parent=11 // pred_check
        %p396 = pneg %p105
      $region26: #{_lambda_.1} parent=11 // pred_check_branch
        %398 = sbr.rel (%p396) target = $region28
      $region27: #{_lambda_.1} parent=11 // pred_region
        _
      $region28: #{_lambda_.1} parent=11 // pred_fallthru
        _
      // Predicated region
      $region29: #{_lambda_.1} parent=11 // pred_check
        %p399 = pneg %p126
      $region30: #{_lambda_.1} parent=11 // pred_check_branch
        %401 = sbr.rel (%p399) target = $region32
      $region31: #{_lambda_.1} parent=11 // pred_region
        _
      $region32: #{_lambda_.1} parent=11 // pred_fallthru
        _
      // Predicated region
      $region33: #{_lambda_.1} parent=11 // pred_check
        %p402 = pneg %p147
      $region34: #{_lambda_.1} parent=11 // pred_check_branch
        %404 = sbr.rel (%p402) target = $region36
      $region35: #{_lambda_.1} parent=11 // pred_region
        _
      $region36: #{_lambda_.1} parent=11 // pred_fallthru
        _
      // Predicated region
      $region37: #{_lambda_.1} parent=11 // pred_check
        %p405 = pneg %p168
      $region38: #{_lambda_.1} parent=11 // pred_check_branch
        %407 = sbr.rel (%p405) target = $region40
      $region39: #{_lambda_.1} parent=11 // pred_region
        _
      $region40: #{_lambda_.1} parent=11 // pred_fallthru
        _
      // Predicated region
      $region41: #{_lambda_.1} parent=11 // pred_check
        %p408 = pneg %p189
      $region42: #{_lambda_.1} parent=11 // pred_check_branch
        %410 = sbr.rel (%p408) target = $region44
      $region43: #{_lambda_.1} parent=11 // pred_region
        _
      $region44: #{_lambda_.1} parent=11 // pred_fallthru
        _
      // Predicated region
      $region45: #{_lambda_.1} parent=11 // pred_check
        %p411 = pneg %p210
      $region46: #{_lambda_.1} parent=11 // pred_check_branch
        %413 = sbr.rel (%p411) target = $region48
      $region47: #{_lambda_.1} parent=11 // pred_region
        _
      $region48: #{_lambda_.1} parent=11 // pred_fallthru
        _
      // Predicated region
      $region49: #{_lambda_.1} parent=11 // pred_check
        %p414 = pneg %p231
      $region50: #{_lambda_.1} parent=11 // pred_check_branch
        %416 = sbr.rel (%p414) target = $region52
      $region51: #{_lambda_.1} parent=11 // pred_region
        _
      $region52: #{_lambda_.1} parent=11 // pred_fallthru
        _
      // Predicated region
      $region53: #{_lambda_.1} parent=11 // pred_check
        %p417 = pneg %p252
      $region54: #{_lambda_.1} parent=11 // pred_check_branch
        %419 = sbr.rel (%p417) target = $region56
      $region55: #{_lambda_.1} parent=11 // pred_region
        _
      $region56: #{_lambda_.1} parent=11 // pred_fallthru
        _
      // Predicated region
      $region57: #{_lambda_.1} parent=11 // pred_check
        %p420 = pneg %p273
      $region58: #{_lambda_.1} parent=11 // pred_check_branch
        %422 = sbr.rel (%p420) target = $region60
      $region59: #{_lambda_.1} parent=11 // pred_region
        _
      $region60: #{_lambda_.1} parent=11 // pred_fallthru
        _
      // Predicated region
      $region61: #{_lambda_.1} parent=11 // pred_check
        %p423 = pneg %p294
      $region62: #{_lambda_.1} parent=11 // pred_check_branch
        %425 = sbr.rel (%p423) target = $region64
      $region63: #{_lambda_.1} parent=11 // pred_region
        _
      $region64: #{_lambda_.1} parent=11 // pred_fallthru
        _
    $region12: #{_lambda_.1} parent=5 // pred_fallthru
      _
    %p426 = scmp.lt.s32.totalorder %s21, 2
    // Predicated region
    $region65: #{_lambda_.1} parent=5 // pred_check
      %p427 = pneg %p426
    $region66: #{_lambda_.1} parent=5 // pred_check_branch
      %429 = sbr.rel (%p427) target = $region68
    $region67: #{_lambda_.1} parent=5 // pred_region
      // Predicated region
      $region69: #{_lambda_.1} parent=67 // pred_check
        %p430 = pneg %p314
      $region70: #{_lambda_.1} parent=67 // pred_check_branch
        %432 = sbr.rel (%p430) target = $region72
      $region71: #{_lambda_.1} parent=67 // pred_region
        %p433 = scmp.lt.s32.totalorder %s21, 1
        %s434 = scalar_select %p433, %s21, 1
        %s435 = smul.addr %s434, 2
        %s436 = smul.addr %s435, 8
        %s437 = scalar_lea.vmem %s13, %s436
      $region72: #{_lambda_.1} parent=67 // pred_fallthru
        _
      // Predicated region
      $region73: #{_lambda_.1} parent=67 // pred_check
        %p438 = pneg %p340
      $region74: #{_lambda_.1} parent=67 // pred_check_branch
        %440 = sbr.rel (%p438) target = $region76
      $region75: #{_lambda_.1} parent=67 // pred_region
        %p441 = scmp.lt.s32.totalorder %s21, 1
        %s442 = scalar_select %p441, %s21, 1
        %s443 = smul.addr %s442, 2
        %s444 = smul.addr %s443, 8
        %s445 = scalar_lea.vmem %s14, %s444
      $region76: #{_lambda_.1} parent=67 // pred_fallthru
        _
    $region68: #{_lambda_.1} parent=5 // pred_fallthru
      _
    %p446 = scmp.le.s32.totalorder 1, %s21
    %p447 = scmp.lt.s32.totalorder %s21, 3
    %p448 = pnand %p446, %p447
    %p449 = pneg %p448
    // Predicated region
    $region77: #{_lambda_.1} parent=5 // pred_check
      _
    $region78: #{_lambda_.1} parent=5 // pred_check_branch
      %451 = sbr.rel (%p448) target = $region80
    $region79: #{_lambda_.1} parent=5 // pred_region
      %s452 = ssub.s32 %s21, 1
      %p453 = pneg %p42
      %p454 = pneg %p39
      %p455 = pneg %p63
      %p456 = pneg %p60
      %p457 = pneg %p84
      %p458 = pneg %p81
      %p459 = pneg %p105
      %p460 = pneg %p102
      %p461 = pneg %p126
      %p462 = pneg %p123
      %p463 = pneg %p147
      %p464 = pneg %p144
      %p465 = pneg %p168
      %p466 = pneg %p165
      %p467 = pneg %p189
      %p468 = pneg %p186
      %p469 = pneg %p210
      %p470 = pneg %p207
      %p471 = pneg %p231
      %p472 = pneg %p228
      %p473 = pneg %p252
      %p474 = pneg %p249
      %p475 = pneg %p273
      %p476 = pneg %p270
      %p477 = pneg %p294
      %p478 = pneg %p291
      %p479 = scmp.lt.s32.totalorder %s26, 1
      %s480 = scalar_select %p479, %s26, 1
      %s481 = smul.addr %s480, 2
      %s482 = smul.addr %s481, 8
      %s483 = scalar_lea.vmem %s13, %s482
      %p484 = pneg %p320
      %p485 = pneg %p317
      %p486 = scmp.lt.s32.totalorder %s26, 1
      %s487 = scalar_select %p486, %s26, 1
      %s488 = smul.addr %s487, 2
      %s489 = smul.addr %s488, 8
      %s490 = scalar_lea.vmem %s14, %s489
      %p491 = pneg %p346
      %p492 = pneg %p343
      %p493 = pneg %p372
      %p494 = pneg %p369
      %p495 = scmp.lt.s32.totalorder %s26, 1
      %s496 = scalar_select %p495, %s26, 1
      %s497 = smul.addr %s496, 2
      %s498 = smul.addr %s497, 8
      %s499 = scalar_lea.vmem %s15, %s498
      %p500 = scmp.lt.s32.totalorder %s26, 1
      %s501 = scalar_select %p500, %s26, 1
      %s502 = smul.addr %s501, 2
      %s503 = smul.addr %s502, 8
      %s504 = scalar_lea.vmem %s13, %s503
      %p505 = scmp.lt.s32.totalorder %s26, 1
      %s506 = scalar_select %p505, %s26, 1
      %s507 = smul.addr %s506, 2
      %s508 = smul.addr %s507, 8
      %s509 = scalar_lea.vmem %s14, %s508
      %p510 = scmp.lt.s32.totalorder %s26, 1
      %s511 = scalar_select %p510, %s26, 1
      %s512 = smul.addr %s511, 2
      %s513 = smul.addr %s512, 8
      %s514 = scalar_lea.vmem %s15, %s513
      %v515 = vld [vmem:[%s0] sm:$0xff]
      %v516 = vld [vmem:[%s504] sm:$0xff]
      %v517 = vld [vmem:[%s504 + $0x8] sm:$0xff]
      %vm518 = vcmask 130048
      %v520 = vsel %vm518, %v515, 0
      %522 = vmatprep.subr.mxu0 0.0
      %523 = vmatpush1.msra.mxu0 %v516
      %524 = vmatprep.subr.mxu0 0.0
      %525 = vmatpush1.msra.mxu0 %v517
      %526 = vmatprep.subr.mxu0 0.0
      %527 = vmatpush1.msra.mxu0 0.0
      %528 = vmatprep.subr.mxu0 0.0
      %529 = vmatpush1.msra.mxu0 0.0
      %530 = vmatprep.subr.mxu0 0.0
      %531 = vmatpush1.msra.mxu0 0.0
      %532 = vmatprep.subr.mxu0 0.0
      %533 = vmatpush1.msra.mxu0 0.0
      %534 = vmatprep.subr.mxu0 0.0
      %535 = vmatpush1.msra.mxu0 0.0
      %536 = vmatprep.subr.mxu0 0.0
      %537 = vmatpush1.msra.mxu0 0.0
      %538 = vmatprep.subr.mxu0 0.0
      %539 = vmatpush1.msra.mxu0 0.0
      %540 = vmatprep.subr.mxu0 0.0
      %541 = vmatpush1.msra.mxu0 0.0
      %542 = vmatprep.subr.mxu0 0.0
      %543 = vmatpush1.msra.mxu0 0.0
      %544 = vmatprep.subr.mxu0 0.0
      %545 = vmatpush1.msra.mxu0 0.0
      %546 = vmatprep.subr.mxu0 0.0
      %547 = vmatpush1.msra.mxu0 0.0
      %548 = vmatprep.subr.mxu0 0.0
      %549 = vmatpush1.msra.mxu0 0.0
      %550 = vmatprep.subr.mxu0 0.0
      %551 = vmatpush1.msra.mxu0 0.0
      %552 = vmatprep.subr.mxu0 0.0
      %553 = vmatpush1.msra.mxu0 0.0
      %554 = vmatprep.subr.mxu0 0.0
      %555 = vmatpush1.msra.mxu0 0.0
      %556 = vmatprep.subr.mxu0 0.0
      %557 = vmatpush1.msra.mxu0 0.0
      %558 = vmatprep.subr.mxu0 0.0
      %559 = vmatpush1.msra.mxu0 0.0
      %560 = vmatprep.subr.mxu0 0.0
      %561 = vmatpush1.msra.mxu0 0.0
      %562 = vmatprep.subr.mxu0 0.0
      %563 = vmatpush1.msra.mxu0 0.0
      %564 = vmatprep.subr.mxu0 0.0
      %565 = vmatpush1.msra.mxu0 0.0
      %566 = vmatprep.subr.mxu0 0.0
      %567 = vmatpush1.msra.mxu0 0.0
      %568 = vmatprep.subr.mxu0 0.0
      %569 = vmatpush1.msra.mxu0 0.0
      %570 = vmatprep.subr.mxu0 0.0
      %571 = vmatpush1.msra.mxu0 0.0
      %572 = vmatprep.subr.mxu0 0.0
      %573 = vmatpush1.msra.mxu0 0.0
      %574 = vmatprep.subr.mxu0 0.0
      %575 = vmatpush1.msra.mxu0 0.0
      %576 = vmatprep.subr.mxu0 0.0
      %577 = vmatpush1.msra.mxu0 0.0
      %578 = vmatprep.subr.mxu0 0.0
      %579 = vmatpush1.msra.mxu0 0.0
      %580 = vmatprep.subr.mxu0 0.0
      %581 = vmatpush1.msra.mxu0 0.0
      %582 = vmatprep.subr.mxu0 0.0
      %583 = vmatpush1.msra.mxu0 0.0
      %584 = vmatprep.subr.mxu0 0.0
      %585 = vmatpush1.msra.mxu0 0.0
      %586 = vmatprep.mubr.f32.mxu0 0.0
      %587 = vmatmul.mubr.f32.gmra.mrb[0].mxu0 %v520
      %v588 = vpop.f32.mrb[0].mxu0
      %v589 = vadd.f32 0.0, %v588
      %v590 = vpop.f32.mrb[0].mxu0
      %591 = vdwg.mxu0
      %v592 = vld [vmem:[%s1] sm:$0xff]
      %594 = vset.pattern.permute.xlu0 0
      %595 = vperm.xlu0 %594, %v592
      %v596 = vpop.permute.xlu0 %595
      %v598 = vmul.f32 %v589, %v596
      %v599 = vld [vmem:[%s2] sm:$0xff]
      %601 = vset.pattern.permute.xlu0 0
      %602 = vperm.xlu0 %601, %v599
      %v603 = vpop.permute.xlu0 %602
      %v605 = vadd.f32 %v598, %v603
      %v606 = vmax.f32 %v605, 0.0
      %v607 = vld [vmem:[%s3] sm:$0xff]
      %v608 = vld [vmem:[%s3 + $0x8] sm:$0xff]
      %v609 = vld [vmem:[%s3 + $0x10] sm:$0xff]
      %v610 = vld [vmem:[%s3 + $0x18] sm:$0xff]
      %v611 = vld [vmem:[%s3 + $0x20] sm:$0xff]
      %v612 = vld [vmem:[%s3 + $0x28] sm:$0xff]
      %v613 = vld [vmem:[%s3 + $0x30] sm:$0xff]
      %v614 = vld [vmem:[%s3 + $0x38] sm:$0xff]
      %v615 = vld [vmem:[%s3 + $0x40] sm:$0xff]
      %v616 = vld [vmem:[%s3 + $0x48] sm:$0xff]
      %v617 = vld [vmem:[%s3 + $0x50] sm:$0xff]
      %v618 = vld [vmem:[%s3 + $0x58] sm:$0xff]
      %v619 = vld [vmem:[%s3 + $0x60] sm:$0xff]
      %v620 = vld [vmem:[%s3 + $0x68] sm:$0xff]
      %v621 = vld [vmem:[%s3 + $0x70] sm:$0xff]
      %v622 = vld [vmem:[%s3 + $0x78] sm:$0xff]
      %vm623 = vcmask 523264
      %v625 = vsel %vm623, %v606, 0
      %627 = vmatprep.subr.mxu0 %v608
      %628 = vmatpush1.msra.mxu0 %v607
      %629 = vmatprep.subr.mxu0 %v610
      %630 = vmatpush1.msra.mxu0 %v609
      %631 = vmatprep.subr.mxu0 %v612
      %632 = vmatpush1.msra.mxu0 %v611
      %633 = vmatprep.subr.mxu0 %v614
      %634 = vmatpush1.msra.mxu0 %v613
      %635 = vmatprep.subr.mxu0 %v616
      %636 = vmatpush1.msra.mxu0 %v615
      %637 = vmatprep.subr.mxu0 %v618
      %638 = vmatpush1.msra.mxu0 %v617
      %639 = vmatprep.subr.mxu0 %v620
      %640 = vmatpush1.msra.mxu0 %v619
      %641 = vmatprep.subr.mxu0 %v622
      %642 = vmatpush1.msra.mxu0 %v621
      %643 = vmatprep.subr.mxu0 0.0
      %644 = vmatpush1.msra.mxu0 0.0
      %645 = vmatprep.subr.mxu0 0.0
      %646 = vmatpush1.msra.mxu0 0.0
      %647 = vmatprep.subr.mxu0 0.0
      %648 = vmatpush1.msra.mxu0 0.0
      %649 = vmatprep.subr.mxu0 0.0
      %650 = vmatpush1.msra.mxu0 0.0
      %651 = vmatprep.subr.mxu0 0.0
      %652 = vmatpush1.msra.mxu0 0.0
      %653 = vmatprep.subr.mxu0 0.0
      %654 = vmatpush1.msra.mxu0 0.0
      %655 = vmatprep.subr.mxu0 0.0
      %656 = vmatpush1.msra.mxu0 0.0
      %657 = vmatprep.subr.mxu0 0.0
      %658 = vmatpush1.msra.mxu0 0.0
      %659 = vmatprep.subr.mxu0 0.0
      %660 = vmatpush1.msra.mxu0 0.0
      %661 = vmatprep.subr.mxu0 0.0
      %662 = vmatpush1.msra.mxu0 0.0
      %663 = vmatprep.subr.mxu0 0.0
      %664 = vmatpush1.msra.mxu0 0.0
      %665 = vmatprep.subr.mxu0 0.0
      %666 = vmatpush1.msra.mxu0 0.0
      %667 = vmatprep.subr.mxu0 0.0
      %668 = vmatpush1.msra.mxu0 0.0
      %669 = vmatprep.subr.mxu0 0.0
      %670 = vmatpush1.msra.mxu0 0.0
      %671 = vmatprep.subr.mxu0 0.0
      %672 = vmatpush1.msra.mxu0 0.0
      %673 = vmatprep.subr.mxu0 0.0
      %674 = vmatpush1.msra.mxu0 0.0
      %675 = vmatprep.subr.mxu0 0.0
      %676 = vmatpush1.msra.mxu0 0.0
      %677 = vmatprep.subr.mxu0 0.0
      %678 = vmatpush1.msra.mxu0 0.0
      %679 = vmatprep.subr.mxu0 0.0
      %680 = vmatpush1.msra.mxu0 0.0
      %681 = vmatprep.subr.mxu0 0.0
      %682 = vmatpush1.msra.mxu0 0.0
      %683 = vmatprep.subr.mxu0 0.0
      %684 = vmatpush1.msra.mxu0 0.0
      %685 = vmatprep.subr.mxu0 0.0
      %686 = vmatpush1.msra.mxu0 0.0
      %687 = vmatprep.subr.mxu0 0.0
      %688 = vmatpush1.msra.mxu0 0.0
      %689 = vmatprep.subr.mxu0 0.0
      %690 = vmatpush1.msra.mxu0 0.0
      %691 = vmatprep.mubr.f32.mxu0 0.0
      %692 = vmatmul.mubr.f32.gmra.mrb[0].mxu0 %v625
      %v693 = vpop.f32.mrb[0].mxu0
      %v694 = vadd.f32 0.0, %v693
      %v695 = vpop.f32.mrb[0].mxu0
      %v696 = vadd.f32 0.0, %v695
      %697 = vdwg.mxu0
      %v698 = vld [vmem:[%s4] sm:$0xff]
      %v699 = vld [vmem:[%s509] sm:$0xff]
      %v700 = vld [vmem:[%s509 + $0x8] sm:$0xff]
      %vm701 = vcmask 64512
      %v703 = vsel %vm701, %v698, 0
      %705 = vmatprep.subr.mxu0 %v700
      %706 = vmatpush1.msra.mxu0 %v699
      %707 = vmatprep.subr.mxu0 0.0
      %708 = vmatpush1.msra.mxu0 0.0
      %709 = vmatprep.subr.mxu0 0.0
      %710 = vmatpush1.msra.mxu0 0.0
      %711 = vmatprep.subr.mxu0 0.0
      %712 = vmatpush1.msra.mxu0 0.0
      %713 = vmatprep.subr.mxu0 0.0
      %714 = vmatpush1.msra.mxu0 0.0
      %715 = vmatprep.subr.mxu0 0.0
      %716 = vmatpush1.msra.mxu0 0.0
      %717 = vmatprep.subr.mxu0 0.0
      %718 = vmatpush1.msra.mxu0 0.0
      %719 = vmatprep.subr.mxu0 0.0
      %720 = vmatpush1.msra.mxu0 0.0
      %721 = vmatprep.subr.mxu0 0.0
      %722 = vmatpush1.msra.mxu0 0.0
      %723 = vmatprep.subr.mxu0 0.0
      %724 = vmatpush1.msra.mxu0 0.0
      %725 = vmatprep.subr.mxu0 0.0
      %726 = vmatpush1.msra.mxu0 0.0
      %727 = vmatprep.subr.mxu0 0.0
      %728 = vmatpush1.msra.mxu0 0.0
      %729 = vmatprep.subr.mxu0 0.0
      %730 = vmatpush1.msra.mxu0 0.0
      %731 = vmatprep.subr.mxu0 0.0
      %732 = vmatpush1.msra.mxu0 0.0
      %733 = vmatprep.subr.mxu0 0.0
      %734 = vmatpush1.msra.mxu0 0.0
      %735 = vmatprep.subr.mxu0 0.0
      %736 = vmatpush1.msra.mxu0 0.0
      %737 = vmatprep.subr.mxu0 0.0
      %738 = vmatpush1.msra.mxu0 0.0
      %739 = vmatprep.subr.mxu0 0.0
      %740 = vmatpush1.msra.mxu0 0.0
      %741 = vmatprep.subr.mxu0 0.0
      %742 = vmatpush1.msra.mxu0 0.0
      %743 = vmatprep.subr.mxu0 0.0
      %744 = vmatpush1.msra.mxu0 0.0
      %745 = vmatprep.subr.mxu0 0.0
      %746 = vmatpush1.msra.mxu0 0.0
      %747 = vmatprep.subr.mxu0 0.0
      %748 = vmatpush1.msra.mxu0 0.0
      %749 = vmatprep.subr.mxu0 0.0
      %750 = vmatpush1.msra.mxu0 0.0
      %751 = vmatprep.subr.mxu0 0.0
      %752 = vmatpush1.msra.mxu0 0.0
      %753 = vmatprep.subr.mxu0 0.0
      %754 = vmatpush1.msra.mxu0 0.0
      %755 = vmatprep.subr.mxu0 0.0
      %756 = vmatpush1.msra.mxu0 0.0
      %757 = vmatprep.subr.mxu0 0.0
      %758 = vmatpush1.msra.mxu0 0.0
      %759 = vmatprep.subr.mxu0 0.0
      %760 = vmatpush1.msra.mxu0 0.0
      %761 = vmatprep.subr.mxu0 0.0
      %762 = vmatpush1.msra.mxu0 0.0
      %763 = vmatprep.subr.mxu0 0.0
      %764 = vmatpush1.msra.mxu0 0.0
      %765 = vmatprep.subr.mxu0 0.0
      %766 = vmatpush1.msra.mxu0 0.0
      %767 = vmatprep.subr.mxu0 0.0
      %768 = vmatpush1.msra.mxu0 0.0
      %769 = vmatprep.mubr.f32.mxu0 0.0
      %770 = vmatmul.mubr.f32.gmra.mrb[0].mxu0 %v703
      %v771 = vpop.f32.mrb[0].mxu0
      %v772 = vadd.f32 0.0, %v771
      %v773 = vpop.f32.mrb[0].mxu0
      %v774 = vadd.f32 0.0, %v773
      %775 = vdwg.mxu0
      %v776 = vld [vmem:[%s5] sm:$0xff]
      %778 = vset.pattern.permute.xlu0 0
      %779 = vperm.xlu0 %778, %v776
      %v780 = vpop.permute.xlu0 %779
      %v782 = vmul.f32 %v772, %v780
      %v783 = vmul.f32 %v774, %v780
      %v784 = vld [vmem:[%s6] sm:$0xff]
      %786 = vset.pattern.permute.xlu0 0
      %787 = vperm.xlu0 %786, %v784
      %v788 = vpop.permute.xlu0 %787
      %v790 = vadd.f32 %v782, %v788
      %v791 = vadd.f32 %v783, %v788
      %v792 = vmax.f32 %v790, 0.0
      %v793 = vmax.f32 %v791, 0.0
      %794 = vst [vmem:[#allocation2] sm:$0xff] 0.0
      %795 = vst [vmem:[#allocation2 + $0x8] sm:$0xff] 0.0
      %796 = vst [vmem:[#allocation2 + $0x10] sm:$0xff] 0.0
      %797 = vst [vmem:[#allocation2 + $0x18] sm:$0xff] 0.0
      %798 = vst [vmem:[#allocation2 + $0x20] sm:$0xff] 0.0
      %799 = vst [vmem:[#allocation2 + $0x28] sm:$0xff] 0.0
      %800 = vst [vmem:[#allocation2 + $0x30] sm:$0xff] 0.0
      %801 = vst [vmem:[#allocation2 + $0x38] sm:$0xff] 0.0
      %802 = vst [vmem:[#allocation2 + $0x8] sm:$0xff] %v792
      %803 = vst [vmem:[#allocation2 + $0x10] sm:$0xff] %v793
      %804 = vst [vmem:[#allocation2 + $0x28] sm:$0xff] %v694
      %805 = vst [vmem:[#allocation2 + $0x30] sm:$0xff] %v696
      %v806 = vld [vmem:[#allocation2] sm:$0xff]
      %v807 = vld [vmem:[#allocation2 + $0x8] sm:$0xff]
      %v808 = vld [vmem:[#allocation2 + $0x10] sm:$0xff]
      %v809 = vld [vmem:[#allocation2 + $0x20] sm:$0xff]
      %v810 = vld [vmem:[#allocation2 + $0x28] sm:$0xff]
      %v811 = vld [vmem:[#allocation2 + $0x30] sm:$0xff]
      %v812 = vld [vmem:[%s8] sm:$0x3]
      %v814 = vlaneseq
      %v815 = vshrl.u32 %v814, 7
      %v816 = vsub.s32 0, %v815
      %v817 = vrot.slane %v812, %v816
      %v818 = vlaneseq
      %v819 = vshrl.u32 %v818, 7
      %v820 = vsub.s32 1, %v819
      %v821 = vrot.slane %v812, %v820
      %822 = vrot.lane.b32.xlu0 %v817, 111
      %v823 = vpop.permute.xlu0 %822
      %824 = vrot.lane.b32.xlu0 %v821, 111
      %v825 = vpop.permute.xlu0 %824
      %vm826 = vcmask 908288
      %v827 = vsel %vm826, %v823, %v825
      %v831 = vmul.f32 %v806, %v823
      %v832 = vmul.f32 %v807, %v827
      %v833 = vmul.f32 %v808, %v825
      %v834 = vmul.f32 %v809, %v823
      %v835 = vmul.f32 %v810, %v827
      %v836 = vmul.f32 %v811, %v825
      %s837 = scalar_lea.vmem %s8, 2
      %v838 = vld [vmem:[%s837] sm:$0x3]
      %v840 = vlaneseq
      %v841 = vshrl.u32 %v840, 7
      %v842 = vsub.s32 0, %v841
      %v843 = vrot.slane %v838, %v842
      %v844 = vlaneseq
      %v845 = vshrl.u32 %v844, 7
      %v846 = vsub.s32 1, %v845
      %v847 = vrot.slane %v838, %v846
      %848 = vrot.lane.b32.xlu0 %v843, 112
      %v849 = vpop.permute.xlu0 %848
      %850 = vrot.lane.b32.xlu0 %v847, 112
      %v851 = vpop.permute.xlu0 %850
      %vm852 = vcmask 916480
      %v853 = vsel %vm852, %v849, %v851
      %v857 = vmul.f32 %v806, %v849
      %v858 = vmul.f32 %v807, %v853
      %v859 = vmul.f32 %v808, %v851
      %v860 = vmul.f32 %v809, %v849
      %v861 = vmul.f32 %v810, %v853
      %v862 = vmul.f32 %v811, %v851
      %s863 = scalar_lea.vmem %s8, 4
      %v864 = vld [vmem:[%s863] sm:$0x3]
      %v866 = vlaneseq
      %v867 = vshrl.u32 %v866, 7
      %v868 = vsub.s32 0, %v867
      %v869 = vrot.slane %v864, %v868
      %v870 = vlaneseq
      %v871 = vshrl.u32 %v870, 7
      %v872 = vsub.s32 1, %v871
      %v873 = vrot.slane %v864, %v872
      %874 = vrot.lane.b32.xlu0 %v869, 113
      %v875 = vpop.permute.xlu0 %874
      %876 = vrot.lane.b32.xlu0 %v873, 113
      %v877 = vpop.permute.xlu0 %876
      %vm878 = vcmask 924672
      %v879 = vsel %vm878, %v875, %v877
      %v883 = vmul.f32 %v806, %v875
      %v884 = vmul.f32 %v807, %v879
      %v885 = vmul.f32 %v808, %v877
      %v886 = vmul.f32 %v809, %v875
      %v887 = vmul.f32 %v810, %v879
      %v888 = vmul.f32 %v811, %v877
      %s889 = scalar_lea.vmem %s8, 6
      %v890 = vld [vmem:[%s889] sm:$0x3]
      %v892 = vlaneseq
      %v893 = vshrl.u32 %v892, 7
      %v894 = vsub.s32 0, %v893
      %v895 = vrot.slane %v890, %v894
      %v896 = vlaneseq
      %v897 = vshrl.u32 %v896, 7
      %v898 = vsub.s32 1, %v897
      %v899 = vrot.slane %v890, %v898
      %900 = vrot.lane.b32.xlu0 %v895, 127
      %v901 = vpop.permute.xlu0 %900
      %902 = vrot.lane.b32.xlu0 %v899, 127
      %v903 = vpop.permute.xlu0 %902
      %vm904 = vcmask 1039360
      %v905 = vsel %vm904, %v901, %v903
      %v909 = vmul.f32 %v806, %v901
      %v910 = vmul.f32 %v807, %v905
      %v911 = vmul.f32 %v808, %v903
      %v912 = vmul.f32 %v809, %v901
      %v913 = vmul.f32 %v810, %v905
      %v914 = vmul.f32 %v811, %v903
      %s915 = scalar_lea.vmem %s8, 8
      %v916 = vld [vmem:[%s915] sm:$0x3]
      %v918 = vlaneseq
      %v919 = vshrl.u32 %v918, 7
      %v920 = vsub.s32 0, %v919
      %v921 = vrot.slane %v916, %v920
      %v922 = vlaneseq
      %v923 = vshrl.u32 %v922, 7
      %v924 = vsub.s32 1, %v923
      %v925 = vrot.slane %v916, %v924
      %v928 = vmul.f32 %v807, %v921
      %v929 = vmul.f32 %v808, %v925
      %v930 = vmul.f32 %v810, %v921
      %v931 = vmul.f32 %v811, %v925
      %v932 = vld [vmem:[#allocation2 + $0x8] sm:$0xff]
      %v933 = vld [vmem:[#allocation2 + $0x10] sm:$0xff]
      %v934 = vld [vmem:[#allocation2 + $0x18] sm:$0xff]
      %v935 = vld [vmem:[#allocation2 + $0x28] sm:$0xff]
      %v936 = vld [vmem:[#allocation2 + $0x30] sm:$0xff]
      %v937 = vld [vmem:[#allocation2 + $0x38] sm:$0xff]
      %s938 = scalar_lea.vmem %s8, 10
      %v939 = vld [vmem:[%s938] sm:$0x3]
      %v941 = vlaneseq
      %v942 = vshrl.u32 %v941, 7
      %v943 = vsub.s32 0, %v942
      %v944 = vrot.slane %v939, %v943
      %v945 = vlaneseq
      %v946 = vshrl.u32 %v945, 7
      %v947 = vsub.s32 1, %v946
      %v948 = vrot.slane %v939, %v947
      %949 = vrot.lane.b32.xlu0 %v944, 1
      %v950 = vpop.permute.xlu0 %949
      %951 = vrot.lane.b32.xlu0 %v948, 1
      %v952 = vpop.permute.xlu0 %951
      %vm953 = vcmask 7168
      %v954 = vsel %vm953, %v950, %v952
      %v958 = vmul.f32 %v932, %v950
      %v959 = vmul.f32 %v933, %v954
      %v960 = vmul.f32 %v934, %v952
      %v961 = vmul.f32 %v935, %v950
      %v962 = vmul.f32 %v936, %v954
      %v963 = vmul.f32 %v937, %v952
      %s964 = scalar_lea.vmem %s8, 12
      %v965 = vld [vmem:[%s964] sm:$0x3]
      %v967 = vlaneseq
      %v968 = vshrl.u32 %v967, 7
      %v969 = vsub.s32 0, %v968
      %v970 = vrot.slane %v965, %v969
      %v971 = vlaneseq
      %v972 = vshrl.u32 %v971, 7
      %v973 = vsub.s32 1, %v972
      %v974 = vrot.slane %v965, %v973
      %975 = vrot.lane.b32.xlu0 %v970, 15
      %v976 = vpop.permute.xlu0 %975
      %977 = vrot.lane.b32.xlu0 %v974, 15
      %v978 = vpop.permute.xlu0 %977
      %vm979 = vcmask 121856
      %v980 = vsel %vm979, %v976, %v978
      %v984 = vmul.f32 %v932, %v976
      %v985 = vmul.f32 %v933, %v980
      %v986 = vmul.f32 %v934, %v978
      %v987 = vmul.f32 %v935, %v976
      %v988 = vmul.f32 %v936, %v980
      %v989 = vmul.f32 %v937, %v978
      %s990 = scalar_lea.vmem %s8, 14
      %v991 = vld [vmem:[%s990] sm:$0x3]
      %v993 = vlaneseq
      %v994 = vshrl.u32 %v993, 7
      %v995 = vsub.s32 0, %v994
      %v996 = vrot.slane %v991, %v995
      %v997 = vlaneseq
      %v998 = vshrl.u32 %v997, 7
      %v999 = vsub.s32 1, %v998
      %v1000 = vrot.slane %v991, %v999
      %1001 = vrot.lane.b32.xlu0 %v996, 16
      %v1002 = vpop.permute.xlu0 %1001
      %1003 = vrot.lane.b32.xlu0 %v1000, 16
      %v1004 = vpop.permute.xlu0 %1003
      %v1005 = vsel %vm518, %v1002, %v1004
      %v1009 = vmul.f32 %v932, %v1002
      %v1010 = vmul.f32 %v933, %v1005
      %v1011 = vmul.f32 %v934, %v1004
      %v1012 = vmul.f32 %v935, %v1002
      %v1013 = vmul.f32 %v936, %v1005
      %v1014 = vmul.f32 %v937, %v1004
      %s1015 = scalar_lea.vmem %s8, 16
      %v1016 = vld [vmem:[%s1015] sm:$0x3]
      %v1018 = vlaneseq
      %v1019 = vshrl.u32 %v1018, 7
      %v1020 = vsub.s32 0, %v1019
      %v1021 = vrot.slane %v1016, %v1020
      %v1022 = vlaneseq
      %v1023 = vshrl.u32 %v1022, 7
      %v1024 = vsub.s32 1, %v1023
      %v1025 = vrot.slane %v1016, %v1024
      %1026 = vrot.lane.b32.xlu0 %v1021, 17
      %v1027 = vpop.permute.xlu0 %1026
      %1028 = vrot.lane.b32.xlu0 %v1025, 17
      %v1029 = vpop.permute.xlu0 %1028
      %vm1030 = vcmask 138240
      %v1031 = vsel %vm1030, %v1027, %v1029
      %v1035 = vmul.f32 %v932, %v1027
      %v1036 = vmul.f32 %v933, %v1031
      %v1037 = vmul.f32 %v934, %v1029
      %v1038 = vmul.f32 %v935, %v1027
      %v1039 = vmul.f32 %v936, %v1031
      %v1040 = vmul.f32 %v937, %v1029
      %1047 = vrot.lane.b32.xlu0 %v857, 127
      %v1048 = vpop.permute.xlu0 %1047
      %1049 = vrot.lane.b32.xlu0 %v858, 127
      %v1050 = vpop.permute.xlu0 %1049
      %1051 = vrot.lane.b32.xlu0 %v859, 127
      %v1052 = vpop.permute.xlu0 %1051
      %1053 = vrot.lane.b32.xlu0 %v860, 127
      %v1054 = vpop.permute.xlu0 %1053
      %1055 = vrot.lane.b32.xlu0 %v861, 127
      %v1056 = vpop.permute.xlu0 %1055
      %1057 = vrot.lane.b32.xlu0 %v862, 127
      %v1058 = vpop.permute.xlu0 %1057
      %v1059 = vsel %vm904, %v1048, %v1050
      %v1060 = vsel %vm904, %v1050, %v1052
      %v1061 = vsel %vm904, %v1054, %v1056
      %v1062 = vsel %vm904, %v1056, %v1058
      %1069 = vrot.lane.b32.xlu0 %v883, 126
      %v1070 = vpop.permute.xlu0 %1069
      %1071 = vrot.lane.b32.xlu0 %v884, 126
      %v1072 = vpop.permute.xlu0 %1071
      %1073 = vrot.lane.b32.xlu0 %v885, 126
      %v1074 = vpop.permute.xlu0 %1073
      %1075 = vrot.lane.b32.xlu0 %v886, 126
      %v1076 = vpop.permute.xlu0 %1075
      %1077 = vrot.lane.b32.xlu0 %v887, 126
      %v1078 = vpop.permute.xlu0 %1077
      %1079 = vrot.lane.b32.xlu0 %v888, 126
      %v1080 = vpop.permute.xlu0 %1079
      %vm1081 = vcmask 1031168
      %v1082 = vsel %vm1081, %v1070, %v1072
      %v1083 = vsel %vm1081, %v1072, %v1074
      %v1084 = vsel %vm1081, %v1076, %v1078
      %v1085 = vsel %vm1081, %v1078, %v1080
      %1092 = vrot.lane.b32.xlu0 %v909, 112
      %v1093 = vpop.permute.xlu0 %1092
      %1094 = vrot.lane.b32.xlu0 %v910, 112
      %v1095 = vpop.permute.xlu0 %1094
      %1096 = vrot.lane.b32.xlu0 %v911, 112
      %v1097 = vpop.permute.xlu0 %1096
      %1098 = vrot.lane.b32.xlu0 %v912, 112
      %v1099 = vpop.permute.xlu0 %1098
      %1100 = vrot.lane.b32.xlu0 %v913, 112
      %v1101 = vpop.permute.xlu0 %1100
      %1102 = vrot.lane.b32.xlu0 %v914, 112
      %v1103 = vpop.permute.xlu0 %1102
      %v1104 = vsel %vm852, %v1093, %v1095
      %v1105 = vsel %vm852, %v1095, %v1097
      %v1106 = vsel %vm852, %v1099, %v1101
      %v1107 = vsel %vm852, %v1101, %v1103
      %1112 = vrot.lane.b32.xlu0 %v928, 111
      %v1113 = vpop.permute.xlu0 %1112
      %1114 = vrot.lane.b32.xlu0 %v929, 111
      %v1115 = vpop.permute.xlu0 %1114
      %1116 = vrot.lane.b32.xlu0 %v930, 111
      %v1117 = vpop.permute.xlu0 %1116
      %1118 = vrot.lane.b32.xlu0 %v931, 111
      %v1119 = vpop.permute.xlu0 %1118
      %v1120 = vsel %vm826, %v1113, %v1115
      %v1121 = vsel %vm826, %v1117, %v1119
      %1128 = vrot.lane.b32.xlu0 %v958, 110
      %v1129 = vpop.permute.xlu0 %1128
      %1130 = vrot.lane.b32.xlu0 %v959, 110
      %v1131 = vpop.permute.xlu0 %1130
      %1132 = vrot.lane.b32.xlu0 %v960, 110
      %v1133 = vpop.permute.xlu0 %1132
      %1134 = vrot.lane.b32.xlu0 %v961, 110
      %v1135 = vpop.permute.xlu0 %1134
      %1136 = vrot.lane.b32.xlu0 %v962, 110
      %v1137 = vpop.permute.xlu0 %1136
      %1138 = vrot.lane.b32.xlu0 %v963, 110
      %v1139 = vpop.permute.xlu0 %1138
      %vm1140 = vcmask 900096
      %v1141 = vsel %vm1140, %v1129, %v1131
      %v1142 = vsel %vm1140, %v1131, %v1133
      %v1143 = vsel %vm1140, %v1135, %v1137
      %v1144 = vsel %vm1140, %v1137, %v1139
      %1151 = vrot.lane.b32.xlu0 %v984, 96
      %v1152 = vpop.permute.xlu0 %1151
      %1153 = vrot.lane.b32.xlu0 %v985, 96
      %v1154 = vpop.permute.xlu0 %1153
      %1155 = vrot.lane.b32.xlu0 %v986, 96
      %v1156 = vpop.permute.xlu0 %1155
      %1157 = vrot.lane.b32.xlu0 %v987, 96
      %v1158 = vpop.permute.xlu0 %1157
      %1159 = vrot.lane.b32.xlu0 %v988, 96
      %v1160 = vpop.permute.xlu0 %1159
      %1161 = vrot.lane.b32.xlu0 %v989, 96
      %v1162 = vpop.permute.xlu0 %1161
      %vm1163 = vcmask 785408
      %v1164 = vsel %vm1163, %v1152, %v1154
      %v1165 = vsel %vm1163, %v1154, %v1156
      %v1166 = vsel %vm1163, %v1158, %v1160
      %v1167 = vsel %vm1163, %v1160, %v1162
      %1174 = vrot.lane.b32.xlu0 %v1009, 95
      %v1175 = vpop.permute.xlu0 %1174
      %1176 = vrot.lane.b32.xlu0 %v1010, 95
      %v1177 = vpop.permute.xlu0 %1176
      %1178 = vrot.lane.b32.xlu0 %v1011, 95
      %v1179 = vpop.permute.xlu0 %1178
      %1180 = vrot.lane.b32.xlu0 %v1012, 95
      %v1181 = vpop.permute.xlu0 %1180
      %1182 = vrot.lane.b32.xlu0 %v1013, 95
      %v1183 = vpop.permute.xlu0 %1182
      %1184 = vrot.lane.b32.xlu0 %v1014, 95
      %v1185 = vpop.permute.xlu0 %1184
      %vm1186 = vcmask 777216
      %v1187 = vsel %vm1186, %v1175, %v1177
      %v1188 = vsel %vm1186, %v1177, %v1179
      %v1189 = vsel %vm1186, %v1181, %v1183
      %v1190 = vsel %vm1186, %v1183, %v1185
      %1197 = vrot.lane.b32.xlu0 %v1035, 94
      %v1198 = vpop.permute.xlu0 %1197
      %1199 = vrot.lane.b32.xlu0 %v1036, 94
      %v1200 = vpop.permute.xlu0 %1199
      %1201 = vrot.lane.b32.xlu0 %v1037, 94
      %v1202 = vpop.permute.xlu0 %1201
      %1203 = vrot.lane.b32.xlu0 %v1038, 94
      %v1204 = vpop.permute.xlu0 %1203
      %1205 = vrot.lane.b32.xlu0 %v1039, 94
      %v1206 = vpop.permute.xlu0 %1205
      %1207 = vrot.lane.b32.xlu0 %v1040, 94
      %v1208 = vpop.permute.xlu0 %1207
      %vm1209 = vcmask 769024
      %v1210 = vsel %vm1209, %v1198, %v1200
      %v1211 = vsel %vm1209, %v1200, %v1202
      %v1212 = vsel %vm1209, %v1204, %v1206
      %v1213 = vsel %vm1209, %v1206, %v1208
      %v1214 = vld [vmem:[%s7] sm:$0xf]
      %v1217 = vunpack.c.l.s4 1983009808
      %v1218 = vunpack.c.0.s8 %v1217
      %v1219 = vlaneseq
      %v1220 = vshrl.u32 %v1219, 7
      %v1221 = vsub.s32 %v1218, %v1220
      %v1222 = vrot.slane %v1214, %v1221
      %v1223 = vcombine.high %v1222, %v1222
      %1231 = vrot.lane.b32.xlu0 %v831, 17
      %v1232 = vpop.permute.xlu0 %1231
      %1233 = vrot.lane.b32.xlu0 %v832, 17
      %v1234 = vpop.permute.xlu0 %1233
      %1235 = vrot.lane.b32.xlu0 %v833, 17
      %v1236 = vpop.permute.xlu0 %1235
      %1237 = vrot.lane.b32.xlu0 %v834, 17
      %v1238 = vpop.permute.xlu0 %1237
      %1239 = vrot.lane.b32.xlu0 %v835, 17
      %v1240 = vpop.permute.xlu0 %1239
      %1241 = vrot.lane.b32.xlu0 %v836, 17
      %v1242 = vpop.permute.xlu0 %1241
      %1243 = vrot.lane.b32.xlu0 %v1059, 17
      %v1244 = vpop.permute.xlu0 %1243
      %1245 = vrot.lane.b32.xlu0 %v1060, 17
      %v1246 = vpop.permute.xlu0 %1245
      %1247 = vrot.lane.b32.xlu0 %v1052, 17
      %v1248 = vpop.permute.xlu0 %1247
      %1249 = vrot.lane.b32.xlu0 %v1061, 17
      %v1250 = vpop.permute.xlu0 %1249
      %1251 = vrot.lane.b32.xlu0 %v1062, 17
      %v1252 = vpop.permute.xlu0 %1251
      %1253 = vrot.lane.b32.xlu0 %v1058, 17
      %v1254 = vpop.permute.xlu0 %1253
      %1255 = vrot.lane.b32.xlu0 %v1082, 17
      %v1256 = vpop.permute.xlu0 %1255
      %1257 = vrot.lane.b32.xlu0 %v1083, 17
      %v1258 = vpop.permute.xlu0 %1257
      %1259 = vrot.lane.b32.xlu0 %v1074, 17
      %v1260 = vpop.permute.xlu0 %1259
      %1261 = vrot.lane.b32.xlu0 %v1084, 17
      %v1262 = vpop.permute.xlu0 %1261
      %1263 = vrot.lane.b32.xlu0 %v1085, 17
      %v1264 = vpop.permute.xlu0 %1263
      %1265 = vrot.lane.b32.xlu0 %v1080, 17
      %v1266 = vpop.permute.xlu0 %1265
      %1267 = vrot.lane.b32.xlu0 %v1104, 17
      %v1268 = vpop.permute.xlu0 %1267
      %1269 = vrot.lane.b32.xlu0 %v1105, 17
      %v1270 = vpop.permute.xlu0 %1269
      %1271 = vrot.lane.b32.xlu0 %v1097, 17
      %v1272 = vpop.permute.xlu0 %1271
      %1273 = vrot.lane.b32.xlu0 %v1106, 17
      %v1274 = vpop.permute.xlu0 %1273
      %1275 = vrot.lane.b32.xlu0 %v1107, 17
      %v1276 = vpop.permute.xlu0 %1275
      %1277 = vrot.lane.b32.xlu0 %v1103, 17
      %v1278 = vpop.permute.xlu0 %1277
      %1279 = vrot.lane.b32.xlu0 %v1113, 17
      %v1280 = vpop.permute.xlu0 %1279
      %1281 = vrot.lane.b32.xlu0 %v1120, 17
      %v1282 = vpop.permute.xlu0 %1281
      %1283 = vrot.lane.b32.xlu0 %v1115, 17
      %v1284 = vpop.permute.xlu0 %1283
      %1285 = vrot.lane.b32.xlu0 %v1117, 17
      %v1286 = vpop.permute.xlu0 %1285
      %1287 = vrot.lane.b32.xlu0 %v1121, 17
      %v1288 = vpop.permute.xlu0 %1287
      %1289 = vrot.lane.b32.xlu0 %v1119, 17
      %v1290 = vpop.permute.xlu0 %1289
      %1291 = vrot.lane.b32.xlu0 %v1129, 17
      %v1292 = vpop.permute.xlu0 %1291
      %1293 = vrot.lane.b32.xlu0 %v1141, 17
      %v1294 = vpop.permute.xlu0 %1293
      %1295 = vrot.lane.b32.xlu0 %v1142, 17
      %v1296 = vpop.permute.xlu0 %1295
      %1297 = vrot.lane.b32.xlu0 %v1135, 17
      %v1298 = vpop.permute.xlu0 %1297
      %1299 = vrot.lane.b32.xlu0 %v1143, 17
      %v1300 = vpop.permute.xlu0 %1299
      %1301 = vrot.lane.b32.xlu0 %v1144, 17
      %v1302 = vpop.permute.xlu0 %1301
      %1303 = vrot.lane.b32.xlu0 %v1152, 17
      %v1304 = vpop.permute.xlu0 %1303
      %1305 = vrot.lane.b32.xlu0 %v1164, 17
      %v1306 = vpop.permute.xlu0 %1305
      %1307 = vrot.lane.b32.xlu0 %v1165, 17
      %v1308 = vpop.permute.xlu0 %1307
      %1309 = vrot.lane.b32.xlu0 %v1158, 17
      %v1310 = vpop.permute.xlu0 %1309
      %1311 = vrot.lane.b32.xlu0 %v1166, 17
      %v1312 = vpop.permute.xlu0 %1311
      %1313 = vrot.lane.b32.xlu0 %v1167, 17
      %v1314 = vpop.permute.xlu0 %1313
      %1315 = vrot.lane.b32.xlu0 %v1175, 17
      %v1316 = vpop.permute.xlu0 %1315
      %1317 = vrot.lane.b32.xlu0 %v1187, 17
      %v1318 = vpop.permute.xlu0 %1317
      %1319 = vrot.lane.b32.xlu0 %v1188, 17
      %v1320 = vpop.permute.xlu0 %1319
      %1321 = vrot.lane.b32.xlu0 %v1181, 17
      %v1322 = vpop.permute.xlu0 %1321
      %1323 = vrot.lane.b32.xlu0 %v1189, 17
      %v1324 = vpop.permute.xlu0 %1323
      %1325 = vrot.lane.b32.xlu0 %v1190, 17
      %v1326 = vpop.permute.xlu0 %1325
      %1327 = vrot.lane.b32.xlu0 %v1198, 17
      %v1328 = vpop.permute.xlu0 %1327
      %1329 = vrot.lane.b32.xlu0 %v1210, 17
      %v1330 = vpop.permute.xlu0 %1329
      %1331 = vrot.lane.b32.xlu0 %v1211, 17
      %v1332 = vpop.permute.xlu0 %1331
      %1333 = vrot.lane.b32.xlu0 %v1204, 17
      %v1334 = vpop.permute.xlu0 %1333
      %1335 = vrot.lane.b32.xlu0 %v1212, 17
      %v1336 = vpop.permute.xlu0 %1335
      %1337 = vrot.lane.b32.xlu0 %v1213, 17
      %v1338 = vpop.permute.xlu0 %1337
      %v1339 = vsel %vm1030, %v1232, %v1234
      %v1340 = vsel %vm1030, %v1234, %v1236
      %v1341 = vsel %vm1030, %v1238, %v1240
      %v1342 = vsel %vm1030, %v1240, %v1242
      %v1343 = vsel %vm1030, %v1244, %v1246
      %v1344 = vsel %vm1030, %v1246, %v1248
      %v1345 = vsel %vm1030, %v1250, %v1252
      %v1346 = vsel %vm1030, %v1252, %v1254
      %v1347 = vsel %vm1030, %v1256, %v1258
      %v1348 = vsel %vm1030, %v1258, %v1260
      %v1349 = vsel %vm1030, %v1262, %v1264
      %v1350 = vsel %vm1030, %v1264, %v1266
      %v1351 = vsel %vm1030, %v1268, %v1270
      %v1352 = vsel %vm1030, %v1270, %v1272
      %v1353 = vsel %vm1030, %v1274, %v1276
      %v1354 = vsel %vm1030, %v1276, %v1278
      %v1355 = vsel %vm1030, %v1280, %v1282
      %v1356 = vsel %vm1030, %v1282, %v1284
      %v1357 = vsel %vm1030, %v1286, %v1288
      %v1358 = vsel %vm1030, %v1288, %v1290
      %v1359 = vsel %vm1030, %v1292, %v1294
      %v1360 = vsel %vm1030, %v1294, %v1296
      %v1361 = vsel %vm1030, %v1298, %v1300
      %v1362 = vsel %vm1030, %v1300, %v1302
      %v1363 = vsel %vm1030, %v1304, %v1306
      %v1364 = vsel %vm1030, %v1306, %v1308
      %v1365 = vsel %vm1030, %v1310, %v1312
      %v1366 = vsel %vm1030, %v1312, %v1314
      %v1367 = vsel %vm1030, %v1316, %v1318
      %v1368 = vsel %vm1030, %v1318, %v1320
      %v1369 = vsel %vm1030, %v1322, %v1324
      %v1370 = vsel %vm1030, %v1324, %v1326
      %v1371 = vsel %vm1030, %v1328, %v1330
      %v1372 = vsel %vm1030, %v1330, %v1332
      %v1373 = vsel %vm1030, %v1334, %v1336
      %v1374 = vsel %vm1030, %v1336, %v1338
      %v1411 = vsel %vm518, %v1223, 0
      %1413 = vmatprep.subr.mxu0 %v1340
      %1414 = vmatpush1.msra.mxu0 %v1339
      %1415 = vmatprep.subr.mxu0 %v1342
      %1416 = vmatpush1.msra.mxu0 %v1341
      %1417 = vmatprep.subr.mxu0 %v1344
      %1418 = vmatpush1.msra.mxu0 %v1343
      %1419 = vmatprep.subr.mxu0 %v1346
      %1420 = vmatpush1.msra.mxu0 %v1345
      %1421 = vmatprep.subr.mxu0 %v1348
      %1422 = vmatpush1.msra.mxu0 %v1347
      %1423 = vmatprep.subr.mxu0 %v1350
      %1424 = vmatpush1.msra.mxu0 %v1349
      %1425 = vmatprep.subr.mxu0 %v1352
      %1426 = vmatpush1.msra.mxu0 %v1351
      %1427 = vmatprep.subr.mxu0 %v1354
      %1428 = vmatpush1.msra.mxu0 %v1353
      %1429 = vmatprep.subr.mxu0 %v1356
      %1430 = vmatpush1.msra.mxu0 %v1355
      %1431 = vmatprep.subr.mxu0 %v1358
      %1432 = vmatpush1.msra.mxu0 %v1357
      %1433 = vmatprep.subr.mxu0 %v1360
      %1434 = vmatpush1.msra.mxu0 %v1359
      %1435 = vmatprep.subr.mxu0 %v1362
      %1436 = vmatpush1.msra.mxu0 %v1361
      %1437 = vmatprep.subr.mxu0 %v1364
      %1438 = vmatpush1.msra.mxu0 %v1363
      %1439 = vmatprep.subr.mxu0 %v1366
      %1440 = vmatpush1.msra.mxu0 %v1365
      %1441 = vmatprep.subr.mxu0 %v1368
      %1442 = vmatpush1.msra.mxu0 %v1367
      %1443 = vmatprep.subr.mxu0 %v1370
      %1444 = vmatpush1.msra.mxu0 %v1369
      %1445 = vmatprep.subr.mxu0 %v1372
      %1446 = vmatpush1.msra.mxu0 %v1371
      %1447 = vmatprep.subr.mxu0 %v1374
      %1448 = vmatpush1.msra.mxu0 %v1373
      %1449 = vmatprep.subr.mxu0 0.0
      %1450 = vmatpush1.msra.mxu0 0.0
      %1451 = vmatprep.subr.mxu0 0.0
      %1452 = vmatpush1.msra.mxu0 0.0
      %1453 = vmatprep.subr.mxu0 0.0
      %1454 = vmatpush1.msra.mxu0 0.0
      %1455 = vmatprep.subr.mxu0 0.0
      %1456 = vmatpush1.msra.mxu0 0.0
      %1457 = vmatprep.subr.mxu0 0.0
      %1458 = vmatpush1.msra.mxu0 0.0
      %1459 = vmatprep.subr.mxu0 0.0
      %1460 = vmatpush1.msra.mxu0 0.0
      %1461 = vmatprep.subr.mxu0 0.0
      %1462 = vmatpush1.msra.mxu0 0.0
      %1463 = vmatprep.subr.mxu0 0.0
      %1464 = vmatpush1.msra.mxu0 0.0
      %1465 = vmatprep.subr.mxu0 0.0
      %1466 = vmatpush1.msra.mxu0 0.0
      %1467 = vmatprep.subr.mxu0 0.0
      %1468 = vmatpush1.msra.mxu0 0.0
      %1469 = vmatprep.subr.mxu0 0.0
      %1470 = vmatpush1.msra.mxu0 0.0
      %1471 = vmatprep.subr.mxu0 0.0
      %1472 = vmatpush1.msra.mxu0 0.0
      %1473 = vmatprep.subr.mxu0 0.0
      %1474 = vmatpush1.msra.mxu0 0.0
      %1475 = vmatprep.subr.mxu0 0.0
      %1476 = vmatpush1.msra.mxu0 0.0
      %1477 = vmatprep.mubr.f32.mxu0 %v1411
      %1478 = vmatmul.mubr.f32.gmra.mrb[0].mxu0 %v1222
      %v1479 = vpop.f32.mrb[0].mxu0
      %v1480 = vadd.f32 0.0, %v1479
      %v1481 = vpop.f32.mrb[0].mxu0
      %v1482 = vadd.f32 0.0, %v1481
      %1483 = vdwg.mxu0
      %v1484 = vld [vmem:[%s9] sm:$0x3]
      %v1485 = vmul.f32 %v1480, 0.46875
      %v1486 = vmul.f32 %v1482, 0.46875
      %v1489 = vcombine.low %v1485, %v1486
      %v1491 = vunpack.c.l.s4 1966171168
      %v1492 = vunpack.c.0.s8 %v1491
      %v1493 = vlaneseq
      %v1494 = vshrl.u32 %v1493, 7
      %v1495 = vsub.s32 %v1492, %v1494
      %v1496 = vrot.slane %v1489, %v1495
      %v1498 = vunpack.c.l.s4 1966171168
      %v1499 = vunpack.c.0.s8 %v1498
      %v1500 = vlaneseq
      %v1501 = vshrl.u32 %v1500, 7
      %v1502 = vsub.s32 %v1499, %v1501
      %v1503 = vrot.slane %v1496, %v1502
      %v1505 = vadd.f32 %v1484, %v1503
      %v1506 = vld [vmem:[%s10] sm:$0x3]
      %v1507 = vcombine.high %v1496, %v1496
      %v1509 = vunpack.c.l.s4 1966171168
      %v1510 = vunpack.c.0.s8 %v1509
      %v1511 = vlaneseq
      %v1512 = vshrl.u32 %v1511, 7
      %v1513 = vsub.s32 %v1510, %v1512
      %v1514 = vrot.slane %v1507, %v1513
      %v1516 = vadd.f32 %v1506, %v1514
      %v1517 = vfloor.f32 %v1505
      %v1518 = vfloor.f32 %v1516
      %v1519 = vsub.f32 %v1505, %v1517
      %v1520 = vsub.f32 %v1516, %v1518
      %v1521 = vlaneseq
      %v1522 = vshrl.u32 %v1521, 7
      %v1523 = vadd.s32 %v1522, 8
      %v1524 = vadd.s32 %v1522, 16
      %v1525 = vadd.s32 %v1522, 24
      %v1526 = vadd.s32 %v1522, 32
      %v1527 = vadd.s32 %v1522, 40
      %v1528 = vadd.s32 %v1522, 48
      %v1529 = vadd.s32 %v1522, 56
      %v1530 = vadd.s32 %v1522, 64
      %v1531 = vadd.s32 %v1522, 72
      %v1532 = vadd.s32 %v1522, 80
      %v1533 = vadd.s32 %v1522, 88
      %v1534 = vadd.s32 %v1522, 96
      %v1535 = vadd.s32 %v1522, 104
      %v1536 = vadd.s32 %v1522, 112
      %v1537 = vadd.s32 %v1522, 120
      %v1538 = vadd.s32 %v1522, 128
      %v1539 = vadd.s32 %v1522, 136
      %v1540 = vadd.s32 %v1522, 144
      %v1541 = vadd.s32 %v1522, 152
      %v1542 = vadd.s32 %v1522, 160
      %v1543 = vadd.s32 %v1522, 168
      %v1544 = vadd.s32 %v1522, 176
      %v1545 = vadd.s32 %v1522, 184
      %v1546 = vadd.s32 %v1522, 192
      %v1547 = vadd.s32 %v1522, 200
      %v1548 = vadd.s32 %v1522, 208
      %v1549 = vadd.s32 %v1522, 216
      %v1550 = vadd.s32 %v1522, 224
      %v1551 = vadd.s32 %v1522, 232
      %v1552 = vadd.s32 %v1522, 240
      %v1553 = vadd.s32 %v1522, 248
      %v1554 = vsub.f32 1.0, %v1519
      %v1555 = vsub.f32 1.0, %v1520
      %v1556 = vmul.f32 %v1554, %v1555
      %v1557 = vmul.f32 %v1519, %v1555
      %v1558 = vmul.f32 %v1554, %v1520
      %v1559 = vmul.f32 %v1519, %v1520
      %v1560 = vadd.f32 %v1517, 0.0
      %v1561 = vadd.f32 %v1518, 0.0
      %vm1562 = vcmp.ge.f32.partialorder %v1560, 0.0
      %vm1563 = vcmp.le.f32.partialorder %v1560, 15.0
      %vm1564 = vmand %vm1562, %vm1563
      %vm1565 = vcmp.ge.f32.partialorder %v1561, 0.0
      %vm1566 = vmand %vm1564, %vm1565
      %vm1567 = vcmp.le.f32.partialorder %v1561, 15.0
      %vm1568 = vmand %vm1566, %vm1567
      %v1569 = vsel %vm1568, 1, 0
      %v1570 = vcvt.s32.f32 %v1569
      %v1571 = vcvt.f32.s32.to.zero.pseudo %v1561
      %v1572 = vmul.u32 %v1571, 16
      %v1573 = vcvt.f32.s32.to.zero.pseudo %v1560
      %v1574 = vadd.s32 %v1572, %v1573
      %v1575 = vlaneseq
      %v1576 = vshrl.u32 %v1575, 7
      %v1577 = vsub.s32 0, %v1576
      %v1578 = vrot.slane %v1574, %v1577
      %v1579 = vlaneseq
      %v1580 = vshrl.u32 %v1579, 7
      %v1581 = vsub.s32 1, %v1580
      %v1582 = vrot.slane %v1574, %v1581
      %vm1583 = vcmp.eq.s32.totalorder %v1522, %v1578
      %vm1584 = vcmp.eq.s32.totalorder %v1522, %v1582
      %vm1585 = vcmp.eq.s32.totalorder %v1523, %v1578
      %vm1586 = vcmp.eq.s32.totalorder %v1523, %v1582
      %vm1587 = vcmp.eq.s32.totalorder %v1524, %v1578
      %vm1588 = vcmp.eq.s32.totalorder %v1524, %v1582
      %vm1589 = vcmp.eq.s32.totalorder %v1525, %v1578
      %vm1590 = vcmp.eq.s32.totalorder %v1525, %v1582
      %vm1591 = vcmp.eq.s32.totalorder %v1526, %v1578
      %vm1592 = vcmp.eq.s32.totalorder %v1526, %v1582
      %vm1593 = vcmp.eq.s32.totalorder %v1527, %v1578
      %vm1594 = vcmp.eq.s32.totalorder %v1527, %v1582
      %vm1595 = vcmp.eq.s32.totalorder %v1528, %v1578
      %vm1596 = vcmp.eq.s32.totalorder %v1528, %v1582
      %vm1597 = vcmp.eq.s32.totalorder %v1529, %v1578
      %vm1598 = vcmp.eq.s32.totalorder %v1529, %v1582
      %vm1599 = vcmp.eq.s32.totalorder %v1530, %v1578
      %vm1600 = vcmp.eq.s32.totalorder %v1530, %v1582
      %vm1601 = vcmp.eq.s32.totalorder %v1531, %v1578
      %vm1602 = vcmp.eq.s32.totalorder %v1531, %v1582
      %vm1603 = vcmp.eq.s32.totalorder %v1532, %v1578
      %vm1604 = vcmp.eq.s32.totalorder %v1532, %v1582
      %vm1605 = vcmp.eq.s32.totalorder %v1533, %v1578
      %vm1606 = vcmp.eq.s32.totalorder %v1533, %v1582
      %vm1607 = vcmp.eq.s32.totalorder %v1534, %v1578
      %vm1608 = vcmp.eq.s32.totalorder %v1534, %v1582
      %vm1609 = vcmp.eq.s32.totalorder %v1535, %v1578
      %vm1610 = vcmp.eq.s32.totalorder %v1535, %v1582
      %vm1611 = vcmp.eq.s32.totalorder %v1536, %v1578
      %vm1612 = vcmp.eq.s32.totalorder %v1536, %v1582
      %vm1613 = vcmp.eq.s32.totalorder %v1537, %v1578
      %vm1614 = vcmp.eq.s32.totalorder %v1537, %v1582
      %vm1615 = vcmp.eq.s32.totalorder %v1538, %v1578
      %vm1616 = vcmp.eq.s32.totalorder %v1538, %v1582
      %vm1617 = vcmp.eq.s32.totalorder %v1539, %v1578
      %vm1618 = vcmp.eq.s32.totalorder %v1539, %v1582
      %vm1619 = vcmp.eq.s32.totalorder %v1540, %v1578
      %vm1620 = vcmp.eq.s32.totalorder %v1540, %v1582
      %vm1621 = vcmp.eq.s32.totalorder %v1541, %v1578
      %vm1622 = vcmp.eq.s32.totalorder %v1541, %v1582
      %vm1623 = vcmp.eq.s32.totalorder %v1542, %v1578
      %vm1624 = vcmp.eq.s32.totalorder %v1542, %v1582
      %vm1625 = vcmp.eq.s32.totalorder %v1543, %v1578
      %vm1626 = vcmp.eq.s32.totalorder %v1543, %v1582
      %vm1627 = vcmp.eq.s32.totalorder %v1544, %v1578
      %vm1628 = vcmp.eq.s32.totalorder %v1544, %v1582
      %vm1629 = vcmp.eq.s32.totalorder %v1545, %v1578
      %vm1630 = vcmp.eq.s32.totalorder %v1545, %v1582
      %vm1631 = vcmp.eq.s32.totalorder %v1546, %v1578
      %vm1632 = vcmp.eq.s32.totalorder %v1546, %v1582
      %vm1633 = vcmp.eq.s32.totalorder %v1547, %v1578
      %vm1634 = vcmp.eq.s32.totalorder %v1547, %v1582
      %vm1635 = vcmp.eq.s32.totalorder %v1548, %v1578
      %vm1636 = vcmp.eq.s32.totalorder %v1548, %v1582
      %vm1637 = vcmp.eq.s32.totalorder %v1549, %v1578
      %vm1638 = vcmp.eq.s32.totalorder %v1549, %v1582
      %vm1639 = vcmp.eq.s32.totalorder %v1550, %v1578
      %vm1640 = vcmp.eq.s32.totalorder %v1550, %v1582
      %vm1641 = vcmp.eq.s32.totalorder %v1551, %v1578
      %vm1642 = vcmp.eq.s32.totalorder %v1551, %v1582
      %vm1643 = vcmp.eq.s32.totalorder %v1552, %v1578
      %vm1644 = vcmp.eq.s32.totalorder %v1552, %v1582
      %vm1645 = vcmp.eq.s32.totalorder %v1553, %v1578
      %vm1646 = vcmp.eq.s32.totalorder %v1553, %v1582
      %v1647 = vsel %vm1583, 1, 0
      %v1648 = vsel %vm1584, 1, 0
      %v1649 = vsel %vm1585, 1, 0
      %v1650 = vsel %vm1586, 1, 0
      %v1651 = vsel %vm1587, 1, 0
      %v1652 = vsel %vm1588, 1, 0
      %v1653 = vsel %vm1589, 1, 0
      %v1654 = vsel %vm1590, 1, 0
      %v1655 = vsel %vm1591, 1, 0
      %v1656 = vsel %vm1592, 1, 0
      %v1657 = vsel %vm1593, 1, 0
      %v1658 = vsel %vm1594, 1, 0
      %v1659 = vsel %vm1595, 1, 0
      %v1660 = vsel %vm1596, 1, 0
      %v1661 = vsel %vm1597, 1, 0
      %v1662 = vsel %vm1598, 1, 0
      %v1663 = vsel %vm1599, 1, 0
      %v1664 = vsel %vm1600, 1, 0
      %v1665 = vsel %vm1601, 1, 0
      %v1666 = vsel %vm1602, 1, 0
      %v1667 = vsel %vm1603, 1, 0
      %v1668 = vsel %vm1604, 1, 0
      %v1669 = vsel %vm1605, 1, 0
      %v1670 = vsel %vm1606, 1, 0
      %v1671 = vsel %vm1607, 1, 0
      %v1672 = vsel %vm1608, 1, 0
      %v1673 = vsel %vm1609, 1, 0
      %v1674 = vsel %vm1610, 1, 0
      %v1675 = vsel %vm1611, 1, 0
      %v1676 = vsel %vm1612, 1, 0
      %v1677 = vsel %vm1613, 1, 0
      %v1678 = vsel %vm1614, 1, 0
      %v1679 = vsel %vm1615, 1, 0
      %v1680 = vsel %vm1616, 1, 0
      %v1681 = vsel %vm1617, 1, 0
      %v1682 = vsel %vm1618, 1, 0
      %v1683 = vsel %vm1619, 1, 0
      %v1684 = vsel %vm1620, 1, 0
      %v1685 = vsel %vm1621, 1, 0
      %v1686 = vsel %vm1622, 1, 0
      %v1687 = vsel %vm1623, 1, 0
      %v1688 = vsel %vm1624, 1, 0
      %v1689 = vsel %vm1625, 1, 0
      %v1690 = vsel %vm1626, 1, 0
      %v1691 = vsel %vm1627, 1, 0
      %v1692 = vsel %vm1628, 1, 0
      %v1693 = vsel %vm1629, 1, 0
      %v1694 = vsel %vm1630, 1, 0
      %v1695 = vsel %vm1631, 1, 0
      %v1696 = vsel %vm1632, 1, 0
      %v1697 = vsel %vm1633, 1, 0
      %v1698 = vsel %vm1634, 1, 0
      %v1699 = vsel %vm1635, 1, 0
      %v1700 = vsel %vm1636, 1, 0
      %v1701 = vsel %vm1637, 1, 0
      %v1702 = vsel %vm1638, 1, 0
      %v1703 = vsel %vm1639, 1, 0
      %v1704 = vsel %vm1640, 1, 0
      %v1705 = vsel %vm1641, 1, 0
      %v1706 = vsel %vm1642, 1, 0
      %v1707 = vsel %vm1643, 1, 0
      %v1708 = vsel %vm1644, 1, 0
      %v1709 = vsel %vm1645, 1, 0
      %v1710 = vsel %vm1646, 1, 0
      %v1711 = vcvt.s32.f32 %v1647
      %v1712 = vcvt.s32.f32 %v1648
      %v1713 = vcvt.s32.f32 %v1649
      %v1714 = vcvt.s32.f32 %v1650
      %v1715 = vcvt.s32.f32 %v1651
      %v1716 = vcvt.s32.f32 %v1652
      %v1717 = vcvt.s32.f32 %v1653
      %v1718 = vcvt.s32.f32 %v1654
      %v1719 = vcvt.s32.f32 %v1655
      %v1720 = vcvt.s32.f32 %v1656
      %v1721 = vcvt.s32.f32 %v1657
      %v1722 = vcvt.s32.f32 %v1658
      %v1723 = vcvt.s32.f32 %v1659
      %v1724 = vcvt.s32.f32 %v1660
      %v1725 = vcvt.s32.f32 %v1661
      %v1726 = vcvt.s32.f32 %v1662
      %v1727 = vcvt.s32.f32 %v1663
      %v1728 = vcvt.s32.f32 %v1664
      %v1729 = vcvt.s32.f32 %v1665
      %v1730 = vcvt.s32.f32 %v1666
      %v1731 = vcvt.s32.f32 %v1667
      %v1732 = vcvt.s32.f32 %v1668
      %v1733 = vcvt.s32.f32 %v1669
      %v1734 = vcvt.s32.f32 %v1670
      %v1735 = vcvt.s32.f32 %v1671
      %v1736 = vcvt.s32.f32 %v1672
      %v1737 = vcvt.s32.f32 %v1673
      %v1738 = vcvt.s32.f32 %v1674
      %v1739 = vcvt.s32.f32 %v1675
      %v1740 = vcvt.s32.f32 %v1676
      %v1741 = vcvt.s32.f32 %v1677
      %v1742 = vcvt.s32.f32 %v1678
      %v1743 = vcvt.s32.f32 %v1679
      %v1744 = vcvt.s32.f32 %v1680
      %v1745 = vcvt.s32.f32 %v1681
      %v1746 = vcvt.s32.f32 %v1682
      %v1747 = vcvt.s32.f32 %v1683
      %v1748 = vcvt.s32.f32 %v1684
      %v1749 = vcvt.s32.f32 %v1685
      %v1750 = vcvt.s32.f32 %v1686
      %v1751 = vcvt.s32.f32 %v1687
      %v1752 = vcvt.s32.f32 %v1688
      %v1753 = vcvt.s32.f32 %v1689
      %v1754 = vcvt.s32.f32 %v1690
      %v1755 = vcvt.s32.f32 %v1691
      %v1756 = vcvt.s32.f32 %v1692
      %v1757 = vcvt.s32.f32 %v1693
      %v1758 = vcvt.s32.f32 %v1694
      %v1759 = vcvt.s32.f32 %v1695
      %v1760 = vcvt.s32.f32 %v1696
      %v1761 = vcvt.s32.f32 %v1697
      %v1762 = vcvt.s32.f32 %v1698
      %v1763 = vcvt.s32.f32 %v1699
      %v1764 = vcvt.s32.f32 %v1700
      %v1765 = vcvt.s32.f32 %v1701
      %v1766 = vcvt.s32.f32 %v1702
      %v1767 = vcvt.s32.f32 %v1703
      %v1768 = vcvt.s32.f32 %v1704
      %v1769 = vcvt.s32.f32 %v1705
      %v1770 = vcvt.s32.f32 %v1706
      %v1771 = vcvt.s32.f32 %v1707
      %v1772 = vcvt.s32.f32 %v1708
      %v1773 = vcvt.s32.f32 %v1709
      %v1774 = vcvt.s32.f32 %v1710
      %v1775 = vmul.f32 %v1556, %v1570
      %v1777 = vlaneseq
      %v1778 = vshrl.u32 %v1777, 7
      %v1779 = vsub.s32 0, %v1778
      %v1780 = vrot.slane %v1775, %v1779
      %v1781 = vlaneseq
      %v1782 = vshrl.u32 %v1781, 7
      %v1783 = vsub.s32 1, %v1782
      %v1784 = vrot.slane %v1775, %v1783
      %v1787 = vmul.f32 %v1711, %v1780
      %v1788 = vmul.f32 %v1712, %v1784
      %v1789 = vmul.f32 %v1713, %v1780
      %v1790 = vmul.f32 %v1714, %v1784
      %v1791 = vmul.f32 %v1715, %v1780
      %v1792 = vmul.f32 %v1716, %v1784
      %v1793 = vmul.f32 %v1717, %v1780
      %v1794 = vmul.f32 %v1718, %v1784
      %v1795 = vmul.f32 %v1719, %v1780
      %v1796 = vmul.f32 %v1720, %v1784
      %v1797 = vmul.f32 %v1721, %v1780
      %v1798 = vmul.f32 %v1722, %v1784
      %v1799 = vmul.f32 %v1723, %v1780
      %v1800 = vmul.f32 %v1724, %v1784
      %v1801 = vmul.f32 %v1725, %v1780
      %v1802 = vmul.f32 %v1726, %v1784
      %v1803 = vmul.f32 %v1727, %v1780
      %v1804 = vmul.f32 %v1728, %v1784
      %v1805 = vmul.f32 %v1729, %v1780
      %v1806 = vmul.f32 %v1730, %v1784
      %v1807 = vmul.f32 %v1731, %v1780
      %v1808 = vmul.f32 %v1732, %v1784
      %v1809 = vmul.f32 %v1733, %v1780
      %v1810 = vmul.f32 %v1734, %v1784
      %v1811 = vmul.f32 %v1735, %v1780
      %v1812 = vmul.f32 %v1736, %v1784
      %v1813 = vmul.f32 %v1737, %v1780
      %v1814 = vmul.f32 %v1738, %v1784
      %v1815 = vmul.f32 %v1739, %v1780
      %v1816 = vmul.f32 %v1740, %v1784
      %v1817 = vmul.f32 %v1741, %v1780
      %v1818 = vmul.f32 %v1742, %v1784
      %v1819 = vmul.f32 %v1743, %v1780
      %v1820 = vmul.f32 %v1744, %v1784
      %v1821 = vmul.f32 %v1745, %v1780
      %v1822 = vmul.f32 %v1746, %v1784
      %v1823 = vmul.f32 %v1747, %v1780
      %v1824 = vmul.f32 %v1748, %v1784
      %v1825 = vmul.f32 %v1749, %v1780
      %v1826 = vmul.f32 %v1750, %v1784
      %v1827 = vmul.f32 %v1751, %v1780
      %v1828 = vmul.f32 %v1752, %v1784
      %v1829 = vmul.f32 %v1753, %v1780
      %v1830 = vmul.f32 %v1754, %v1784
      %v1831 = vmul.f32 %v1755, %v1780
      %v1832 = vmul.f32 %v1756, %v1784
      %v1833 = vmul.f32 %v1757, %v1780
      %v1834 = vmul.f32 %v1758, %v1784
      %v1835 = vmul.f32 %v1759, %v1780
      %v1836 = vmul.f32 %v1760, %v1784
      %v1837 = vmul.f32 %v1761, %v1780
      %v1838 = vmul.f32 %v1762, %v1784
      %v1839 = vmul.f32 %v1763, %v1780
      %v1840 = vmul.f32 %v1764, %v1784
      %v1841 = vmul.f32 %v1765, %v1780
      %v1842 = vmul.f32 %v1766, %v1784
      %v1843 = vmul.f32 %v1767, %v1780
      %v1844 = vmul.f32 %v1768, %v1784
      %v1845 = vmul.f32 %v1769, %v1780
      %v1846 = vmul.f32 %v1770, %v1784
      %v1847 = vmul.f32 %v1771, %v1780
      %v1848 = vmul.f32 %v1772, %v1784
      %v1849 = vmul.f32 %v1773, %v1780
      %v1850 = vmul.f32 %v1774, %v1784
      %v1851 = vadd.f32 %v1787, 0.0
      %v1852 = vadd.f32 %v1788, 0.0
      %v1853 = vadd.f32 %v1789, 0.0
      %v1854 = vadd.f32 %v1790, 0.0
      %v1855 = vadd.f32 %v1791, 0.0
      %v1856 = vadd.f32 %v1792, 0.0
      %v1857 = vadd.f32 %v1793, 0.0
      %v1858 = vadd.f32 %v1794, 0.0
      %v1859 = vadd.f32 %v1795, 0.0
      %v1860 = vadd.f32 %v1796, 0.0
      %v1861 = vadd.f32 %v1797, 0.0
      %v1862 = vadd.f32 %v1798, 0.0
      %v1863 = vadd.f32 %v1799, 0.0
      %v1864 = vadd.f32 %v1800, 0.0
      %v1865 = vadd.f32 %v1801, 0.0
      %v1866 = vadd.f32 %v1802, 0.0
      %v1867 = vadd.f32 %v1803, 0.0
      %v1868 = vadd.f32 %v1804, 0.0
      %v1869 = vadd.f32 %v1805, 0.0
      %v1870 = vadd.f32 %v1806, 0.0
      %v1871 = vadd.f32 %v1807, 0.0
      %v1872 = vadd.f32 %v1808, 0.0
      %v1873 = vadd.f32 %v1809, 0.0
      %v1874 = vadd.f32 %v1810, 0.0
      %v1875 = vadd.f32 %v1811, 0.0
      %v1876 = vadd.f32 %v1812, 0.0
      %v1877 = vadd.f32 %v1813, 0.0
      %v1878 = vadd.f32 %v1814, 0.0
      %v1879 = vadd.f32 %v1815, 0.0
      %v1880 = vadd.f32 %v1816, 0.0
      %v1881 = vadd.f32 %v1817, 0.0
      %v1882 = vadd.f32 %v1818, 0.0
      %v1883 = vadd.f32 %v1819, 0.0
      %v1884 = vadd.f32 %v1820, 0.0
      %v1885 = vadd.f32 %v1821, 0.0
      %v1886 = vadd.f32 %v1822, 0.0
      %v1887 = vadd.f32 %v1823, 0.0
      %v1888 = vadd.f32 %v1824, 0.0
      %v1889 = vadd.f32 %v1825, 0.0
      %v1890 = vadd.f32 %v1826, 0.0
      %v1891 = vadd.f32 %v1827, 0.0
      %v1892 = vadd.f32 %v1828, 0.0
      %v1893 = vadd.f32 %v1829, 0.0
      %v1894 = vadd.f32 %v1830, 0.0
      %v1895 = vadd.f32 %v1831, 0.0
      %v1896 = vadd.f32 %v1832, 0.0
      %v1897 = vadd.f32 %v1833, 0.0
      %v1898 = vadd.f32 %v1834, 0.0
      %v1899 = vadd.f32 %v1835, 0.0
      %v1900 = vadd.f32 %v1836, 0.0
      %v1901 = vadd.f32 %v1837, 0.0
      %v1902 = vadd.f32 %v1838, 0.0
      %v1903 = vadd.f32 %v1839, 0.0
      %v1904 = vadd.f32 %v1840, 0.0
      %v1905 = vadd.f32 %v1841, 0.0
      %v1906 = vadd.f32 %v1842, 0.0
      %v1907 = vadd.f32 %v1843, 0.0
      %v1908 = vadd.f32 %v1844, 0.0
      %v1909 = vadd.f32 %v1845, 0.0
      %v1910 = vadd.f32 %v1846, 0.0
      %v1911 = vadd.f32 %v1847, 0.0
      %v1912 = vadd.f32 %v1848, 0.0
      %v1913 = vadd.f32 %v1849, 0.0
      %v1914 = vadd.f32 %v1850, 0.0
      %v1915 = vadd.f32 %v1517, 1.0
      %vm1916 = vcmp.ge.f32.partialorder %v1915, 0.0
      %vm1917 = vcmp.le.f32.partialorder %v1915, 15.0
      %vm1918 = vmand %vm1916, %vm1917
      %vm1919 = vmand %vm1918, %vm1565
      %vm1920 = vmand %vm1919, %vm1567
      %v1921 = vsel %vm1920, 1, 0
      %v1922 = vcvt.s32.f32 %v1921
      %v1923 = vcvt.f32.s32.to.zero.pseudo %v1915
      %v1924 = vadd.s32 %v1572, %v1923
      %v1925 = vlaneseq
      %v1926 = vshrl.u32 %v1925, 7
      %v1927 = vsub.s32 0, %v1926
      %v1928 = vrot.slane %v1924, %v1927
      %v1929 = vlaneseq
      %v1930 = vshrl.u32 %v1929, 7
      %v1931 = vsub.s32 1, %v1930
      %v1932 = vrot.slane %v1924, %v1931
      %vm1933 = vcmp.eq.s32.totalorder %v1522, %v1928
      %vm1934 = vcmp.eq.s32.totalorder %v1522, %v1932
      %vm1935 = vcmp.eq.s32.totalorder %v1523, %v1928
      %vm1936 = vcmp.eq.s32.totalorder %v1523, %v1932
      %vm1937 = vcmp.eq.s32.totalorder %v1524, %v1928
      %vm1938 = vcmp.eq.s32.totalorder %v1524, %v1932
      %vm1939 = vcmp.eq.s32.totalorder %v1525, %v1928
      %vm1940 = vcmp.eq.s32.totalorder %v1525, %v1932
      %vm1941 = vcmp.eq.s32.totalorder %v1526, %v1928
      %vm1942 = vcmp.eq.s32.totalorder %v1526, %v1932
      %vm1943 = vcmp.eq.s32.totalorder %v1527, %v1928
      %vm1944 = vcmp.eq.s32.totalorder %v1527, %v1932
      %vm1945 = vcmp.eq.s32.totalorder %v1528, %v1928
      %vm1946 = vcmp.eq.s32.totalorder %v1528, %v1932
      %vm1947 = vcmp.eq.s32.totalorder %v1529, %v1928
      %vm1948 = vcmp.eq.s32.totalorder %v1529, %v1932
      %vm1949 = vcmp.eq.s32.totalorder %v1530, %v1928
      %vm1950 = vcmp.eq.s32.totalorder %v1530, %v1932
      %vm1951 = vcmp.eq.s32.totalorder %v1531, %v1928
      %vm1952 = vcmp.eq.s32.totalorder %v1531, %v1932
      %vm1953 = vcmp.eq.s32.totalorder %v1532, %v1928
      %vm1954 = vcmp.eq.s32.totalorder %v1532, %v1932
      %vm1955 = vcmp.eq.s32.totalorder %v1533, %v1928
      %vm1956 = vcmp.eq.s32.totalorder %v1533, %v1932
      %vm1957 = vcmp.eq.s32.totalorder %v1534, %v1928
      %vm1958 = vcmp.eq.s32.totalorder %v1534, %v1932
      %vm1959 = vcmp.eq.s32.totalorder %v1535, %v1928
      %vm1960 = vcmp.eq.s32.totalorder %v1535, %v1932
      %vm1961 = vcmp.eq.s32.totalorder %v1536, %v1928
      %vm1962 = vcmp.eq.s32.totalorder %v1536, %v1932
      %vm1963 = vcmp.eq.s32.totalorder %v1537, %v1928
      %vm1964 = vcmp.eq.s32.totalorder %v1537, %v1932
      %vm1965 = vcmp.eq.s32.totalorder %v1538, %v1928
      %vm1966 = vcmp.eq.s32.totalorder %v1538, %v1932
      %vm1967 = vcmp.eq.s32.totalorder %v1539, %v1928
      %vm1968 = vcmp.eq.s32.totalorder %v1539, %v1932
      %vm1969 = vcmp.eq.s32.totalorder %v1540, %v1928
      %vm1970 = vcmp.eq.s32.totalorder %v1540, %v1932
      %vm1971 = vcmp.eq.s32.totalorder %v1541, %v1928
      %vm1972 = vcmp.eq.s32.totalorder %v1541, %v1932
      %vm1973 = vcmp.eq.s32.totalorder %v1542, %v1928
      %vm1974 = vcmp.eq.s32.totalorder %v1542, %v1932
      %vm1975 = vcmp.eq.s32.totalorder %v1543, %v1928
      %vm1976 = vcmp.eq.s32.totalorder %v1543, %v1932
      %vm1977 = vcmp.eq.s32.totalorder %v1544, %v1928
      %vm1978 = vcmp.eq.s32.totalorder %v1544, %v1932
      %vm1979 = vcmp.eq.s32.totalorder %v1545, %v1928
      %vm1980 = vcmp.eq.s32.totalorder %v1545, %v1932
      %vm1981 = vcmp.eq.s32.totalorder %v1546, %v1928
      %vm1982 = vcmp.eq.s32.totalorder %v1546, %v1932
      %vm1983 = vcmp.eq.s32.totalorder %v1547, %v1928
      %vm1984 = vcmp.eq.s32.totalorder %v1547, %v1932
      %vm1985 = vcmp.eq.s32.totalorder %v1548, %v1928
      %vm1986 = vcmp.eq.s32.totalorder %v1548, %v1932
      %vm1987 = vcmp.eq.s32.totalorder %v1549, %v1928
      %vm1988 = vcmp.eq.s32.totalorder %v1549, %v1932
      %vm1989 = vcmp.eq.s32.totalorder %v1550, %v1928
      %vm1990 = vcmp.eq.s32.totalorder %v1550, %v1932
      %vm1991 = vcmp.eq.s32.totalorder %v1551, %v1928
      %vm1992 = vcmp.eq.s32.totalorder %v1551, %v1932
      %vm1993 = vcmp.eq.s32.totalorder %v1552, %v1928
      %vm1994 = vcmp.eq.s32.totalorder %v1552, %v1932
      %vm1995 = vcmp.eq.s32.totalorder %v1553, %v1928
      %vm1996 = vcmp.eq.s32.totalorder %v1553, %v1932
      %v1997 = vsel %vm1933, 1, 0
      %v1998 = vsel %vm1934, 1, 0
      %v1999 = vsel %vm1935, 1, 0
      %v2000 = vsel %vm1936, 1, 0
      %v2001 = vsel %vm1937, 1, 0
      %v2002 = vsel %vm1938, 1, 0
      %v2003 = vsel %vm1939, 1, 0
      %v2004 = vsel %vm1940, 1, 0
      %v2005 = vsel %vm1941, 1, 0
      %v2006 = vsel %vm1942, 1, 0
      %v2007 = vsel %vm1943, 1, 0
      %v2008 = vsel %vm1944, 1, 0
      %v2009 = vsel %vm1945, 1, 0
      %v2010 = vsel %vm1946, 1, 0
      %v2011 = vsel %vm1947, 1, 0
      %v2012 = vsel %vm1948, 1, 0
      %v2013 = vsel %vm1949, 1, 0
      %v2014 = vsel %vm1950, 1, 0
      %v2015 = vsel %vm1951, 1, 0
      %v2016 = vsel %vm1952, 1, 0
      %v2017 = vsel %vm1953, 1, 0
      %v2018 = vsel %vm1954, 1, 0
      %v2019 = vsel %vm1955, 1, 0
      %v2020 = vsel %vm1956, 1, 0
      %v2021 = vsel %vm1957, 1, 0
      %v2022 = vsel %vm1958, 1, 0
      %v2023 = vsel %vm1959, 1, 0
      %v2024 = vsel %vm1960, 1, 0
      %v2025 = vsel %vm1961, 1, 0
      %v2026 = vsel %vm1962, 1, 0
      %v2027 = vsel %vm1963, 1, 0
      %v2028 = vsel %vm1964, 1, 0
      %v2029 = vsel %vm1965, 1, 0
      %v2030 = vsel %vm1966, 1, 0
      %v2031 = vsel %vm1967, 1, 0
      %v2032 = vsel %vm1968, 1, 0
      %v2033 = vsel %vm1969, 1, 0
      %v2034 = vsel %vm1970, 1, 0
      %v2035 = vsel %vm1971, 1, 0
      %v2036 = vsel %vm1972, 1, 0
      %v2037 = vsel %vm1973, 1, 0
      %v2038 = vsel %vm1974, 1, 0
      %v2039 = vsel %vm1975, 1, 0
      %v2040 = vsel %vm1976, 1, 0
      %v2041 = vsel %vm1977, 1, 0
      %v2042 = vsel %vm1978, 1, 0
      %v2043 = vsel %vm1979, 1, 0
      %v2044 = vsel %vm1980, 1, 0
      %v2045 = vsel %vm1981, 1, 0
      %v2046 = vsel %vm1982, 1, 0
      %v2047 = vsel %vm1983, 1, 0
      %v2048 = vsel %vm1984, 1, 0
      %v2049 = vsel %vm1985, 1, 0
      %v2050 = vsel %vm1986, 1, 0
      %v2051 = vsel %vm1987, 1, 0
      %v2052 = vsel %vm1988, 1, 0
      %v2053 = vsel %vm1989, 1, 0
      %v2054 = vsel %vm1990, 1, 0
      %v2055 = vsel %vm1991, 1, 0
      %v2056 = vsel %vm1992, 1, 0
      %v2057 = vsel %vm1993, 1, 0
      %v2058 = vsel %vm1994, 1, 0
      %v2059 = vsel %vm1995, 1, 0
      %v2060 = vsel %vm1996, 1, 0
      %v2061 = vcvt.s32.f32 %v1997
      %v2062 = vcvt.s32.f32 %v1998
      %v2063 = vcvt.s32.f32 %v1999
      %v2064 = vcvt.s32.f32 %v2000
      %v2065 = vcvt.s32.f32 %v2001
      %v2066 = vcvt.s32.f32 %v2002
      %v2067 = vcvt.s32.f32 %v2003
      %v2068 = vcvt.s32.f32 %v2004
      %v2069 = vcvt.s32.f32 %v2005
      %v2070 = vcvt.s32.f32 %v2006
      %v2071 = vcvt.s32.f32 %v2007
      %v2072 = vcvt.s32.f32 %v2008
      %v2073 = vcvt.s32.f32 %v2009
      %v2074 = vcvt.s32.f32 %v2010
      %v2075 = vcvt.s32.f32 %v2011
      %v2076 = vcvt.s32.f32 %v2012
      %v2077 = vcvt.s32.f32 %v2013
      %v2078 = vcvt.s32.f32 %v2014
      %v2079 = vcvt.s32.f32 %v2015
      %v2080 = vcvt.s32.f32 %v2016
      %v2081 = vcvt.s32.f32 %v2017
      %v2082 = vcvt.s32.f32 %v2018
      %v2083 = vcvt.s32.f32 %v2019
      %v2084 = vcvt.s32.f32 %v2020
      %v2085 = vcvt.s32.f32 %v2021
      %v2086 = vcvt.s32.f32 %v2022
      %v2087 = vcvt.s32.f32 %v2023
      %v2088 = vcvt.s32.f32 %v2024
      %v2089 = vcvt.s32.f32 %v2025
      %v2090 = vcvt.s32.f32 %v2026
      %v2091 = vcvt.s32.f32 %v2027
      %v2092 = vcvt.s32.f32 %v2028
      %v2093 = vcvt.s32.f32 %v2029
      %v2094 = vcvt.s32.f32 %v2030
      %v2095 = vcvt.s32.f32 %v2031
      %v2096 = vcvt.s32.f32 %v2032
      %v2097 = vcvt.s32.f32 %v2033
      %v2098 = vcvt.s32.f32 %v2034
      %v2099 = vcvt.s32.f32 %v2035
      %v2100 = vcvt.s32.f32 %v2036
      %v2101 = vcvt.s32.f32 %v2037
      %v2102 = vcvt.s32.f32 %v2038
      %v2103 = vcvt.s32.f32 %v2039
      %v2104 = vcvt.s32.f32 %v2040
      %v2105 = vcvt.s32.f32 %v2041
      %v2106 = vcvt.s32.f32 %v2042
      %v2107 = vcvt.s32.f32 %v2043
      %v2108 = vcvt.s32.f32 %v2044
      %v2109 = vcvt.s32.f32 %v2045
      %v2110 = vcvt.s32.f32 %v2046
      %v2111 = vcvt.s32.f32 %v2047
      %v2112 = vcvt.s32.f32 %v2048
      %v2113 = vcvt.s32.f32 %v2049
      %v2114 = vcvt.s32.f32 %v2050
      %v2115 = vcvt.s32.f32 %v2051
      %v2116 = vcvt.s32.f32 %v2052
      %v2117 = vcvt.s32.f32 %v2053
      %v2118 = vcvt.s32.f32 %v2054
      %v2119 = vcvt.s32.f32 %v2055
      %v2120 = vcvt.s32.f32 %v2056
      %v2121 = vcvt.s32.f32 %v2057
      %v2122 = vcvt.s32.f32 %v2058
      %v2123 = vcvt.s32.f32 %v2059
      %v2124 = vcvt.s32.f32 %v2060
      %v2125 = vmul.f32 %v1557, %v1922
      %v2127 = vlaneseq
      %v2128 = vshrl.u32 %v2127, 7
      %v2129 = vsub.s32 0, %v2128
      %v2130 = vrot.slane %v2125, %v2129
      %v2131 = vlaneseq
      %v2132 = vshrl.u32 %v2131, 7
      %v2133 = vsub.s32 1, %v2132
      %v2134 = vrot.slane %v2125, %v2133
      %v2137 = vmul.f32 %v2061, %v2130
      %v2138 = vmul.f32 %v2062, %v2134
      %v2139 = vmul.f32 %v2063, %v2130
      %v2140 = vmul.f32 %v2064, %v2134
      %v2141 = vmul.f32 %v2065, %v2130
      %v2142 = vmul.f32 %v2066, %v2134
      %v2143 = vmul.f32 %v2067, %v2130
      %v2144 = vmul.f32 %v2068, %v2134
      %v2145 = vmul.f32 %v2069, %v2130
      %v2146 = vmul.f32 %v2070, %v2134
      %v2147 = vmul.f32 %v2071, %v2130
      %v2148 = vmul.f32 %v2072, %v2134
      %v2149 = vmul.f32 %v2073, %v2130
      %v2150 = vmul.f32 %v2074, %v2134
      %v2151 = vmul.f32 %v2075, %v2130
      %v2152 = vmul.f32 %v2076, %v2134
      %v2153 = vmul.f32 %v2077, %v2130
      %v2154 = vmul.f32 %v2078, %v2134
      %v2155 = vmul.f32 %v2079, %v2130
      %v2156 = vmul.f32 %v2080, %v2134
      %v2157 = vmul.f32 %v2081, %v2130
      %v2158 = vmul.f32 %v2082, %v2134
      %v2159 = vmul.f32 %v2083, %v2130
      %v2160 = vmul.f32 %v2084, %v2134
      %v2161 = vmul.f32 %v2085, %v2130
      %v2162 = vmul.f32 %v2086, %v2134
      %v2163 = vmul.f32 %v2087, %v2130
      %v2164 = vmul.f32 %v2088, %v2134
      %v2165 = vmul.f32 %v2089, %v2130
      %v2166 = vmul.f32 %v2090, %v2134
      %v2167 = vmul.f32 %v2091, %v2130
      %v2168 = vmul.f32 %v2092, %v2134
      %v2169 = vmul.f32 %v2093, %v2130
      %v2170 = vmul.f32 %v2094, %v2134
      %v2171 = vmul.f32 %v2095, %v2130
      %v2172 = vmul.f32 %v2096, %v2134
      %v2173 = vmul.f32 %v2097, %v2130
      %v2174 = vmul.f32 %v2098, %v2134
      %v2175 = vmul.f32 %v2099, %v2130
      %v2176 = vmul.f32 %v2100, %v2134
      %v2177 = vmul.f32 %v2101, %v2130
      %v2178 = vmul.f32 %v2102, %v2134
      %v2179 = vmul.f32 %v2103, %v2130
      %v2180 = vmul.f32 %v2104, %v2134
      %v2181 = vmul.f32 %v2105, %v2130
      %v2182 = vmul.f32 %v2106, %v2134
      %v2183 = vmul.f32 %v2107, %v2130
      %v2184 = vmul.f32 %v2108, %v2134
      %v2185 = vmul.f32 %v2109, %v2130
      %v2186 = vmul.f32 %v2110, %v2134
      %v2187 = vmul.f32 %v2111, %v2130
      %v2188 = vmul.f32 %v2112, %v2134
      %v2189 = vmul.f32 %v2113, %v2130
      %v2190 = vmul.f32 %v2114, %v2134
      %v2191 = vmul.f32 %v2115, %v2130
      %v2192 = vmul.f32 %v2116, %v2134
      %v2193 = vmul.f32 %v2117, %v2130
      %v2194 = vmul.f32 %v2118, %v2134
      %v2195 = vmul.f32 %v2119, %v2130
      %v2196 = vmul.f32 %v2120, %v2134
      %v2197 = vmul.f32 %v2121, %v2130
      %v2198 = vmul.f32 %v2122, %v2134
      %v2199 = vmul.f32 %v2123, %v2130
      %v2200 = vmul.f32 %v2124, %v2134
      %v2201 = vadd.f32 %v1851, %v2137
      %v2202 = vadd.f32 %v1852, %v2138
      %v2203 = vadd.f32 %v1853, %v2139
      %v2204 = vadd.f32 %v1854, %v2140
      %v2205 = vadd.f32 %v1855, %v2141
      %v2206 = vadd.f32 %v1856, %v2142
      %v2207 = vadd.f32 %v1857, %v2143
      %v2208 = vadd.f32 %v1858, %v2144
      %v2209 = vadd.f32 %v1859, %v2145
      %v2210 = vadd.f32 %v1860, %v2146
      %v2211 = vadd.f32 %v1861, %v2147
      %v2212 = vadd.f32 %v1862, %v2148
      %v2213 = vadd.f32 %v1863, %v2149
      %v2214 = vadd.f32 %v1864, %v2150
      %v2215 = vadd.f32 %v1865, %v2151
      %v2216 = vadd.f32 %v1866, %v2152
      %v2217 = vadd.f32 %v1867, %v2153
      %v2218 = vadd.f32 %v1868, %v2154
      %v2219 = vadd.f32 %v1869, %v2155
      %v2220 = vadd.f32 %v1870, %v2156
      %v2221 = vadd.f32 %v1871, %v2157
      %v2222 = vadd.f32 %v1872, %v2158
      %v2223 = vadd.f32 %v1873, %v2159
      %v2224 = vadd.f32 %v1874, %v2160
      %v2225 = vadd.f32 %v1875, %v2161
      %v2226 = vadd.f32 %v1876, %v2162
      %v2227 = vadd.f32 %v1877, %v2163
      %v2228 = vadd.f32 %v1878, %v2164
      %v2229 = vadd.f32 %v1879, %v2165
      %v2230 = vadd.f32 %v1880, %v2166
      %v2231 = vadd.f32 %v1881, %v2167
      %v2232 = vadd.f32 %v1882, %v2168
      %v2233 = vadd.f32 %v1883, %v2169
      %v2234 = vadd.f32 %v1884, %v2170
      %v2235 = vadd.f32 %v1885, %v2171
      %v2236 = vadd.f32 %v1886, %v2172
      %v2237 = vadd.f32 %v1887, %v2173
      %v2238 = vadd.f32 %v1888, %v2174
      %v2239 = vadd.f32 %v1889, %v2175
      %v2240 = vadd.f32 %v1890, %v2176
      %v2241 = vadd.f32 %v1891, %v2177
      %v2242 = vadd.f32 %v1892, %v2178
      %v2243 = vadd.f32 %v1893, %v2179
      %v2244 = vadd.f32 %v1894, %v2180
      %v2245 = vadd.f32 %v1895, %v2181
      %v2246 = vadd.f32 %v1896, %v2182
      %v2247 = vadd.f32 %v1897, %v2183
      %v2248 = vadd.f32 %v1898, %v2184
      %v2249 = vadd.f32 %v1899, %v2185
      %v2250 = vadd.f32 %v1900, %v2186
      %v2251 = vadd.f32 %v1901, %v2187
      %v2252 = vadd.f32 %v1902, %v2188
      %v2253 = vadd.f32 %v1903, %v2189
      %v2254 = vadd.f32 %v1904, %v2190
      %v2255 = vadd.f32 %v1905, %v2191
      %v2256 = vadd.f32 %v1906, %v2192
      %v2257 = vadd.f32 %v1907, %v2193
      %v2258 = vadd.f32 %v1908, %v2194
      %v2259 = vadd.f32 %v1909, %v2195
      %v2260 = vadd.f32 %v1910, %v2196
      %v2261 = vadd.f32 %v1911, %v2197
      %v2262 = vadd.f32 %v1912, %v2198
      %v2263 = vadd.f32 %v1913, %v2199
      %v2264 = vadd.f32 %v1914, %v2200
      %v2265 = vadd.f32 %v1518, 1.0
      %vm2266 = vcmp.ge.f32.partialorder %v2265, 0.0
      %vm2267 = vmand %vm1564, %vm2266
      %vm2268 = vcmp.le.f32.partialorder %v2265, 15.0
      %vm2269 = vmand %vm2267, %vm2268
      %v2270 = vsel %vm2269, 1, 0
      %v2271 = vcvt.s32.f32 %v2270
      %v2272 = vcvt.f32.s32.to.zero.pseudo %v2265
      %v2273 = vmul.u32 %v2272, 16
      %v2274 = vadd.s32 %v2273, %v1573
      %v2275 = vlaneseq
      %v2276 = vshrl.u32 %v2275, 7
      %v2277 = vsub.s32 0, %v2276
      %v2278 = vrot.slane %v2274, %v2277
      %v2279 = vlaneseq
      %v2280 = vshrl.u32 %v2279, 7
      %v2281 = vsub.s32 1, %v2280
      %v2282 = vrot.slane %v2274, %v2281
      %vm2283 = vcmp.eq.s32.totalorder %v1522, %v2278
      %vm2284 = vcmp.eq.s32.totalorder %v1522, %v2282
      %vm2285 = vcmp.eq.s32.totalorder %v1523, %v2278
      %vm2286 = vcmp.eq.s32.totalorder %v1523, %v2282
      %vm2287 = vcmp.eq.s32.totalorder %v1524, %v2278
      %vm2288 = vcmp.eq.s32.totalorder %v1524, %v2282
      %vm2289 = vcmp.eq.s32.totalorder %v1525, %v2278
      %vm2290 = vcmp.eq.s32.totalorder %v1525, %v2282
      %vm2291 = vcmp.eq.s32.totalorder %v1526, %v2278
      %vm2292 = vcmp.eq.s32.totalorder %v1526, %v2282
      %vm2293 = vcmp.eq.s32.totalorder %v1527, %v2278
      %vm2294 = vcmp.eq.s32.totalorder %v1527, %v2282
      %vm2295 = vcmp.eq.s32.totalorder %v1528, %v2278
      %vm2296 = vcmp.eq.s32.totalorder %v1528, %v2282
      %vm2297 = vcmp.eq.s32.totalorder %v1529, %v2278
      %vm2298 = vcmp.eq.s32.totalorder %v1529, %v2282
      %vm2299 = vcmp.eq.s32.totalorder %v1530, %v2278
      %vm2300 = vcmp.eq.s32.totalorder %v1530, %v2282
      %vm2301 = vcmp.eq.s32.totalorder %v1531, %v2278
      %vm2302 = vcmp.eq.s32.totalorder %v1531, %v2282
      %vm2303 = vcmp.eq.s32.totalorder %v1532, %v2278
      %vm2304 = vcmp.eq.s32.totalorder %v1532, %v2282
      %vm2305 = vcmp.eq.s32.totalorder %v1533, %v2278
      %vm2306 = vcmp.eq.s32.totalorder %v1533, %v2282
      %vm2307 = vcmp.eq.s32.totalorder %v1534, %v2278
      %vm2308 = vcmp.eq.s32.totalorder %v1534, %v2282
      %vm2309 = vcmp.eq.s32.totalorder %v1535, %v2278
      %vm2310 = vcmp.eq.s32.totalorder %v1535, %v2282
      %vm2311 = vcmp.eq.s32.totalorder %v1536, %v2278
      %vm2312 = vcmp.eq.s32.totalorder %v1536, %v2282
      %vm2313 = vcmp.eq.s32.totalorder %v1537, %v2278
      %vm2314 = vcmp.eq.s32.totalorder %v1537, %v2282
      %vm2315 = vcmp.eq.s32.totalorder %v1538, %v2278
      %vm2316 = vcmp.eq.s32.totalorder %v1538, %v2282
      %vm2317 = vcmp.eq.s32.totalorder %v1539, %v2278
      %vm2318 = vcmp.eq.s32.totalorder %v1539, %v2282
      %vm2319 = vcmp.eq.s32.totalorder %v1540, %v2278
      %vm2320 = vcmp.eq.s32.totalorder %v1540, %v2282
      %vm2321 = vcmp.eq.s32.totalorder %v1541, %v2278
      %vm2322 = vcmp.eq.s32.totalorder %v1541, %v2282
      %vm2323 = vcmp.eq.s32.totalorder %v1542, %v2278
      %vm2324 = vcmp.eq.s32.totalorder %v1542, %v2282
      %vm2325 = vcmp.eq.s32.totalorder %v1543, %v2278
      %vm2326 = vcmp.eq.s32.totalorder %v1543, %v2282
      %vm2327 = vcmp.eq.s32.totalorder %v1544, %v2278
      %vm2328 = vcmp.eq.s32.totalorder %v1544, %v2282
      %vm2329 = vcmp.eq.s32.totalorder %v1545, %v2278
      %vm2330 = vcmp.eq.s32.totalorder %v1545, %v2282
      %vm2331 = vcmp.eq.s32.totalorder %v1546, %v2278
      %vm2332 = vcmp.eq.s32.totalorder %v1546, %v2282
      %vm2333 = vcmp.eq.s32.totalorder %v1547, %v2278
      %vm2334 = vcmp.eq.s32.totalorder %v1547, %v2282
      %vm2335 = vcmp.eq.s32.totalorder %v1548, %v2278
      %vm2336 = vcmp.eq.s32.totalorder %v1548, %v2282
      %vm2337 = vcmp.eq.s32.totalorder %v1549, %v2278
      %vm2338 = vcmp.eq.s32.totalorder %v1549, %v2282
      %vm2339 = vcmp.eq.s32.totalorder %v1550, %v2278
      %vm2340 = vcmp.eq.s32.totalorder %v1550, %v2282
      %vm2341 = vcmp.eq.s32.totalorder %v1551, %v2278
      %vm2342 = vcmp.eq.s32.totalorder %v1551, %v2282
      %vm2343 = vcmp.eq.s32.totalorder %v1552, %v2278
      %vm2344 = vcmp.eq.s32.totalorder %v1552, %v2282
      %vm2345 = vcmp.eq.s32.totalorder %v1553, %v2278
      %vm2346 = vcmp.eq.s32.totalorder %v1553, %v2282
      %v2347 = vsel %vm2283, 1, 0
      %v2348 = vsel %vm2284, 1, 0
      %v2349 = vsel %vm2285, 1, 0
      %v2350 = vsel %vm2286, 1, 0
      %v2351 = vsel %vm2287, 1, 0
      %v2352 = vsel %vm2288, 1, 0
      %v2353 = vsel %vm2289, 1, 0
      %v2354 = vsel %vm2290, 1, 0
      %v2355 = vsel %vm2291, 1, 0
      %v2356 = vsel %vm2292, 1, 0
      %v2357 = vsel %vm2293, 1, 0
      %v2358 = vsel %vm2294, 1, 0
      %v2359 = vsel %vm2295, 1, 0
      %v2360 = vsel %vm2296, 1, 0
      %v2361 = vsel %vm2297, 1, 0
      %v2362 = vsel %vm2298, 1, 0
      %v2363 = vsel %vm2299, 1, 0
      %v2364 = vsel %vm2300, 1, 0
      %v2365 = vsel %vm2301, 1, 0
      %v2366 = vsel %vm2302, 1, 0
      %v2367 = vsel %vm2303, 1, 0
      %v2368 = vsel %vm2304, 1, 0
      %v2369 = vsel %vm2305, 1, 0
      %v2370 = vsel %vm2306, 1, 0
      %v2371 = vsel %vm2307, 1, 0
      %v2372 = vsel %vm2308, 1, 0
      %v2373 = vsel %vm2309, 1, 0
      %v2374 = vsel %vm2310, 1, 0
      %v2375 = vsel %vm2311, 1, 0
      %v2376 = vsel %vm2312, 1, 0
      %v2377 = vsel %vm2313, 1, 0
      %v2378 = vsel %vm2314, 1, 0
      %v2379 = vsel %vm2315, 1, 0
      %v2380 = vsel %vm2316, 1, 0
      %v2381 = vsel %vm2317, 1, 0
      %v2382 = vsel %vm2318, 1, 0
      %v2383 = vsel %vm2319, 1, 0
      %v2384 = vsel %vm2320, 1, 0
      %v2385 = vsel %vm2321, 1, 0
      %v2386 = vsel %vm2322, 1, 0
      %v2387 = vsel %vm2323, 1, 0
      %v2388 = vsel %vm2324, 1, 0
      %v2389 = vsel %vm2325, 1, 0
      %v2390 = vsel %vm2326, 1, 0
      %v2391 = vsel %vm2327, 1, 0
      %v2392 = vsel %vm2328, 1, 0
      %v2393 = vsel %vm2329, 1, 0
      %v2394 = vsel %vm2330, 1, 0
      %v2395 = vsel %vm2331, 1, 0
      %v2396 = vsel %vm2332, 1, 0
      %v2397 = vsel %vm2333, 1, 0
      %v2398 = vsel %vm2334, 1, 0
      %v2399 = vsel %vm2335, 1, 0
      %v2400 = vsel %vm2336, 1, 0
      %v2401 = vsel %vm2337, 1, 0
      %v2402 = vsel %vm2338, 1, 0
      %v2403 = vsel %vm2339, 1, 0
      %v2404 = vsel %vm2340, 1, 0
      %v2405 = vsel %vm2341, 1, 0
      %v2406 = vsel %vm2342, 1, 0
      %v2407 = vsel %vm2343, 1, 0
      %v2408 = vsel %vm2344, 1, 0
      %v2409 = vsel %vm2345, 1, 0
      %v2410 = vsel %vm2346, 1, 0
      %v2411 = vcvt.s32.f32 %v2347
      %v2412 = vcvt.s32.f32 %v2348
      %v2413 = vcvt.s32.f32 %v2349
      %v2414 = vcvt.s32.f32 %v2350
      %v2415 = vcvt.s32.f32 %v2351
      %v2416 = vcvt.s32.f32 %v2352
      %v2417 = vcvt.s32.f32 %v2353
      %v2418 = vcvt.s32.f32 %v2354
      %v2419 = vcvt.s32.f32 %v2355
      %v2420 = vcvt.s32.f32 %v2356
      %v2421 = vcvt.s32.f32 %v2357
      %v2422 = vcvt.s32.f32 %v2358
      %v2423 = vcvt.s32.f32 %v2359
      %v2424 = vcvt.s32.f32 %v2360
      %v2425 = vcvt.s32.f32 %v2361
      %v2426 = vcvt.s32.f32 %v2362
      %v2427 = vcvt.s32.f32 %v2363
      %v2428 = vcvt.s32.f32 %v2364
      %v2429 = vcvt.s32.f32 %v2365
      %v2430 = vcvt.s32.f32 %v2366
      %v2431 = vcvt.s32.f32 %v2367
      %v2432 = vcvt.s32.f32 %v2368
      %v2433 = vcvt.s32.f32 %v2369
      %v2434 = vcvt.s32.f32 %v2370
      %v2435 = vcvt.s32.f32 %v2371
      %v2436 = vcvt.s32.f32 %v2372
      %v2437 = vcvt.s32.f32 %v2373
      %v2438 = vcvt.s32.f32 %v2374
      %v2439 = vcvt.s32.f32 %v2375
      %v2440 = vcvt.s32.f32 %v2376
      %v2441 = vcvt.s32.f32 %v2377
      %v2442 = vcvt.s32.f32 %v2378
      %v2443 = vcvt.s32.f32 %v2379
      %v2444 = vcvt.s32.f32 %v2380
      %v2445 = vcvt.s32.f32 %v2381
      %v2446 = vcvt.s32.f32 %v2382
      %v2447 = vcvt.s32.f32 %v2383
      %v2448 = vcvt.s32.f32 %v2384
      %v2449 = vcvt.s32.f32 %v2385
      %v2450 = vcvt.s32.f32 %v2386
      %v2451 = vcvt.s32.f32 %v2387
      %v2452 = vcvt.s32.f32 %v2388
      %v2453 = vcvt.s32.f32 %v2389
      %v2454 = vcvt.s32.f32 %v2390
      %v2455 = vcvt.s32.f32 %v2391
      %v2456 = vcvt.s32.f32 %v2392
      %v2457 = vcvt.s32.f32 %v2393
      %v2458 = vcvt.s32.f32 %v2394
      %v2459 = vcvt.s32.f32 %v2395
      %v2460 = vcvt.s32.f32 %v2396
      %v2461 = vcvt.s32.f32 %v2397
      %v2462 = vcvt.s32.f32 %v2398
      %v2463 = vcvt.s32.f32 %v2399
      %v2464 = vcvt.s32.f32 %v2400
      %v2465 = vcvt.s32.f32 %v2401
      %v2466 = vcvt.s32.f32 %v2402
      %v2467 = vcvt.s32.f32 %v2403
      %v2468 = vcvt.s32.f32 %v2404
      %v2469 = vcvt.s32.f32 %v2405
      %v2470 = vcvt.s32.f32 %v2406
      %v2471 = vcvt.s32.f32 %v2407
      %v2472 = vcvt.s32.f32 %v2408
      %v2473 = vcvt.s32.f32 %v2409
      %v2474 = vcvt.s32.f32 %v2410
      %v2475 = vmul.f32 %v1558, %v2271
      %v2477 = vlaneseq
      %v2478 = vshrl.u32 %v2477, 7
      %v2479 = vsub.s32 0, %v2478
      %v2480 = vrot.slane %v2475, %v2479
      %v2481 = vlaneseq
      %v2482 = vshrl.u32 %v2481, 7
      %v2483 = vsub.s32 1, %v2482
      %v2484 = vrot.slane %v2475, %v2483
      %v2487 = vmul.f32 %v2411, %v2480
      %v2488 = vmul.f32 %v2412, %v2484
      %v2489 = vmul.f32 %v2413, %v2480
      %v2490 = vmul.f32 %v2414, %v2484
      %v2491 = vmul.f32 %v2415, %v2480
      %v2492 = vmul.f32 %v2416, %v2484
      %v2493 = vmul.f32 %v2417, %v2480
      %v2494 = vmul.f32 %v2418, %v2484
      %v2495 = vmul.f32 %v2419, %v2480
      %v2496 = vmul.f32 %v2420, %v2484
      %v2497 = vmul.f32 %v2421, %v2480
      %v2498 = vmul.f32 %v2422, %v2484
      %v2499 = vmul.f32 %v2423, %v2480
      %v2500 = vmul.f32 %v2424, %v2484
      %v2501 = vmul.f32 %v2425, %v2480
      %v2502 = vmul.f32 %v2426, %v2484
      %v2503 = vmul.f32 %v2427, %v2480
      %v2504 = vmul.f32 %v2428, %v2484
      %v2505 = vmul.f32 %v2429, %v2480
      %v2506 = vmul.f32 %v2430, %v2484
      %v2507 = vmul.f32 %v2431, %v2480
      %v2508 = vmul.f32 %v2432, %v2484
      %v2509 = vmul.f32 %v2433, %v2480
      %v2510 = vmul.f32 %v2434, %v2484
      %v2511 = vmul.f32 %v2435, %v2480
      %v2512 = vmul.f32 %v2436, %v2484
      %v2513 = vmul.f32 %v2437, %v2480
      %v2514 = vmul.f32 %v2438, %v2484
      %v2515 = vmul.f32 %v2439, %v2480
      %v2516 = vmul.f32 %v2440, %v2484
      %v2517 = vmul.f32 %v2441, %v2480
      %v2518 = vmul.f32 %v2442, %v2484
      %v2519 = vmul.f32 %v2443, %v2480
      %v2520 = vmul.f32 %v2444, %v2484
      %v2521 = vmul.f32 %v2445, %v2480
      %v2522 = vmul.f32 %v2446, %v2484
      %v2523 = vmul.f32 %v2447, %v2480
      %v2524 = vmul.f32 %v2448, %v2484
      %v2525 = vmul.f32 %v2449, %v2480
      %v2526 = vmul.f32 %v2450, %v2484
      %v2527 = vmul.f32 %v2451, %v2480
      %v2528 = vmul.f32 %v2452, %v2484
      %v2529 = vmul.f32 %v2453, %v2480
      %v2530 = vmul.f32 %v2454, %v2484
      %v2531 = vmul.f32 %v2455, %v2480
      %v2532 = vmul.f32 %v2456, %v2484
      %v2533 = vmul.f32 %v2457, %v2480
      %v2534 = vmul.f32 %v2458, %v2484
      %v2535 = vmul.f32 %v2459, %v2480
      %v2536 = vmul.f32 %v2460, %v2484
      %v2537 = vmul.f32 %v2461, %v2480
      %v2538 = vmul.f32 %v2462, %v2484
      %v2539 = vmul.f32 %v2463, %v2480
      %v2540 = vmul.f32 %v2464, %v2484
      %v2541 = vmul.f32 %v2465, %v2480
      %v2542 = vmul.f32 %v2466, %v2484
      %v2543 = vmul.f32 %v2467, %v2480
      %v2544 = vmul.f32 %v2468, %v2484
      %v2545 = vmul.f32 %v2469, %v2480
      %v2546 = vmul.f32 %v2470, %v2484
      %v2547 = vmul.f32 %v2471, %v2480
      %v2548 = vmul.f32 %v2472, %v2484
      %v2549 = vmul.f32 %v2473, %v2480
      %v2550 = vmul.f32 %v2474, %v2484
      %v2551 = vadd.f32 %v2201, %v2487
      %v2552 = vadd.f32 %v2202, %v2488
      %v2553 = vadd.f32 %v2203, %v2489
      %v2554 = vadd.f32 %v2204, %v2490
      %v2555 = vadd.f32 %v2205, %v2491
      %v2556 = vadd.f32 %v2206, %v2492
      %v2557 = vadd.f32 %v2207, %v2493
      %v2558 = vadd.f32 %v2208, %v2494
      %v2559 = vadd.f32 %v2209, %v2495
      %v2560 = vadd.f32 %v2210, %v2496
      %v2561 = vadd.f32 %v2211, %v2497
      %v2562 = vadd.f32 %v2212, %v2498
      %v2563 = vadd.f32 %v2213, %v2499
      %v2564 = vadd.f32 %v2214, %v2500
      %v2565 = vadd.f32 %v2215, %v2501
      %v2566 = vadd.f32 %v2216, %v2502
      %v2567 = vadd.f32 %v2217, %v2503
      %v2568 = vadd.f32 %v2218, %v2504
      %v2569 = vadd.f32 %v2219, %v2505
      %v2570 = vadd.f32 %v2220, %v2506
      %v2571 = vadd.f32 %v2221, %v2507
      %v2572 = vadd.f32 %v2222, %v2508
      %v2573 = vadd.f32 %v2223, %v2509
      %v2574 = vadd.f32 %v2224, %v2510
      %v2575 = vadd.f32 %v2225, %v2511
      %v2576 = vadd.f32 %v2226, %v2512
      %v2577 = vadd.f32 %v2227, %v2513
      %v2578 = vadd.f32 %v2228, %v2514
      %v2579 = vadd.f32 %v2229, %v2515
      %v2580 = vadd.f32 %v2230, %v2516
      %v2581 = vadd.f32 %v2231, %v2517
      %v2582 = vadd.f32 %v2232, %v2518
      %v2583 = vadd.f32 %v2233, %v2519
      %v2584 = vadd.f32 %v2234, %v2520
      %v2585 = vadd.f32 %v2235, %v2521
      %v2586 = vadd.f32 %v2236, %v2522
      %v2587 = vadd.f32 %v2237, %v2523
      %v2588 = vadd.f32 %v2238, %v2524
      %v2589 = vadd.f32 %v2239, %v2525
      %v2590 = vadd.f32 %v2240, %v2526
      %v2591 = vadd.f32 %v2241, %v2527
      %v2592 = vadd.f32 %v2242, %v2528
      %v2593 = vadd.f32 %v2243, %v2529
      %v2594 = vadd.f32 %v2244, %v2530
      %v2595 = vadd.f32 %v2245, %v2531
      %v2596 = vadd.f32 %v2246, %v2532
      %v2597 = vadd.f32 %v2247, %v2533
      %v2598 = vadd.f32 %v2248, %v2534
      %v2599 = vadd.f32 %v2249, %v2535
      %v2600 = vadd.f32 %v2250, %v2536
      %v2601 = vadd.f32 %v2251, %v2537
      %v2602 = vadd.f32 %v2252, %v2538
      %v2603 = vadd.f32 %v2253, %v2539
      %v2604 = vadd.f32 %v2254, %v2540
      %v2605 = vadd.f32 %v2255, %v2541
      %v2606 = vadd.f32 %v2256, %v2542
      %v2607 = vadd.f32 %v2257, %v2543
      %v2608 = vadd.f32 %v2258, %v2544
      %v2609 = vadd.f32 %v2259, %v2545
      %v2610 = vadd.f32 %v2260, %v2546
      %v2611 = vadd.f32 %v2261, %v2547
      %v2612 = vadd.f32 %v2262, %v2548
      %v2613 = vadd.f32 %v2263, %v2549
      %v2614 = vadd.f32 %v2264, %v2550
      %vm2615 = vmand %vm1918, %vm2266
      %vm2616 = vmand %vm2615, %vm2268
      %v2617 = vsel %vm2616, 1, 0
      %v2618 = vcvt.s32.f32 %v2617
      %v2619 = vadd.s32 %v2273, %v1923
      %v2620 = vlaneseq
      %v2621 = vshrl.u32 %v2620, 7
      %v2622 = vsub.s32 0, %v2621
      %v2623 = vrot.slane %v2619, %v2622
      %v2624 = vlaneseq
      %v2625 = vshrl.u32 %v2624, 7
      %v2626 = vsub.s32 1, %v2625
      %v2627 = vrot.slane %v2619, %v2626
      %vm2628 = vcmp.eq.s32.totalorder %v1522, %v2623
      %vm2629 = vcmp.eq.s32.totalorder %v1522, %v2627
      %vm2630 = vcmp.eq.s32.totalorder %v1523, %v2623
      %vm2631 = vcmp.eq.s32.totalorder %v1523, %v2627
      %vm2632 = vcmp.eq.s32.totalorder %v1524, %v2623
      %vm2633 = vcmp.eq.s32.totalorder %v1524, %v2627
      %vm2634 = vcmp.eq.s32.totalorder %v1525, %v2623
      %vm2635 = vcmp.eq.s32.totalorder %v1525, %v2627
      %vm2636 = vcmp.eq.s32.totalorder %v1526, %v2623
      %vm2637 = vcmp.eq.s32.totalorder %v1526, %v2627
      %vm2638 = vcmp.eq.s32.totalorder %v1527, %v2623
      %vm2639 = vcmp.eq.s32.totalorder %v1527, %v2627
      %vm2640 = vcmp.eq.s32.totalorder %v1528, %v2623
      %vm2641 = vcmp.eq.s32.totalorder %v1528, %v2627
      %vm2642 = vcmp.eq.s32.totalorder %v1529, %v2623
      %vm2643 = vcmp.eq.s32.totalorder %v1529, %v2627
      %vm2644 = vcmp.eq.s32.totalorder %v1530, %v2623
      %vm2645 = vcmp.eq.s32.totalorder %v1530, %v2627
      %vm2646 = vcmp.eq.s32.totalorder %v1531, %v2623
      %vm2647 = vcmp.eq.s32.totalorder %v1531, %v2627
      %vm2648 = vcmp.eq.s32.totalorder %v1532, %v2623
      %vm2649 = vcmp.eq.s32.totalorder %v1532, %v2627
      %vm2650 = vcmp.eq.s32.totalorder %v1533, %v2623
      %vm2651 = vcmp.eq.s32.totalorder %v1533, %v2627
      %vm2652 = vcmp.eq.s32.totalorder %v1534, %v2623
      %vm2653 = vcmp.eq.s32.totalorder %v1534, %v2627
      %vm2654 = vcmp.eq.s32.totalorder %v1535, %v2623
      %vm2655 = vcmp.eq.s32.totalorder %v1535, %v2627
      %vm2656 = vcmp.eq.s32.totalorder %v1536, %v2623
      %vm2657 = vcmp.eq.s32.totalorder %v1536, %v2627
      %vm2658 = vcmp.eq.s32.totalorder %v1537, %v2623
      %vm2659 = vcmp.eq.s32.totalorder %v1537, %v2627
      %vm2660 = vcmp.eq.s32.totalorder %v1538, %v2623
      %vm2661 = vcmp.eq.s32.totalorder %v1538, %v2627
      %vm2662 = vcmp.eq.s32.totalorder %v1539, %v2623
      %vm2663 = vcmp.eq.s32.totalorder %v1539, %v2627
      %vm2664 = vcmp.eq.s32.totalorder %v1540, %v2623
      %vm2665 = vcmp.eq.s32.totalorder %v1540, %v2627
      %vm2666 = vcmp.eq.s32.totalorder %v1541, %v2623
      %vm2667 = vcmp.eq.s32.totalorder %v1541, %v2627
      %vm2668 = vcmp.eq.s32.totalorder %v1542, %v2623
      %vm2669 = vcmp.eq.s32.totalorder %v1542, %v2627
      %vm2670 = vcmp.eq.s32.totalorder %v1543, %v2623
      %vm2671 = vcmp.eq.s32.totalorder %v1543, %v2627
      %vm2672 = vcmp.eq.s32.totalorder %v1544, %v2623
      %vm2673 = vcmp.eq.s32.totalorder %v1544, %v2627
      %vm2674 = vcmp.eq.s32.totalorder %v1545, %v2623
      %vm2675 = vcmp.eq.s32.totalorder %v1545, %v2627
      %vm2676 = vcmp.eq.s32.totalorder %v1546, %v2623
      %vm2677 = vcmp.eq.s32.totalorder %v1546, %v2627
      %vm2678 = vcmp.eq.s32.totalorder %v1547, %v2623
      %vm2679 = vcmp.eq.s32.totalorder %v1547, %v2627
      %vm2680 = vcmp.eq.s32.totalorder %v1548, %v2623
      %vm2681 = vcmp.eq.s32.totalorder %v1548, %v2627
      %vm2682 = vcmp.eq.s32.totalorder %v1549, %v2623
      %vm2683 = vcmp.eq.s32.totalorder %v1549, %v2627
      %vm2684 = vcmp.eq.s32.totalorder %v1550, %v2623
      %vm2685 = vcmp.eq.s32.totalorder %v1550, %v2627
      %vm2686 = vcmp.eq.s32.totalorder %v1551, %v2623
      %vm2687 = vcmp.eq.s32.totalorder %v1551, %v2627
      %vm2688 = vcmp.eq.s32.totalorder %v1552, %v2623
      %vm2689 = vcmp.eq.s32.totalorder %v1552, %v2627
      %vm2690 = vcmp.eq.s32.totalorder %v1553, %v2623
      %vm2691 = vcmp.eq.s32.totalorder %v1553, %v2627
      %v2692 = vsel %vm2628, 1, 0
      %v2693 = vsel %vm2629, 1, 0
      %v2694 = vsel %vm2630, 1, 0
      %v2695 = vsel %vm2631, 1, 0
      %v2696 = vsel %vm2632, 1, 0
      %v2697 = vsel %vm2633, 1, 0
      %v2698 = vsel %vm2634, 1, 0
      %v2699 = vsel %vm2635, 1, 0
      %v2700 = vsel %vm2636, 1, 0
      %v2701 = vsel %vm2637, 1, 0
      %v2702 = vsel %vm2638, 1, 0
      %v2703 = vsel %vm2639, 1, 0
      %v2704 = vsel %vm2640, 1, 0
      %v2705 = vsel %vm2641, 1, 0
      %v2706 = vsel %vm2642, 1, 0
      %v2707 = vsel %vm2643, 1, 0
      %v2708 = vsel %vm2644, 1, 0
      %v2709 = vsel %vm2645, 1, 0
      %v2710 = vsel %vm2646, 1, 0
      %v2711 = vsel %vm2647, 1, 0
      %v2712 = vsel %vm2648, 1, 0
      %v2713 = vsel %vm2649, 1, 0
      %v2714 = vsel %vm2650, 1, 0
      %v2715 = vsel %vm2651, 1, 0
      %v2716 = vsel %vm2652, 1, 0
      %v2717 = vsel %vm2653, 1, 0
      %v2718 = vsel %vm2654, 1, 0
      %v2719 = vsel %vm2655, 1, 0
      %v2720 = vsel %vm2656, 1, 0
      %v2721 = vsel %vm2657, 1, 0
      %v2722 = vsel %vm2658, 1, 0
      %v2723 = vsel %vm2659, 1, 0
      %v2724 = vsel %vm2660, 1, 0
      %v2725 = vsel %vm2661, 1, 0
      %v2726 = vsel %vm2662, 1, 0
      %v2727 = vsel %vm2663, 1, 0
      %v2728 = vsel %vm2664, 1, 0
      %v2729 = vsel %vm2665, 1, 0
      %v2730 = vsel %vm2666, 1, 0
      %v2731 = vsel %vm2667, 1, 0
      %v2732 = vsel %vm2668, 1, 0
      %v2733 = vsel %vm2669, 1, 0
      %v2734 = vsel %vm2670, 1, 0
      %v2735 = vsel %vm2671, 1, 0
      %v2736 = vsel %vm2672, 1, 0
      %v2737 = vsel %vm2673, 1, 0
      %v2738 = vsel %vm2674, 1, 0
      %v2739 = vsel %vm2675, 1, 0
      %v2740 = vsel %vm2676, 1, 0
      %v2741 = vsel %vm2677, 1, 0
      %v2742 = vsel %vm2678, 1, 0
      %v2743 = vsel %vm2679, 1, 0
      %v2744 = vsel %vm2680, 1, 0
      %v2745 = vsel %vm2681, 1, 0
      %v2746 = vsel %vm2682, 1, 0
      %v2747 = vsel %vm2683, 1, 0
      %v2748 = vsel %vm2684, 1, 0
      %v2749 = vsel %vm2685, 1, 0
      %v2750 = vsel %vm2686, 1, 0
      %v2751 = vsel %vm2687, 1, 0
      %v2752 = vsel %vm2688, 1, 0
      %v2753 = vsel %vm2689, 1, 0
      %v2754 = vsel %vm2690, 1, 0
      %v2755 = vsel %vm2691, 1, 0
      %v2756 = vcvt.s32.f32 %v2692
      %v2757 = vcvt.s32.f32 %v2693
      %v2758 = vcvt.s32.f32 %v2694
      %v2759 = vcvt.s32.f32 %v2695
      %v2760 = vcvt.s32.f32 %v2696
      %v2761 = vcvt.s32.f32 %v2697
      %v2762 = vcvt.s32.f32 %v2698
      %v2763 = vcvt.s32.f32 %v2699
      %v2764 = vcvt.s32.f32 %v2700
      %v2765 = vcvt.s32.f32 %v2701
      %v2766 = vcvt.s32.f32 %v2702
      %v2767 = vcvt.s32.f32 %v2703
      %v2768 = vcvt.s32.f32 %v2704
      %v2769 = vcvt.s32.f32 %v2705
      %v2770 = vcvt.s32.f32 %v2706
      %v2771 = vcvt.s32.f32 %v2707
      %v2772 = vcvt.s32.f32 %v2708
      %v2773 = vcvt.s32.f32 %v2709
      %v2774 = vcvt.s32.f32 %v2710
      %v2775 = vcvt.s32.f32 %v2711
      %v2776 = vcvt.s32.f32 %v2712
      %v2777 = vcvt.s32.f32 %v2713
      %v2778 = vcvt.s32.f32 %v2714
      %v2779 = vcvt.s32.f32 %v2715
      %v2780 = vcvt.s32.f32 %v2716
      %v2781 = vcvt.s32.f32 %v2717
      %v2782 = vcvt.s32.f32 %v2718
      %v2783 = vcvt.s32.f32 %v2719
      %v2784 = vcvt.s32.f32 %v2720
      %v2785 = vcvt.s32.f32 %v2721
      %v2786 = vcvt.s32.f32 %v2722
      %v2787 = vcvt.s32.f32 %v2723
      %v2788 = vcvt.s32.f32 %v2724
      %v2789 = vcvt.s32.f32 %v2725
      %v2790 = vcvt.s32.f32 %v2726
      %v2791 = vcvt.s32.f32 %v2727
      %v2792 = vcvt.s32.f32 %v2728
      %v2793 = vcvt.s32.f32 %v2729
      %v2794 = vcvt.s32.f32 %v2730
      %v2795 = vcvt.s32.f32 %v2731
      %v2796 = vcvt.s32.f32 %v2732
      %v2797 = vcvt.s32.f32 %v2733
      %v2798 = vcvt.s32.f32 %v2734
      %v2799 = vcvt.s32.f32 %v2735
      %v2800 = vcvt.s32.f32 %v2736
      %v2801 = vcvt.s32.f32 %v2737
      %v2802 = vcvt.s32.f32 %v2738
      %v2803 = vcvt.s32.f32 %v2739
      %v2804 = vcvt.s32.f32 %v2740
      %v2805 = vcvt.s32.f32 %v2741
      %v2806 = vcvt.s32.f32 %v2742
      %v2807 = vcvt.s32.f32 %v2743
      %v2808 = vcvt.s32.f32 %v2744
      %v2809 = vcvt.s32.f32 %v2745
      %v2810 = vcvt.s32.f32 %v2746
      %v2811 = vcvt.s32.f32 %v2747
      %v2812 = vcvt.s32.f32 %v2748
      %v2813 = vcvt.s32.f32 %v2749
      %v2814 = vcvt.s32.f32 %v2750
      %v2815 = vcvt.s32.f32 %v2751
      %v2816 = vcvt.s32.f32 %v2752
      %v2817 = vcvt.s32.f32 %v2753
      %v2818 = vcvt.s32.f32 %v2754
      %v2819 = vcvt.s32.f32 %v2755
      %v2820 = vmul.f32 %v1559, %v2618
      %v2822 = vlaneseq
      %v2823 = vshrl.u32 %v2822, 7
      %v2824 = vsub.s32 0, %v2823
      %v2825 = vrot.slane %v2820, %v2824
      %v2826 = vlaneseq
      %v2827 = vshrl.u32 %v2826, 7
      %v2828 = vsub.s32 1, %v2827
      %v2829 = vrot.slane %v2820, %v2828
      %v2832 = vmul.f32 %v2756, %v2825
      %v2833 = vmul.f32 %v2757, %v2829
      %v2834 = vmul.f32 %v2758, %v2825
      %v2835 = vmul.f32 %v2759, %v2829
      %v2836 = vmul.f32 %v2760, %v2825
      %v2837 = vmul.f32 %v2761, %v2829
      %v2838 = vmul.f32 %v2762, %v2825
      %v2839 = vmul.f32 %v2763, %v2829
      %v2840 = vmul.f32 %v2764, %v2825
      %v2841 = vmul.f32 %v2765, %v2829
      %v2842 = vmul.f32 %v2766, %v2825
      %v2843 = vmul.f32 %v2767, %v2829
      %v2844 = vmul.f32 %v2768, %v2825
      %v2845 = vmul.f32 %v2769, %v2829
      %v2846 = vmul.f32 %v2770, %v2825
      %v2847 = vmul.f32 %v2771, %v2829
      %v2848 = vmul.f32 %v2772, %v2825
      %v2849 = vmul.f32 %v2773, %v2829
      %v2850 = vmul.f32 %v2774, %v2825
      %v2851 = vmul.f32 %v2775, %v2829
      %v2852 = vmul.f32 %v2776, %v2825
      %v2853 = vmul.f32 %v2777, %v2829
      %v2854 = vmul.f32 %v2778, %v2825
      %v2855 = vmul.f32 %v2779, %v2829
      %v2856 = vmul.f32 %v2780, %v2825
      %v2857 = vmul.f32 %v2781, %v2829
      %v2858 = vmul.f32 %v2782, %v2825
      %v2859 = vmul.f32 %v2783, %v2829
      %v2860 = vmul.f32 %v2784, %v2825
      %v2861 = vmul.f32 %v2785, %v2829
      %v2862 = vmul.f32 %v2786, %v2825
      %v2863 = vmul.f32 %v2787, %v2829
      %v2864 = vmul.f32 %v2788, %v2825
      %v2865 = vmul.f32 %v2789, %v2829
      %v2866 = vmul.f32 %v2790, %v2825
      %v2867 = vmul.f32 %v2791, %v2829
      %v2868 = vmul.f32 %v2792, %v2825
      %v2869 = vmul.f32 %v2793, %v2829
      %v2870 = vmul.f32 %v2794, %v2825
      %v2871 = vmul.f32 %v2795, %v2829
      %v2872 = vmul.f32 %v2796, %v2825
      %v2873 = vmul.f32 %v2797, %v2829
      %v2874 = vmul.f32 %v2798, %v2825
      %v2875 = vmul.f32 %v2799, %v2829
      %v2876 = vmul.f32 %v2800, %v2825
      %v2877 = vmul.f32 %v2801, %v2829
      %v2878 = vmul.f32 %v2802, %v2825
      %v2879 = vmul.f32 %v2803, %v2829
      %v2880 = vmul.f32 %v2804, %v2825
      %v2881 = vmul.f32 %v2805, %v2829
      %v2882 = vmul.f32 %v2806, %v2825
      %v2883 = vmul.f32 %v2807, %v2829
      %v2884 = vmul.f32 %v2808, %v2825
      %v2885 = vmul.f32 %v2809, %v2829
      %v2886 = vmul.f32 %v2810, %v2825
      %v2887 = vmul.f32 %v2811, %v2829
      %v2888 = vmul.f32 %v2812, %v2825
      %v2889 = vmul.f32 %v2813, %v2829
      %v2890 = vmul.f32 %v2814, %v2825
      %v2891 = vmul.f32 %v2815, %v2829
      %v2892 = vmul.f32 %v2816, %v2825
      %v2893 = vmul.f32 %v2817, %v2829
      %v2894 = vmul.f32 %v2818, %v2825
      %v2895 = vmul.f32 %v2819, %v2829
      %v2896 = vadd.f32 %v2551, %v2832
      %v2897 = vadd.f32 %v2552, %v2833
      %v2898 = vadd.f32 %v2553, %v2834
      %v2899 = vadd.f32 %v2554, %v2835
      %v2900 = vadd.f32 %v2555, %v2836
      %v2901 = vadd.f32 %v2556, %v2837
      %v2902 = vadd.f32 %v2557, %v2838
      %v2903 = vadd.f32 %v2558, %v2839
      %v2904 = vadd.f32 %v2559, %v2840
      %v2905 = vadd.f32 %v2560, %v2841
      %v2906 = vadd.f32 %v2561, %v2842
      %v2907 = vadd.f32 %v2562, %v2843
      %v2908 = vadd.f32 %v2563, %v2844
      %v2909 = vadd.f32 %v2564, %v2845
      %v2910 = vadd.f32 %v2565, %v2846
      %v2911 = vadd.f32 %v2566, %v2847
      %v2912 = vadd.f32 %v2567, %v2848
      %v2913 = vadd.f32 %v2568, %v2849
      %v2914 = vadd.f32 %v2569, %v2850
      %v2915 = vadd.f32 %v2570, %v2851
      %v2916 = vadd.f32 %v2571, %v2852
      %v2917 = vadd.f32 %v2572, %v2853
      %v2918 = vadd.f32 %v2573, %v2854
      %v2919 = vadd.f32 %v2574, %v2855
      %v2920 = vadd.f32 %v2575, %v2856
      %v2921 = vadd.f32 %v2576, %v2857
      %v2922 = vadd.f32 %v2577, %v2858
      %v2923 = vadd.f32 %v2578, %v2859
      %v2924 = vadd.f32 %v2579, %v2860
      %v2925 = vadd.f32 %v2580, %v2861
      %v2926 = vadd.f32 %v2581, %v2862
      %v2927 = vadd.f32 %v2582, %v2863
      %v2928 = vadd.f32 %v2583, %v2864
      %v2929 = vadd.f32 %v2584, %v2865
      %v2930 = vadd.f32 %v2585, %v2866
      %v2931 = vadd.f32 %v2586, %v2867
      %v2932 = vadd.f32 %v2587, %v2868
      %v2933 = vadd.f32 %v2588, %v2869
      %v2934 = vadd.f32 %v2589, %v2870
      %v2935 = vadd.f32 %v2590, %v2871
      %v2936 = vadd.f32 %v2591, %v2872
      %v2937 = vadd.f32 %v2592, %v2873
      %v2938 = vadd.f32 %v2593, %v2874
      %v2939 = vadd.f32 %v2594, %v2875
      %v2940 = vadd.f32 %v2595, %v2876
      %v2941 = vadd.f32 %v2596, %v2877
      %v2942 = vadd.f32 %v2597, %v2878
      %v2943 = vadd.f32 %v2598, %v2879
      %v2944 = vadd.f32 %v2599, %v2880
      %v2945 = vadd.f32 %v2600, %v2881
      %v2946 = vadd.f32 %v2601, %v2882
      %v2947 = vadd.f32 %v2602, %v2883
      %v2948 = vadd.f32 %v2603, %v2884
      %v2949 = vadd.f32 %v2604, %v2885
      %v2950 = vadd.f32 %v2605, %v2886
      %v2951 = vadd.f32 %v2606, %v2887
      %v2952 = vadd.f32 %v2607, %v2888
      %v2953 = vadd.f32 %v2608, %v2889
      %v2954 = vadd.f32 %v2609, %v2890
      %v2955 = vadd.f32 %v2610, %v2891
      %v2956 = vadd.f32 %v2611, %v2892
      %v2957 = vadd.f32 %v2612, %v2893
      %v2958 = vadd.f32 %v2613, %v2894
      %v2959 = vadd.f32 %v2614, %v2895
      %2960 = vmatprep.subr.mxu0 %v2897
      %2961 = vmatpush1.msra.mxu0 %v2896
      %2962 = vmatprep.subr.mxu0 %v2899
      %2963 = vmatpush1.msra.mxu0 %v2898
      %2964 = vmatprep.subr.mxu0 %v2901
      %2965 = vmatpush1.msra.mxu0 %v2900
      %2966 = vmatprep.subr.mxu0 %v2903
      %2967 = vmatpush1.msra.mxu0 %v2902
      %2968 = vmatprep.subr.mxu0 %v2905
      %2969 = vmatpush1.msra.mxu0 %v2904
      %2970 = vmatprep.subr.mxu0 %v2907
      %2971 = vmatpush1.msra.mxu0 %v2906
      %2972 = vmatprep.subr.mxu0 %v2909
      %2973 = vmatpush1.msra.mxu0 %v2908
      %2974 = vmatprep.subr.mxu0 %v2911
      %2975 = vmatpush1.msra.mxu0 %v2910
      %2976 = vmatprep.subr.mxu0 %v2913
      %2977 = vmatpush1.msra.mxu0 %v2912
      %2978 = vmatprep.subr.mxu0 %v2915
      %2979 = vmatpush1.msra.mxu0 %v2914
      %2980 = vmatprep.subr.mxu0 %v2917
      %2981 = vmatpush1.msra.mxu0 %v2916
      %2982 = vmatprep.subr.mxu0 %v2919
      %2983 = vmatpush1.msra.mxu0 %v2918
      %2984 = vmatprep.subr.mxu0 %v2921
      %2985 = vmatpush1.msra.mxu0 %v2920
      %2986 = vmatprep.subr.mxu0 %v2923
      %2987 = vmatpush1.msra.mxu0 %v2922
      %2988 = vmatprep.subr.mxu0 %v2925
      %2989 = vmatpush1.msra.mxu0 %v2924
      %2990 = vmatprep.subr.mxu0 %v2927
      %2991 = vmatpush1.msra.mxu0 %v2926
      %2992 = vmatprep.subr.mxu0 %v2929
      %2993 = vmatpush1.msra.mxu0 %v2928
      %2994 = vmatprep.subr.mxu0 %v2931
      %2995 = vmatpush1.msra.mxu0 %v2930
      %2996 = vmatprep.subr.mxu0 %v2933
      %2997 = vmatpush1.msra.mxu0 %v2932
      %2998 = vmatprep.subr.mxu0 %v2935
      %2999 = vmatpush1.msra.mxu0 %v2934
      %3000 = vmatprep.subr.mxu0 %v2937
      %3001 = vmatpush1.msra.mxu0 %v2936
      %3002 = vmatprep.subr.mxu0 %v2939
      %3003 = vmatpush1.msra.mxu0 %v2938
      %3004 = vmatprep.subr.mxu0 %v2941
      %3005 = vmatpush1.msra.mxu0 %v2940
      %3006 = vmatprep.subr.mxu0 %v2943
      %3007 = vmatpush1.msra.mxu0 %v2942
      %3008 = vmatprep.subr.mxu0 %v2945
      %3009 = vmatpush1.msra.mxu0 %v2944
      %3010 = vmatprep.subr.mxu0 %v2947
      %3011 = vmatpush1.msra.mxu0 %v2946
      %3012 = vmatprep.subr.mxu0 %v2949
      %3013 = vmatpush1.msra.mxu0 %v2948
      %3014 = vmatprep.subr.mxu0 %v2951
      %3015 = vmatpush1.msra.mxu0 %v2950
      %3016 = vmatprep.subr.mxu0 %v2953
      %3017 = vmatpush1.msra.mxu0 %v2952
      %3018 = vmatprep.subr.mxu0 %v2955
      %3019 = vmatpush1.msra.mxu0 %v2954
      %3020 = vmatprep.subr.mxu0 %v2957
      %3021 = vmatpush1.msra.mxu0 %v2956
      %3022 = vmatprep.subr.mxu0 %v2959
      %3023 = vmatpush1.msra.mxu0 %v2958
      %3024 = vmatprep.mubr.f32.mxu0 %v696
      %3025 = vmatmul.mubr.f32.gmra.mrb[0].mxu0 %v694
      %v3026 = vpop.f32.mrb[0].mxu0
      %v3027 = vadd.f32 0.0, %v3026
      %v3028 = vpop.f32.mrb[0].mxu0
      %v3029 = vadd.f32 0.0, %v3028
      %3030 = vdwg.mxu0
      %v3031 = vadd.f32 %v792, %v3027
      %v3032 = vadd.f32 %v793, %v3029
      %v3033 = vadd.f32 %v3031, %v3032
      %3034 = vadd.xlane.f32.xlu0 %v3033
      %v3035 = vpop.xlane.xlu0 %3034
      %v3036 = vmul.f32 %v3035, 0.00390625
      %v3037 = vld [vmem:[%s11] sm:$0xff]
      %v3039 = vsel %vm701, %v3037, 0
      %3041 = vmatprep.subr.mxu0 0.0
      %3042 = vmatpush1.msra.mxu0 %v3036
      %3043 = vmatprep.subr.mxu0 0.0
      %3044 = vmatpush1.msra.mxu0 0.0
      %3045 = vmatprep.subr.mxu0 0.0
      %3046 = vmatpush1.msra.mxu0 0.0
      %3047 = vmatprep.subr.mxu0 0.0
      %3048 = vmatpush1.msra.mxu0 0.0
      %3049 = vmatprep.subr.mxu0 0.0
      %3050 = vmatpush1.msra.mxu0 0.0
      %3051 = vmatprep.subr.mxu0 0.0
      %3052 = vmatpush1.msra.mxu0 0.0
      %3053 = vmatprep.subr.mxu0 0.0
      %3054 = vmatpush1.msra.mxu0 0.0
      %3055 = vmatprep.subr.mxu0 0.0
      %3056 = vmatpush1.msra.mxu0 0.0
      %3057 = vmatprep.subr.mxu0 0.0
      %3058 = vmatpush1.msra.mxu0 0.0
      %3059 = vmatprep.subr.mxu0 0.0
      %3060 = vmatpush1.msra.mxu0 0.0
      %3061 = vmatprep.subr.mxu0 0.0
      %3062 = vmatpush1.msra.mxu0 0.0
      %3063 = vmatprep.subr.mxu0 0.0
      %3064 = vmatpush1.msra.mxu0 0.0
      %3065 = vmatprep.subr.mxu0 0.0
      %3066 = vmatpush1.msra.mxu0 0.0
      %3067 = vmatprep.subr.mxu0 0.0
      %3068 = vmatpush1.msra.mxu0 0.0
      %3069 = vmatprep.subr.mxu0 0.0
      %3070 = vmatpush1.msra.mxu0 0.0
      %3071 = vmatprep.subr.mxu0 0.0
      %3072 = vmatpush1.msra.mxu0 0.0
      %3073 = vmatprep.subr.mxu0 0.0
      %3074 = vmatpush1.msra.mxu0 0.0
      %3075 = vmatprep.subr.mxu0 0.0
      %3076 = vmatpush1.msra.mxu0 0.0
      %3077 = vmatprep.subr.mxu0 0.0
      %3078 = vmatpush1.msra.mxu0 0.0
      %3079 = vmatprep.subr.mxu0 0.0
      %3080 = vmatpush1.msra.mxu0 0.0
      %3081 = vmatprep.subr.mxu0 0.0
      %3082 = vmatpush1.msra.mxu0 0.0
      %3083 = vmatprep.subr.mxu0 0.0
      %3084 = vmatpush1.msra.mxu0 0.0
      %3085 = vmatprep.subr.mxu0 0.0
      %3086 = vmatpush1.msra.mxu0 0.0
      %3087 = vmatprep.subr.mxu0 0.0
      %3088 = vmatpush1.msra.mxu0 0.0
      %3089 = vmatprep.subr.mxu0 0.0
      %3090 = vmatpush1.msra.mxu0 0.0
      %3091 = vmatprep.subr.mxu0 0.0
      %3092 = vmatpush1.msra.mxu0 0.0
      %3093 = vmatprep.subr.mxu0 0.0
      %3094 = vmatpush1.msra.mxu0 0.0
      %3095 = vmatprep.subr.mxu0 0.0
      %3096 = vmatpush1.msra.mxu0 0.0
      %3097 = vmatprep.subr.mxu0 0.0
      %3098 = vmatpush1.msra.mxu0 0.0
      %3099 = vmatprep.subr.mxu0 0.0
      %3100 = vmatpush1.msra.mxu0 0.0
      %3101 = vmatprep.subr.mxu0 0.0
      %3102 = vmatpush1.msra.mxu0 0.0
      %3103 = vmatprep.subr.mxu0 0.0
      %3104 = vmatpush1.msra.mxu0 0.0
      %3105 = vmatprep.mubr.f32.mxu0 0.0
      %3106 = vmatmul.mubr.f32.gmra.mrb[0].mxu0 %v3039
      %v3107 = vpop.f32.mrb[0].mxu0
      %v3108 = vadd.f32 0.0, %v3107
      %v3109 = vpop.f32.mrb[0].mxu0
      %3110 = vdwg.mxu0
      %v3111 = vxor.u32 %v3108, 2147483648
      %v3112 = vmul.f32 %v3111, 1.442695
      %v3113 = vpow.pop %v3112
      %v3114 = vadd.f32 %v3113, 1.0
      %v3115 = vrcp.pop %v3114
      %v3116 = vmul.f32 1.0, %v3115
      %v3117 = vld [vmem:[%s12] sm:$0x1]
      %v3119 = vsel %vm701, %v3117, 0
      %3121 = vmatprep.subr.mxu0 %v3032
      %3122 = vmatpush1.msra.mxu0 %v3031
      %3123 = vmatprep.subr.mxu0 0.0
      %3124 = vmatpush1.msra.mxu0 0.0
      %3125 = vmatprep.subr.mxu0 0.0
      %3126 = vmatpush1.msra.mxu0 0.0
      %3127 = vmatprep.subr.mxu0 0.0
      %3128 = vmatpush1.msra.mxu0 0.0
      %3129 = vmatprep.subr.mxu0 0.0
      %3130 = vmatpush1.msra.mxu0 0.0
      %3131 = vmatprep.subr.mxu0 0.0
      %3132 = vmatpush1.msra.mxu0 0.0
      %3133 = vmatprep.subr.mxu0 0.0
      %3134 = vmatpush1.msra.mxu0 0.0
      %3135 = vmatprep.subr.mxu0 0.0
      %3136 = vmatpush1.msra.mxu0 0.0
      %3137 = vmatprep.subr.mxu0 0.0
      %3138 = vmatpush1.msra.mxu0 0.0
      %3139 = vmatprep.subr.mxu0 0.0
      %3140 = vmatpush1.msra.mxu0 0.0
      %3141 = vmatprep.subr.mxu0 0.0
      %3142 = vmatpush1.msra.mxu0 0.0
      %3143 = vmatprep.subr.mxu0 0.0
      %3144 = vmatpush1.msra.mxu0 0.0
      %3145 = vmatprep.subr.mxu0 0.0
      %3146 = vmatpush1.msra.mxu0 0.0
      %3147 = vmatprep.subr.mxu0 0.0
      %3148 = vmatpush1.msra.mxu0 0.0
      %3149 = vmatprep.subr.mxu0 0.0
      %3150 = vmatpush1.msra.mxu0 0.0
      %3151 = vmatprep.subr.mxu0 0.0
      %3152 = vmatpush1.msra.mxu0 0.0
      %3153 = vmatprep.subr.mxu0 0.0
      %3154 = vmatpush1.msra.mxu0 0.0
      %3155 = vmatprep.subr.mxu0 0.0
      %3156 = vmatpush1.msra.mxu0 0.0
      %3157 = vmatprep.subr.mxu0 0.0
      %3158 = vmatpush1.msra.mxu0 0.0
      %3159 = vmatprep.subr.mxu0 0.0
      %3160 = vmatpush1.msra.mxu0 0.0
      %3161 = vmatprep.subr.mxu0 0.0
      %3162 = vmatpush1.msra.mxu0 0.0
      %3163 = vmatprep.subr.mxu0 0.0
      %3164 = vmatpush1.msra.mxu0 0.0
      %3165 = vmatprep.subr.mxu0 0.0
      %3166 = vmatpush1.msra.mxu0 0.0
      %3167 = vmatprep.subr.mxu0 0.0
      %3168 = vmatpush1.msra.mxu0 0.0
      %3169 = vmatprep.subr.mxu0 0.0
      %3170 = vmatpush1.msra.mxu0 0.0
      %3171 = vmatprep.subr.mxu0 0.0
      %3172 = vmatpush1.msra.mxu0 0.0
      %3173 = vmatprep.subr.mxu0 0.0
      %3174 = vmatpush1.msra.mxu0 0.0
      %3175 = vmatprep.subr.mxu0 0.0
      %3176 = vmatpush1.msra.mxu0 0.0
      %3177 = vmatprep.subr.mxu0 0.0
      %3178 = vmatpush1.msra.mxu0 0.0
      %3179 = vmatprep.subr.mxu0 0.0
      %3180 = vmatpush1.msra.mxu0 0.0
      %3181 = vmatprep.subr.mxu0 0.0
      %3182 = vmatpush1.msra.mxu0 0.0
      %3183 = vmatprep.subr.mxu0 0.0
      %3184 = vmatpush1.msra.mxu0 0.0
      %3185 = vmatprep.mubr.f32.mxu0 0.0
      %3186 = vmatmul.mubr.f32.gmra.mrb[0].mxu0 %v3119
      %v3187 = vpop.f32.mrb[0].mxu0
      %v3188 = vadd.f32 0.0, %v3187
      %v3189 = vpop.f32.mrb[0].mxu0
      %v3190 = vadd.f32 0.0, %v3189
      %3191 = vdwg.mxu0
      %v3192 = vxor.u32 %v3188, 2147483648
      %v3193 = vxor.u32 %v3190, 2147483648
      %v3194 = vmul.f32 %v3192, 1.442695
      %v3195 = vpow.pop %v3194
      %v3196 = vmul.f32 %v3193, 1.442695
      %v3197 = vpow.pop %v3196
      %v3198 = vadd.f32 %v3195, 1.0
      %v3199 = vadd.f32 %v3197, 1.0
      %v3200 = vrcp.pop %v3198
      %v3201 = vmul.f32 1.0, %v3200
      %v3202 = vrcp.pop %v3199
      %v3203 = vmul.f32 1.0, %v3202
      %v3204 = vlaneseq
      %v3205 = vshrl.u32 %v3204, 7
      %v3206 = vsub.s32 0, %v3205
      %v3207 = vrot.slane %v3201, %v3206
      %v3208 = vlaneseq
      %v3209 = vshrl.u32 %v3208, 7
      %v3210 = vsub.s32 0, %v3209
      %v3211 = vrot.slane %v3203, %v3210
      %v3212 = vmul.f32 %v3031, %v3207
      %v3213 = vmul.f32 %v3032, %v3211
      %3215 = vset.pattern.permute.xlu0 0
      %3216 = vperm.xlu0 %3215, %v3116
      %v3217 = vpop.permute.xlu0 %3216
      %v3219 = vmul.f32 %v3031, %v3217
      %v3220 = vmul.f32 %v3032, %v3217
      %v3221 = vadd.f32 %v3212, %v3219
      %v3222 = vadd.f32 %v3213, %v3220
      %3223 = vst [vmem:[%s514] sm:$0xff] %v3221
      %3224 = vst [vmem:[%s514 + $0x8] sm:$0xff] %v3222
      %p3225 = scmp.lt.s32.totalorder %s26, 1
      %s3226 = scalar_select %p3225, %s26, 1
      %s3227 = smul.addr %s3226, 2
      %s3228 = smul.addr %s3227, 8
      %s3229 = scalar_lea.vmem %s15, %s3228
      // Predicated region
      $region81: #{_lambda_.1} parent=79 // pred_check
        %p3230 = pneg %p369
      $region82: #{_lambda_.1} parent=79 // pred_check_branch
        %3232 = sbr.rel (%p3230) target = $region84
      $region83: #{_lambda_.1} parent=79 // pred_region
        _
      $region84: #{_lambda_.1} parent=79 // pred_fallthru
        _
    $region80: #{_lambda_.1} parent=5 // pred_fallthru
      _
    %p3233 = scmp.le.s32.totalorder 2, %s21
    // Predicated region
    $region85: #{_lambda_.1} parent=5 // pred_check
      %p3234 = pneg %p3233
    $region86: #{_lambda_.1} parent=5 // pred_check_branch
      %3236 = sbr.rel (%p3234) target = $region88
    $region87: #{_lambda_.1} parent=5 // pred_region
      %s3237 = ssub.s32 %s21, 2
      // Predicated region
      $region89: #{_lambda_.1} parent=87 // pred_check
        %p3238 = pneg %p375
      $region90: #{_lambda_.1} parent=87 // pred_check_branch
        %3240 = sbr.rel (%p3238) target = $region92
      $region91: #{_lambda_.1} parent=87 // pred_region
        %p3241 = scmp.lt.s32.totalorder %s27, 1
        %s3242 = scalar_select %p3241, %s27, 1
        %s3243 = smul.addr %s3242, 2
        %s3244 = smul.addr %s3243, 8
        %s3245 = scalar_lea.vmem %s15, %s3244
      $region92: #{_lambda_.1} parent=87 // pred_fallthru
        _
    $region88: #{_lambda_.1} parent=5 // pred_fallthru
      _
  $region6: #{_lambda_.1} parent=0 // loop_footer
    %s25 = sadd.s32 1, %s21
  $region7: #{_lambda_.1} parent=0 // loop_footer_branch
    %20 = sbr.rel target = $region3
  $region8: #{_lambda_.1} parent=0 // loop_exit
    _

</llo_original>
